<compile_context>
chip_gen: v6e
topology: v6e:2x2x1
jax: 0.10.0
libtpu: 0.0.40
codegen_flags: <defaults>
</compile_context>

<pallas_src>
import math

import jax
import jax.numpy as jnp
from jax.experimental import pallas as pl
from jax.experimental.pallas import tpu as pltpu

BN_EPS = 1e-5


def _round_up(x, m):
    return (x + m - 1) // m * m


# ----------------------------------------------------------------------------
# Kernel 1: per-channel sum / sum-of-squares over all pixels of the
# (4, M, C) pooling-window buffer (== all N*H*W pixels when H, W are even).
# Grid: (cores, row_tiles).  The leading "parallel" axis lets the two v7x
# TensorCores produce independent partials; the wrapper adds them.
# ----------------------------------------------------------------------------
def bn_stats_kernel(x_ref, stat_ref):
    # x_ref    : (4, tile_m, C) bf16
    # stat_ref : (1, 2, C) f32 partial [sum; sum_sq] for this core
    @pl.when(pl.program_id(1) == 0)
    def _():
        stat_ref[...] = jnp.zeros_like(stat_ref)

    c = x_ref.shape[-1]
    s = jnp.zeros((1, c), jnp.float32)
    q = jnp.zeros((1, c), jnp.float32)
    for k in range(4):                            # static unroll over window pixels
        xk = x_ref[k].astype(jnp.float32)         # (tile_m, C)
        s = s + jnp.sum(xk, axis=0, keepdims=True)
        q = q + jnp.sum(xk * xk, axis=0, keepdims=True)
    stat_ref[:, 0:1, :] += s[None, :, :]
    stat_ref[:, 1:2, :] += q[None, :, :]


# ----------------------------------------------------------------------------
# Kernel 2: fused BN-affine + ReLU + AvgPool2d(2) + 1x1 conv.
# The affine/ReLU/pool result for a row tile is computed once (j == 0) into a
# VMEM scratch and reused for every output-channel tile (j axis "arbitrary",
# x block index unchanged across j so it is not re-fetched).
# ----------------------------------------------------------------------------
def transition_kernel(x_ref, ss_ref, w_ref, o_ref, p_ref):
    # x_ref : (4, tile_m, C) bf16   -- 4 pixels of each 2x2 pooling window
    # ss_ref: (2, C)        f32     -- [scale; shift] precomputed from BN stats
    # w_ref : (C, tile_n)   bf16    -- 1x1-conv weight (transposed, Cout padded)
    # o_ref : (tile_m, tile_n) f32  -- lane-dense full-block store
    # p_ref : (tile_m, C)   bf16    -- scratch: pooled normalized activations
    @pl.when(pl.program_id(1) == 0)
    def _():
        scale = ss_ref[0:1, :]
        shift = ss_ref[1:2, :]
        acc = None
        for k in range(4):                        # ReLU is nonlinear -> per pixel first
            y = jnp.maximum(x_ref[k].astype(jnp.float32) * scale + shift, 0.0)
            acc = y if acc is None else acc + y
        p_ref[...] = (acc * 0.25).astype(p_ref.dtype)

    # bf16 operands, f32 accumulation on the MXU.
    o_ref[...] = jnp.dot(p_ref[...], w_ref[...],
                         preferred_element_type=jnp.float32)


# ----------------------------------------------------------------------------
# Full forward pass (matches Transition.forward semantics, training-mode BN)
# ----------------------------------------------------------------------------
def transition_forward(params, x_nchw, *, tile_m=512, tile_n=512):
    gamma = params['gamma'].astype(jnp.float32)
    beta = params['beta'].astype(jnp.float32)
    weight = params['weight']
    N, C, H, W = x_nchw.shape
    Cout = weight.shape[0]
    Ho, Wo = H // 2, W // 2
    Mp = N * Ho * Wo

    # ---- single HBM materialization: NCHW -> (4, N*Ho*Wo, C) bf16 -----------
    # (AvgPool2d(2,2) uses floor behavior for odd H/W, so crop first.)
    xc = x_nchw[:, :, :2 * Ho, :2 * Wo]
    x_win = xc.reshape(N, C, Ho, 2, Wo, 2).transpose(3, 5, 0, 2, 4, 1)
    x_win = x_win.reshape(4, Mp, C).astype(jnp.bfloat16)

    tile_m = min(tile_m, _round_up(Mp, 8))
    Mpp = _round_up(Mp, tile_m)
    if Mpp != Mp:
        x_win = jnp.pad(x_win, ((0, 0), (0, Mpp - Mp), (0, 0)))  # zero rows: harmless

    # ---- 1) BatchNorm batch statistics over the FULL (N, H, W) extent -------
    if H % 2 == 0 and W % 2 == 0:
        n_tiles = Mpp // tile_m
        cores = 2 if (n_tiles % 2 == 0 and n_tiles >= 2) else 1
        tpc = n_tiles // cores
        part = pl.pallas_call(
            bn_stats_kernel,
            out_shape=jax.ShapeDtypeStruct((cores, 2, C), jnp.float32),
            grid_spec=pltpu.PrefetchScalarGridSpec(
                num_scalar_prefetch=0,
                grid=(cores, tpc),
                in_specs=[pl.BlockSpec(
                    (4, tile_m, C),
                    lambda c_, i, tpc=tpc: (0, c_ * tpc + i, 0))],
                out_specs=pl.BlockSpec((1, 2, C), lambda c_, i: (c_, 0, 0)),
            ),
            compiler_params=pltpu.CompilerParams(
                dimension_semantics=("parallel", "arbitrary"),
                vmem_limit_bytes=48 * 1024 * 1024),
        )(x_win)
        stats = jnp.sum(part, axis=0)                       # (2, C)
        count = float(N * H * W)
        mean = stats[0] / count
        var = stats[1] / count - mean * mean                # biased (train-mode) var
        # NOTE: E[x^2]-E[x]^2 in f32 can cancel badly for huge-mean inputs;
        # fine for typical activation statistics.
    else:
        # Odd spatial dims: pooling windows drop the last row/col, but BN stats
        # must cover the full extent -> compute them in plain XLA here.
        xf = x_nchw.astype(jnp.float32)
        mean = jnp.mean(xf, axis=(0, 2, 3))
        var = jnp.var(xf, axis=(0, 2, 3))

    # Hoisted BN affine: y = x * scale + shift  (computed once, not per tile).
    inv_std = jax.lax.rsqrt(var + BN_EPS)
    scale = gamma * inv_std
    shift = beta - mean * scale
    ss = jnp.stack([scale, shift], axis=0).astype(jnp.float32)      # (2, C)

    # ---- 2) fused affine/ReLU/pool/conv --------------------------------------
    Cop = _round_up(Cout, 128)                   # lane-dense output stores
    tile_n = min(tile_n, Cop)
    w = weight.reshape(Cout, C).T.astype(jnp.bfloat16)              # (C, Cout)
    w = jnp.pad(w, ((0, 0), (0, Cop - Cout)))

    out_flat = pl.pallas_call(
        transition_kernel,
        out_shape=jax.ShapeDtypeStruct((Mpp, Cop), jnp.float32),
        grid_spec=pltpu.PrefetchScalarGridSpec(
            num_scalar_prefetch=0,
            grid=(Mpp // tile_m, Cop // tile_n),
            in_specs=[
                pl.BlockSpec((4, tile_m, C), lambda i, j: (0, i, 0)),
                pl.BlockSpec((2, C), lambda i, j: (0, 0)),
                pl.BlockSpec((C, tile_n), lambda i, j: (0, j)),
            ],
            out_specs=pl.BlockSpec((tile_m, tile_n), lambda i, j: (i, j)),
            scratch_shapes=[pltpu.VMEM((tile_m, C), jnp.bfloat16)],
        ),
        compiler_params=pltpu.CompilerParams(
            dimension_semantics=("parallel", "arbitrary"),
            vmem_limit_bytes=48 * 1024 * 1024),   # v7x-safe (64 MiB physical)
    )(x_win, ss, w)

    out = out_flat[:Mp, :Cout].reshape(N, Ho, Wo, Cout)
    return jnp.transpose(out, (0, 3, 1, 2))                         # NCHW


# ----------------------------------------------------------------------------
# Pure-JAX reference (PyTorch op order: bn -> relu -> conv -> pool, f32)
# ----------------------------------------------------------------------------
def reference_forward(params, x_nchw):
    gamma, beta = params['gamma'], params['beta']
    wmat = params['weight'].reshape(params['weight'].shape[0], -1)  # (Cout, Cin)
    x = x_nchw.astype(jnp.float32)
    mean = jnp.mean(x, axis=(0, 2, 3), keepdims=True)
    var = jnp.var(x, axis=(0, 2, 3), keepdims=True)                 # biased
    y = (x - mean) * jax.lax.rsqrt(var + BN_EPS)
    y = y * gamma[None, :, None, None] + beta[None, :, None, None]
    y = jnp.maximum(y, 0.0)
    z = jnp.einsum('nchw,oc->nohw', y, wmat)
    N, Co, H, W = z.shape
    Ho, Wo = H // 2, W // 2
    z = z[:, :, :2 * Ho, :2 * Wo].reshape(N, Co, Ho, 2, Wo, 2)
    return z.mean(axis=(3, 5))


# ----------------------------------------------------------------------------
# Deterministic parameter construction
# ----------------------------------------------------------------------------
def init_params(key, input_c, output_c):
    kw, kg, kb = jax.random.split(key, 3)
    bound = 1.0 / math.sqrt(input_c)          # Conv2d default-style uniform init
    weight = jax.random.uniform(kw, (output_c, input_c, 1, 1), jnp.float32,
                                -bound, bound)
    gamma = 1.0 + 0.1 * jax.random.normal(kg, (input_c,), jnp.float32)
    beta = 0.1 * jax.random.normal(kb, (input_c,), jnp.float32)
    return dict(weight=weight, gamma=gamma, beta=beta)


if __name__ == "__main__":
    key = jax.random.PRNGKey(0)
    pkey, xkey = jax.random.split(key)

    B, Cin, Cout, H, W = 2, 96, 48, 32, 32    # exercises non-128 C and Cout padding
    params = init_params(pkey, Cin, Cout)
    x = jax.random.normal(xkey, (B, Cin, H, W), jnp.float32)

    fwd = jax.jit(transition_forward)
    out = jax.block_until_ready(fwd(params, x))

    assert out.shape == (B, Cout, H // 2, W // 2), out.shape
    assert bool(jnp.all(jnp.isfinite(out)))

    # bf16 activations/weights on the MXU (f32 accumulation) vs f32 reference:
    # intentional precision tradeoff, checked at 2e-2.
    ref = reference_forward(params, x)
    max_err = float(jnp.max(jnp.abs(out - ref)))
    assert bool(jnp.allclose(out, ref, atol=2e-2, rtol=2e-2)), max_err

    print("KERNEL_OK")
</pallas_src>

<mosaic_0001>
module attributes {stable_mosaic.version = 11 : i64} {
  func.func @bn_stats_kernel(%arg0: i32, %arg1: i32, %arg2: memref<4x512x96xbf16, #tpu.memory_space<vmem>>, %arg3: memref<1x2x96xf32, #tpu.memory_space<vmem>>) attributes {dimension_semantics = [#tpu.dimension_semantics<parallel>, #tpu.dimension_semantics<arbitrary>], iteration_bounds = array<i64: 1, 1>, scalar_prefetch = 0 : i64, scratch_operands = 0 : i64, tpu.core_type = #tpu.core_type<tc>, window_params = [{transform_indices = @transform_0, window_bounds = array<i64: 4, 512, 96>}, {transform_indices = @transform_1, window_bounds = array<i64: 1, 2, 96>}]} {
    %c0_i32 = arith.constant 0 : i32
    %0 = arith.cmpi eq, %arg1, %c0_i32 : i32
    %1 = arith.extui %0 : i1 to i32
    %c0_i32_0 = arith.constant 0 : i32
    %2 = arith.cmpi ne, %1, %c0_i32_0 : i32
    scf.if %2 {
      %cst_30 = arith.constant 0.000000e+00 : f32
      %53 = vector.broadcast %cst_30 : f32 to vector<1x2x96xf32>
      %c0_31 = arith.constant 0 : index
      %c0_32 = arith.constant 0 : index
      %c0_33 = arith.constant 0 : index
      %54 = vector.load %arg3[%c0_31, %c0_32, %c0_33] : memref<1x2x96xf32, #tpu.memory_space<vmem>>, vector<1x2x96xf32>
      tpu.vector_store %arg3[%c0_31, %c0_32, %c0_33], %53 {strides = array<i32>} : memref<1x2x96xf32, #tpu.memory_space<vmem>>, vector<1x2x96xf32>,
    } else {
    }
    %cst = arith.constant 0.000000e+00 : f32
    %3 = vector.broadcast %cst : f32 to vector<1x96xf32>
    %cst_1 = arith.constant 0.000000e+00 : f32
    %4 = vector.broadcast %cst_1 : f32 to vector<1x96xf32>
    %c0 = arith.constant 0 : index
    %c0_2 = arith.constant 0 : index
    %c0_3 = arith.constant 0 : index
    %5 = vector.load %arg2[%c0, %c0_2, %c0_3] : memref<4x512x96xbf16, #tpu.memory_space<vmem>>, vector<1x512x96xbf16>
    %6 = vector.shape_cast %5 : vector<1x512x96xbf16> to vector<512x96xbf16>
    %7 = arith.extf %6 : vector<512x96xbf16> to vector<512x96xf32>
    %cst_4 = arith.constant dense<0.000000e+00> : vector<96xf32>
    %8 = vector.multi_reduction <add>, %7, %cst_4 [0] : vector<512x96xf32> to vector<96xf32>
    %9 = vector.shape_cast %8 : vector<96xf32> to vector<1x96xf32>
    %10 = arith.addf %3, %9 : vector<1x96xf32>
    %11 = arith.mulf %7, %7 : vector<512x96xf32>
    %cst_5 = arith.constant dense<0.000000e+00> : vector<96xf32>
    %12 = vector.multi_reduction <add>, %11, %cst_5 [0] : vector<512x96xf32> to vector<96xf32>
    %13 = vector.shape_cast %12 : vector<96xf32> to vector<1x96xf32>
    %14 = arith.addf %4, %13 : vector<1x96xf32>
    %c1 = arith.constant 1 : index
    %c0_6 = arith.constant 0 : index
    %c0_7 = arith.constant 0 : index
    %15 = vector.load %arg2[%c1, %c0_6, %c0_7] : memref<4x512x96xbf16, #tpu.memory_space<vmem>>, vector<1x512x96xbf16>
    %16 = vector.shape_cast %15 : vector<1x512x96xbf16> to vector<512x96xbf16>
    %17 = arith.extf %16 : vector<512x96xbf16> to vector<512x96xf32>
    %cst_8 = arith.constant dense<0.000000e+00> : vector<96xf32>
    %18 = vector.multi_reduction <add>, %17, %cst_8 [0] : vector<512x96xf32> to vector<96xf32>
    %19 = vector.shape_cast %18 : vector<96xf32> to vector<1x96xf32>
    %20 = arith.addf %10, %19 : vector<1x96xf32>
    %21 = arith.mulf %17, %17 : vector<512x96xf32>
    %cst_9 = arith.constant dense<0.000000e+00> : vector<96xf32>
    %22 = vector.multi_reduction <add>, %21, %cst_9 [0] : vector<512x96xf32> to vector<96xf32>
    %23 = vector.shape_cast %22 : vector<96xf32> to vector<1x96xf32>
    %24 = arith.addf %14, %23 : vector<1x96xf32>
    %c2 = arith.constant 2 : index
    %c0_10 = arith.constant 0 : index
    %c0_11 = arith.constant 0 : index
    %25 = vector.load %arg2[%c2, %c0_10, %c0_11] : memref<4x512x96xbf16, #tpu.memory_space<vmem>>, vector<1x512x96xbf16>
    %26 = vector.shape_cast %25 : vector<1x512x96xbf16> to vector<512x96xbf16>
    %27 = arith.extf %26 : vector<512x96xbf16> to vector<512x96xf32>
    %cst_12 = arith.constant dense<0.000000e+00> : vector<96xf32>
    %28 = vector.multi_reduction <add>, %27, %cst_12 [0] : vector<512x96xf32> to vector<96xf32>
    %29 = vector.shape_cast %28 : vector<96xf32> to vector<1x96xf32>
    %30 = arith.addf %20, %29 : vector<1x96xf32>
    %31 = arith.mulf %27, %27 : vector<512x96xf32>
    %cst_13 = arith.constant dense<0.000000e+00> : vector<96xf32>
    %32 = vector.multi_reduction <add>, %31, %cst_13 [0] : vector<512x96xf32> to vector<96xf32>
    %33 = vector.shape_cast %32 : vector<96xf32> to vector<1x96xf32>
    %34 = arith.addf %24, %33 : vector<1x96xf32>
    %c3 = arith.constant 3 : index
    %c0_14 = arith.constant 0 : index
    %c0_15 = arith.constant 0 : index
    %35 = vector.load %arg2[%c3, %c0_14, %c0_15] : memref<4x512x96xbf16, #tpu.memory_space<vmem>>, vector<1x512x96xbf16>
    %36 = vector.shape_cast %35 : vector<1x512x96xbf16> to vector<512x96xbf16>
    %37 = arith.extf %36 : vector<512x96xbf16> to vector<512x96xf32>
    %cst_16 = arith.constant dense<0.000000e+00> : vector<96xf32>
    %38 = vector.multi_reduction <add>, %37, %cst_16 [0] : vector<512x96xf32> to vector<96xf32>
    %39 = vector.shape_cast %38 : vector<96xf32> to vector<1x96xf32>
    %40 = arith.addf %30, %39 : vector<1x96xf32>
    %41 = arith.mulf %37, %37 : vector<512x96xf32>
    %cst_17 = arith.constant dense<0.000000e+00> : vector<96xf32>
    %42 = vector.multi_reduction <add>, %41, %cst_17 [0] : vector<512x96xf32> to vector<96xf32>
    %43 = vector.shape_cast %42 : vector<96xf32> to vector<1x96xf32>
    %44 = arith.addf %34, %43 : vector<1x96xf32>
    %c0_18 = arith.constant 0 : index
    %c0_19 = arith.constant 0 : index
    %c0_20 = arith.constant 0 : index
    %45 = vector.load %arg3[%c0_18, %c0_19, %c0_20] : memref<1x2x96xf32, #tpu.memory_space<vmem>>, vector<1x1x96xf32>
    %46 = vector.shape_cast %40 : vector<1x96xf32> to vector<1x1x96xf32>
    %47 = arith.addf %45, %46 : vector<1x1x96xf32>
    %c0_21 = arith.constant 0 : index
    %c0_22 = arith.constant 0 : index
    %c0_23 = arith.constant 0 : index
    %48 = vector.load %arg3[%c0_21, %c0_22, %c0_23] : memref<1x2x96xf32, #tpu.memory_space<vmem>>, vector<1x1x96xf32>
    tpu.vector_store %arg3[%c0_21, %c0_22, %c0_23], %47 {strides = array<i32>} : memref<1x2x96xf32, #tpu.memory_space<vmem>>, vector<1x1x96xf32>,
    %c0_24 = arith.constant 0 : index
    %c1_25 = arith.constant 1 : index
    %c0_26 = arith.constant 0 : index
    %49 = vector.load %arg3[%c0_24, %c1_25, %c0_26] : memref<1x2x96xf32, #tpu.memory_space<vmem>>, vector<1x1x96xf32>
    %50 = vector.shape_cast %44 : vector<1x96xf32> to vector<1x1x96xf32>
    %51 = arith.addf %49, %50 : vector<1x1x96xf32>
    %c0_27 = arith.constant 0 : index
    %c1_28 = arith.constant 1 : index
    %c0_29 = arith.constant 0 : index
    %52 = vector.load %arg3[%c0_27, %c1_28, %c0_29] : memref<1x2x96xf32, #tpu.memory_space<vmem>>, vector<1x1x96xf32>
    tpu.vector_store %arg3[%c0_27, %c1_28, %c0_29], %51 {strides = array<i32>} : memref<1x2x96xf32, #tpu.memory_space<vmem>>, vector<1x1x96xf32>,
    return
  }
  func.func @transform_0(%arg0: i32, %arg1: i32) -> (i32, i32, i32) {
    %c1_i32 = arith.constant 1 : i32
    %0 = arith.muli %arg0, %c1_i32 : i32
    %1 = arith.addi %0, %arg1 : i32
    %c0_i32 = arith.constant 0 : i32
    %c0_i32_0 = arith.constant 0 : i32
    %c0_i32_1 = arith.constant 0 : i32
    return %c0_i32, %1, %c0_i32_0 : i32, i32, i32
  }
  func.func @transform_1(%arg0: i32, %arg1: i32) -> (i32, i32, i32) {
    %c0_i32 = arith.constant 0 : i32
    %c0_i32_0 = arith.constant 0 : i32
    %c0_i32_1 = arith.constant 0 : i32
    return %arg0, %c0_i32, %c0_i32_0 : i32, i32, i32
  }
}

module attributes {stable_mosaic.version = 11 : i64} {
  func.func @transition_kernel(%arg0: i32, %arg1: i32, %arg2: memref<4x512x96xbf16, #tpu.memory_space<vmem>>, %arg3: memref<2x96xf32, #tpu.memory_space<vmem>>, %arg4: memref<96x128xbf16, #tpu.memory_space<vmem>>, %arg5: memref<512x128xf32, #tpu.memory_space<vmem>>, %arg6: memref<512x96xbf16, #tpu.memory_space<vmem>>) attributes {dimension_semantics = [#tpu.dimension_semantics<parallel>, #tpu.dimension_semantics<arbitrary>], iteration_bounds = array<i64: 1, 1>, scalar_prefetch = 0 : i64, scratch_operands = 1 : i64, tpu.core_type = #tpu.core_type<tc>, window_params = [{transform_indices = @transform_0, window_bounds = array<i64: 4, 512, 96>}, {pipeline_mode = #tpu.pipeline_mode<synchronous>, transform_indices = @transform_1, window_bounds = array<i64: 2, 96>}, {transform_indices = @transform_2, window_bounds = array<i64: 96, 128>}, {transform_indices = @transform_3, window_bounds = array<i64: 512, 128>}]} {
    %c0_i32 = arith.constant 0 : i32
    %0 = arith.cmpi eq, %arg1, %c0_i32 : i32
    %1 = arith.extui %0 : i1 to i32
    %c0_i32_0 = arith.constant 0 : i32
    %2 = arith.cmpi ne, %1, %c0_i32_0 : i32
    scf.if %2 {
      %c0_6 = arith.constant 0 : index
      %c0_7 = arith.constant 0 : index
      %7 = vector.load %arg3[%c0_6, %c0_7] : memref<2x96xf32, #tpu.memory_space<vmem>>, vector<1x96xf32>
      %c1 = arith.constant 1 : index
      %c0_8 = arith.constant 0 : index
      %8 = vector.load %arg3[%c1, %c0_8] : memref<2x96xf32, #tpu.memory_space<vmem>>, vector<1x96xf32>
      %c0_9 = arith.constant 0 : index
      %c0_10 = arith.constant 0 : index
      %c0_11 = arith.constant 0 : index
      %9 = vector.load %arg2[%c0_9, %c0_10, %c0_11] : memref<4x512x96xbf16, #tpu.memory_space<vmem>>, vector<1x512x96xbf16>
      %10 = vector.shape_cast %9 : vector<1x512x96xbf16> to vector<512x96xbf16>
      %11 = arith.extf %10 : vector<512x96xbf16> to vector<512x96xf32>
      %12 = vector.broadcast %7 : vector<1x96xf32> to vector<512x96xf32>
      %13 = arith.mulf %11, %12 : vector<512x96xf32>
      %14 = vector.broadcast %8 : vector<1x96xf32> to vector<512x96xf32>
      %15 = arith.addf %13, %14 : vector<512x96xf32>
      %cst_12 = arith.constant 0.000000e+00 : f32
      %16 = vector.broadcast %cst_12 : f32 to vector<512x96xf32>
      %17 = arith.maximumf %15, %16 : vector<512x96xf32>
      %c1_13 = arith.constant 1 : index
      %c0_14 = arith.constant 0 : index
      %c0_15 = arith.constant 0 : index
      %18 = vector.load %arg2[%c1_13, %c0_14, %c0_15] : memref<4x512x96xbf16, #tpu.memory_space<vmem>>, vector<1x512x96xbf16>
      %19 = vector.shape_cast %18 : vector<1x512x96xbf16> to vector<512x96xbf16>
      %20 = arith.extf %19 : vector<512x96xbf16> to vector<512x96xf32>
      %21 = vector.broadcast %7 : vector<1x96xf32> to vector<512x96xf32>
      %22 = arith.mulf %20, %21 : vector<512x96xf32>
      %23 = vector.broadcast %8 : vector<1x96xf32> to vector<512x96xf32>
      %24 = arith.addf %22, %23 : vector<512x96xf32>
      %cst_16 = arith.constant 0.000000e+00 : f32
      %25 = vector.broadcast %cst_16 : f32 to vector<512x96xf32>
      %26 = arith.maximumf %24, %25 : vector<512x96xf32>
      %27 = arith.addf %17, %26 : vector<512x96xf32>
      %c2 = arith.constant 2 : index
      %c0_17 = arith.constant 0 : index
      %c0_18 = arith.constant 0 : index
      %28 = vector.load %arg2[%c2, %c0_17, %c0_18] : memref<4x512x96xbf16, #tpu.memory_space<vmem>>, vector<1x512x96xbf16>
      %29 = vector.shape_cast %28 : vector<1x512x96xbf16> to vector<512x96xbf16>
      %30 = arith.extf %29 : vector<512x96xbf16> to vector<512x96xf32>
      %31 = vector.broadcast %7 : vector<1x96xf32> to vector<512x96xf32>
      %32 = arith.mulf %30, %31 : vector<512x96xf32>
      %33 = vector.broadcast %8 : vector<1x96xf32> to vector<512x96xf32>
      %34 = arith.addf %32, %33 : vector<512x96xf32>
      %cst_19 = arith.constant 0.000000e+00 : f32
      %35 = vector.broadcast %cst_19 : f32 to vector<512x96xf32>
      %36 = arith.maximumf %34, %35 : vector<512x96xf32>
      %37 = arith.addf %27, %36 : vector<512x96xf32>
      %c3 = arith.constant 3 : index
      %c0_20 = arith.constant 0 : index
      %c0_21 = arith.constant 0 : index
      %38 = vector.load %arg2[%c3, %c0_20, %c0_21] : memref<4x512x96xbf16, #tpu.memory_space<vmem>>, vector<1x512x96xbf16>
      %39 = vector.shape_cast %38 : vector<1x512x96xbf16> to vector<512x96xbf16>
      %40 = arith.extf %39 : vector<512x96xbf16> to vector<512x96xf32>
      %41 = vector.broadcast %7 : vector<1x96xf32> to vector<512x96xf32>
      %42 = arith.mulf %40, %41 : vector<512x96xf32>
      %43 = vector.broadcast %8 : vector<1x96xf32> to vector<512x96xf32>
      %44 = arith.addf %42, %43 : vector<512x96xf32>
      %cst_22 = arith.constant 0.000000e+00 : f32
      %45 = vector.broadcast %cst_22 : f32 to vector<512x96xf32>
      %46 = arith.maximumf %44, %45 : vector<512x96xf32>
      %47 = arith.addf %37, %46 : vector<512x96xf32>
      %cst_23 = arith.constant 2.500000e-01 : f32
      %48 = vector.broadcast %cst_23 : f32 to vector<512x96xf32>
      %49 = arith.mulf %47, %48 : vector<512x96xf32>
      %50 = arith.truncf %49 : vector<512x96xf32> to vector<512x96xbf16>
      %c0_24 = arith.constant 0 : index
      %c0_25 = arith.constant 0 : index
      %51 = vector.load %arg6[%c0_24, %c0_25] : memref<512x96xbf16, #tpu.memory_space<vmem>>, vector<512x96xbf16>
      tpu.vector_store %arg6[%c0_24, %c0_25], %50 {strides = array<i32>} : memref<512x96xbf16, #tpu.memory_space<vmem>>, vector<512x96xbf16>,
    } else {
    }
    %c0 = arith.constant 0 : index
    %c0_1 = arith.constant 0 : index
    %3 = vector.load %arg6[%c0, %c0_1] : memref<512x96xbf16, #tpu.memory_space<vmem>>, vector<512x96xbf16>
    %c0_2 = arith.constant 0 : index
    %c0_3 = arith.constant 0 : index
    %4 = vector.load %arg4[%c0_2, %c0_3] : memref<96x128xbf16, #tpu.memory_space<vmem>>, vector<96x128xbf16>
    %cst = arith.constant dense<0.000000e+00> : vector<512x128xf32>
    %5 = tpu.matmul %3, %4, %cst {dimension_numbers = #tpu.dot_dimension_numbers<[1], [0], [0], [1], [0, 0, 1, 1], [], []>} : vector<512x96xbf16>, vector<96x128xbf16>, vector<512x128xf32> -> vector<512x128xf32>
    %c0_4 = arith.constant 0 : index
    %c0_5 = arith.constant 0 : index
    %6 = vector.load %arg5[%c0_4, %c0_5] : memref<512x128xf32, #tpu.memory_space<vmem>>, vector<512x128xf32>
    tpu.vector_store %arg5[%c0_4, %c0_5], %5 {strides = array<i32>} : memref<512x128xf32, #tpu.memory_space<vmem>>, vector<512x128xf32>,
    return
  }
  func.func @transform_0(%arg0: i32, %arg1: i32) -> (i32, i32, i32) {
    %c0_i32 = arith.constant 0 : i32
    %c0_i32_0 = arith.constant 0 : i32
    %c0_i32_1 = arith.constant 0 : i32
    return %c0_i32, %arg0, %c0_i32_0 : i32, i32, i32
  }
  func.func @transform_1(%arg0: i32, %arg1: i32) -> (i32, i32) {
    %c0_i32 = arith.constant 0 : i32
    %c0_i32_0 = arith.constant 0 : i32
    %c0_i32_1 = arith.constant 0 : i32
    return %c0_i32, %c0_i32_0 : i32, i32
  }
  func.func @transform_2(%arg0: i32, %arg1: i32) -> (i32, i32) {
    %c0_i32 = arith.constant 0 : i32
    %c0_i32_0 = arith.constant 0 : i32
    return %c0_i32, %arg1 : i32, i32
  }
  func.func @transform_3(%arg0: i32, %arg1: i32) -> (i32, i32) {
    %c0_i32 = arith.constant 0 : i32
    return %arg0, %arg1 : i32, i32
  }
}

</mosaic_0001>

<llo_original>
// kernel: transition_forward.2
$region0: #{transition_forward.2}
  #allocation0 [shape = 'u32[]', space=smem, size = 0x4, offset = 0x4, fixed_abs, tag = 'smem constant byte address 0x4 - core index']
  #allocation1 [shape = 'u32[144,128]{1,0:T(1,128)}', space=vmem, size = 0x12000, scoped, tag = 'internal scratch']
  %s0 = inlined_call_operand.vmem [shape: bf16[4,512,96], index: 0, kind: input, shape index: {}]
  %s1 = inlined_call_operand.vmem [shape: f32[1,2,96], index: 1, kind: output, shape index: {}]
  %s2 = sld [smem:[#allocation0]]
  $region18: #{transition_forward.2} parent=0
    _
  %s4 = ssub.s32 1, %s2
  %s5 = scalar_select 0, %s4, %s2
  // Predicated region
  $region2: #{transition_forward.2} parent=0 // pred_check
    _
  $region3: #{transition_forward.2} parent=0 // pred_check_branch
    %7 = sbr.rel (0) target = $region5
  $region4: #{transition_forward.2} parent=0 // pred_region
    %s8 = sadd.s32 0, 0
    %s9 = smul.u32 64, %s8
    %p10 = scmp.lt.s32.totalorder %s9, 63
    %s11 = scalar_select %p10, %s9, 63
    %s12 = smul.addr %s11, 4
    %s13 = scalar_lea.vmem %s0, %s12
    %s14 = sadd.s32 0, 0
    %s15 = smul.u32 64, %s14
  $region5: #{transition_forward.2} parent=0 // pred_fallthru
    _
  %s16 = sadd.s32 0, 0
  %s17 = smul.u32 64, %s16
  %p18 = scmp.lt.s32.totalorder %s17, 63
  %s19 = scalar_select %p18, %s17, 63
  %s20 = smul.addr %s19, 4
  %s21 = scalar_lea.vmem %s0, %s20
  %s22 = sadd.s32 0, 0
  %s23 = smul.u32 64, %s22
  %p24 = scmp.lt.s32.totalorder %s23, 63
  %s25 = scalar_select %p24, %s23, 63
  %s26 = smul.addr %s25, 4
  %s27 = scalar_lea.vmem %s0, %s26
  %s28 = sadd.s32 0, 0
  %s29 = smul.u32 64, %s28
  %p30 = scmp.eq.s32.totalorder 0, 0
  // Predicated region
  $region6: #{transition_forward.2} parent=0 // pred_check
    %p31 = pneg %p30
  $region7: #{transition_forward.2} parent=0 // pred_check_branch
    %33 = sbr.rel (%p31) target = $region9
  $region8: #{transition_forward.2} parent=0 // pred_region
    %vm34 = vcmask 779264
    %35 = vst.msk [vmem:[%s1] sm:$0x3] %vm34, 0.0
  $region9: #{transition_forward.2} parent=0 // pred_fallthru
    _
  %v36 = vld [vmem:[%s27] sm:$0xf]
  %v37 = vld [vmem:[%s27 + $0x4] sm:$0xf]
  %v38 = vld [vmem:[%s27 + $0x8] sm:$0xf]
  %v39 = vld [vmem:[%s27 + $0xc] sm:$0xf]
  %v40 = vld [vmem:[%s27 + $0x10] sm:$0xf]
  %v41 = vld [vmem:[%s27 + $0x14] sm:$0xf]
  %v42 = vld [vmem:[%s27 + $0x18] sm:$0xf]
  %v43 = vld [vmem:[%s27 + $0x1c] sm:$0xf]
  %v44 = vld [vmem:[%s27 + $0x20] sm:$0xf]
  %v45 = vld [vmem:[%s27 + $0x24] sm:$0xf]
  %v46 = vld [vmem:[%s27 + $0x28] sm:$0xf]
  %v47 = vld [vmem:[%s27 + $0x2c] sm:$0xf]
  %v48 = vld [vmem:[%s27 + $0x30] sm:$0xf]
  %v49 = vld [vmem:[%s27 + $0x34] sm:$0xf]
  %v50 = vld [vmem:[%s27 + $0x38] sm:$0xf]
  %v51 = vld [vmem:[%s27 + $0x3c] sm:$0xf]
  %v52 = vld [vmem:[%s27 + $0x40] sm:$0xf]
  %v53 = vld [vmem:[%s27 + $0x44] sm:$0xf]
  %v54 = vld [vmem:[%s27 + $0x48] sm:$0xf]
  %v55 = vld [vmem:[%s27 + $0x4c] sm:$0xf]
  %v56 = vld [vmem:[%s27 + $0x50] sm:$0xf]
  %v57 = vld [vmem:[%s27 + $0x54] sm:$0xf]
  %v58 = vld [vmem:[%s27 + $0x58] sm:$0xf]
  %v59 = vld [vmem:[%s27 + $0x5c] sm:$0xf]
  %v60 = vld [vmem:[%s27 + $0x60] sm:$0xf]
  %v61 = vld [vmem:[%s27 + $0x64] sm:$0xf]
  %v62 = vld [vmem:[%s27 + $0x68] sm:$0xf]
  %v63 = vld [vmem:[%s27 + $0x6c] sm:$0xf]
  %v64 = vld [vmem:[%s27 + $0x70] sm:$0xf]
  %v65 = vld [vmem:[%s27 + $0x74] sm:$0xf]
  %v66 = vld [vmem:[%s27 + $0x78] sm:$0xf]
  %v67 = vld [vmem:[%s27 + $0x7c] sm:$0xf]
  %v68 = vld [vmem:[%s27 + $0x80] sm:$0xf]
  %v69 = vld [vmem:[%s27 + $0x84] sm:$0xf]
  %v70 = vld [vmem:[%s27 + $0x88] sm:$0xf]
  %v71 = vld [vmem:[%s27 + $0x8c] sm:$0xf]
  %v72 = vld [vmem:[%s27 + $0x90] sm:$0xf]
  %v73 = vld [vmem:[%s27 + $0x94] sm:$0xf]
  %v74 = vld [vmem:[%s27 + $0x98] sm:$0xf]
  %v75 = vld [vmem:[%s27 + $0x9c] sm:$0xf]
  %v76 = vld [vmem:[%s27 + $0xa0] sm:$0xf]
  %v77 = vld [vmem:[%s27 + $0xa4] sm:$0xf]
  %v78 = vld [vmem:[%s27 + $0xa8] sm:$0xf]
  %v79 = vld [vmem:[%s27 + $0xac] sm:$0xf]
  %v80 = vld [vmem:[%s27 + $0xb0] sm:$0xf]
  %v81 = vld [vmem:[%s27 + $0xb4] sm:$0xf]
  %v82 = vld [vmem:[%s27 + $0xb8] sm:$0xf]
  %v83 = vld [vmem:[%s27 + $0xbc] sm:$0xf]
  %v84 = vld [vmem:[%s27 + $0xc0] sm:$0xf]
  %v85 = vld [vmem:[%s27 + $0xc4] sm:$0xf]
  %v86 = vld [vmem:[%s27 + $0xc8] sm:$0xf]
  %v87 = vld [vmem:[%s27 + $0xcc] sm:$0xf]
  %v88 = vld [vmem:[%s27 + $0xd0] sm:$0xf]
  %v89 = vld [vmem:[%s27 + $0xd4] sm:$0xf]
  %v90 = vld [vmem:[%s27 + $0xd8] sm:$0xf]
  %v91 = vld [vmem:[%s27 + $0xdc] sm:$0xf]
  %v92 = vld [vmem:[%s27 + $0xe0] sm:$0xf]
  %v93 = vld [vmem:[%s27 + $0xe4] sm:$0xf]
  %v94 = vld [vmem:[%s27 + $0xe8] sm:$0xf]
  %v95 = vld [vmem:[%s27 + $0xec] sm:$0xf]
  %v96 = vld [vmem:[%s27 + $0xf0] sm:$0xf]
  %v97 = vld [vmem:[%s27 + $0xf4] sm:$0xf]
  %v98 = vld [vmem:[%s27 + $0xf8] sm:$0xf]
  %v99 = vld [vmem:[%s27 + $0xfc] sm:$0xf]
  %v100 = vunpack.c.l.bf16 %v36
  %v101 = vunpack.c.l.bf16 %v37
  %v102 = vunpack.c.l.bf16 %v38
  %v103 = vunpack.c.l.bf16 %v39
  %v104 = vunpack.c.l.bf16 %v40
  %v105 = vunpack.c.l.bf16 %v41
  %v106 = vunpack.c.l.bf16 %v42
  %v107 = vunpack.c.l.bf16 %v43
  %v108 = vunpack.c.l.bf16 %v44
  %v109 = vunpack.c.l.bf16 %v45
  %v110 = vunpack.c.l.bf16 %v46
  %v111 = vunpack.c.l.bf16 %v47
  %v112 = vunpack.c.l.bf16 %v48
  %v113 = vunpack.c.l.bf16 %v49
  %v114 = vunpack.c.l.bf16 %v50
  %v115 = vunpack.c.l.bf16 %v51
  %v116 = vunpack.c.l.bf16 %v52
  %v117 = vunpack.c.l.bf16 %v53
  %v118 = vunpack.c.l.bf16 %v54
  %v119 = vunpack.c.l.bf16 %v55
  %v120 = vunpack.c.l.bf16 %v56
  %v121 = vunpack.c.l.bf16 %v57
  %v122 = vunpack.c.l.bf16 %v58
  %v123 = vunpack.c.l.bf16 %v59
  %v124 = vunpack.c.l.bf16 %v60
  %v125 = vunpack.c.l.bf16 %v61
  %v126 = vunpack.c.l.bf16 %v62
  %v127 = vunpack.c.l.bf16 %v63
  %v128 = vunpack.c.l.bf16 %v64
  %v129 = vunpack.c.l.bf16 %v65
  %v130 = vunpack.c.l.bf16 %v66
  %v131 = vunpack.c.l.bf16 %v67
  %v132 = vunpack.c.l.bf16 %v68
  %v133 = vunpack.c.l.bf16 %v69
  %v134 = vunpack.c.l.bf16 %v70
  %v135 = vunpack.c.l.bf16 %v71
  %v136 = vunpack.c.l.bf16 %v72
  %v137 = vunpack.c.l.bf16 %v73
  %v138 = vunpack.c.l.bf16 %v74
  %v139 = vunpack.c.l.bf16 %v75
  %v140 = vunpack.c.l.bf16 %v76
  %v141 = vunpack.c.l.bf16 %v77
  %v142 = vunpack.c.l.bf16 %v78
  %v143 = vunpack.c.l.bf16 %v79
  %v144 = vunpack.c.l.bf16 %v80
  %v145 = vunpack.c.l.bf16 %v81
  %v146 = vunpack.c.l.bf16 %v82
  %v147 = vunpack.c.l.bf16 %v83
  %v148 = vunpack.c.l.bf16 %v84
  %v149 = vunpack.c.l.bf16 %v85
  %v150 = vunpack.c.l.bf16 %v86
  %v151 = vunpack.c.l.bf16 %v87
  %v152 = vunpack.c.l.bf16 %v88
  %v153 = vunpack.c.l.bf16 %v89
  %v154 = vunpack.c.l.bf16 %v90
  %v155 = vunpack.c.l.bf16 %v91
  %v156 = vunpack.c.l.bf16 %v92
  %v157 = vunpack.c.l.bf16 %v93
  %v158 = vunpack.c.l.bf16 %v94
  %v159 = vunpack.c.l.bf16 %v95
  %v160 = vunpack.c.l.bf16 %v96
  %v161 = vunpack.c.l.bf16 %v97
  %v162 = vunpack.c.l.bf16 %v98
  %v163 = vunpack.c.l.bf16 %v99
  %vm164 = vcmask 785408
  %v165 = vsel %vm164, %v100, 0.0
  %v166 = vsel %vm164, %v101, 0.0
  %v167 = vadd.f32 %v165, %v166
  %v168 = vsel %vm164, %v102, 0.0
  %v169 = vadd.f32 %v167, %v168
  %v170 = vsel %vm164, %v103, 0.0
  %v171 = vadd.f32 %v169, %v170
  %v172 = vsel %vm164, %v104, 0.0
  %v173 = vadd.f32 %v171, %v172
  %v174 = vsel %vm164, %v105, 0.0
  %v175 = vadd.f32 %v173, %v174
  %v176 = vsel %vm164, %v106, 0.0
  %v177 = vadd.f32 %v175, %v176
  %v178 = vsel %vm164, %v107, 0.0
  %v179 = vadd.f32 %v177, %v178
  %v180 = vsel %vm164, %v108, 0.0
  %v181 = vadd.f32 %v179, %v180
  %v182 = vsel %vm164, %v109, 0.0
  %v183 = vadd.f32 %v181, %v182
  %v184 = vsel %vm164, %v110, 0.0
  %v185 = vadd.f32 %v183, %v184
  %v186 = vsel %vm164, %v111, 0.0
  %v187 = vadd.f32 %v185, %v186
  %v188 = vsel %vm164, %v112, 0.0
  %v189 = vadd.f32 %v187, %v188
  %v190 = vsel %vm164, %v113, 0.0
  %v191 = vadd.f32 %v189, %v190
  %v192 = vsel %vm164, %v114, 0.0
  %v193 = vadd.f32 %v191, %v192
  %v194 = vsel %vm164, %v115, 0.0
  %v195 = vadd.f32 %v193, %v194
  %v196 = vsel %vm164, %v116, 0.0
  %v197 = vadd.f32 %v195, %v196
  %v198 = vsel %vm164, %v117, 0.0
  %v199 = vadd.f32 %v197, %v198
  %v200 = vsel %vm164, %v118, 0.0
  %v201 = vadd.f32 %v199, %v200
  %v202 = vsel %vm164, %v119, 0.0
  %v203 = vadd.f32 %v201, %v202
  %v204 = vsel %vm164, %v120, 0.0
  %v205 = vadd.f32 %v203, %v204
  %v206 = vsel %vm164, %v121, 0.0
  %v207 = vadd.f32 %v205, %v206
  %v208 = vsel %vm164, %v122, 0.0
  %v209 = vadd.f32 %v207, %v208
  %v210 = vsel %vm164, %v123, 0.0
  %v211 = vadd.f32 %v209, %v210
  %v212 = vsel %vm164, %v124, 0.0
  %v213 = vadd.f32 %v211, %v212
  %v214 = vsel %vm164, %v125, 0.0
  %v215 = vadd.f32 %v213, %v214
  %v216 = vsel %vm164, %v126, 0.0
  %v217 = vadd.f32 %v215, %v216
  %v218 = vsel %vm164, %v127, 0.0
  %v219 = vadd.f32 %v217, %v218
  %v220 = vsel %vm164, %v128, 0.0
  %v221 = vadd.f32 %v219, %v220
  %v222 = vsel %vm164, %v129, 0.0
  %v223 = vadd.f32 %v221, %v222
  %v224 = vsel %vm164, %v130, 0.0
  %v225 = vadd.f32 %v223, %v224
  %v226 = vsel %vm164, %v131, 0.0
  %v227 = vadd.f32 %v225, %v226
  %v228 = vsel %vm164, %v132, 0.0
  %v229 = vadd.f32 %v227, %v228
  %v230 = vsel %vm164, %v133, 0.0
  %v231 = vadd.f32 %v229, %v230
  %v232 = vsel %vm164, %v134, 0.0
  %v233 = vadd.f32 %v231, %v232
  %v234 = vsel %vm164, %v135, 0.0
  %v235 = vadd.f32 %v233, %v234
  %v236 = vsel %vm164, %v136, 0.0
  %v237 = vadd.f32 %v235, %v236
  %v238 = vsel %vm164, %v137, 0.0
  %v239 = vadd.f32 %v237, %v238
  %v240 = vsel %vm164, %v138, 0.0
  %v241 = vadd.f32 %v239, %v240
  %v242 = vsel %vm164, %v139, 0.0
  %v243 = vadd.f32 %v241, %v242
  %v244 = vsel %vm164, %v140, 0.0
  %v245 = vadd.f32 %v243, %v244
  %v246 = vsel %vm164, %v141, 0.0
  %v247 = vadd.f32 %v245, %v246
  %v248 = vsel %vm164, %v142, 0.0
  %v249 = vadd.f32 %v247, %v248
  %v250 = vsel %vm164, %v143, 0.0
  %v251 = vadd.f32 %v249, %v250
  %v252 = vsel %vm164, %v144, 0.0
  %v253 = vadd.f32 %v251, %v252
  %v254 = vsel %vm164, %v145, 0.0
  %v255 = vadd.f32 %v253, %v254
  %v256 = vsel %vm164, %v146, 0.0
  %v257 = vadd.f32 %v255, %v256
  %v258 = vsel %vm164, %v147, 0.0
  %v259 = vadd.f32 %v257, %v258
  %v260 = vsel %vm164, %v148, 0.0
  %v261 = vadd.f32 %v259, %v260
  %v262 = vsel %vm164, %v149, 0.0
  %v263 = vadd.f32 %v261, %v262
  %v264 = vsel %vm164, %v150, 0.0
  %v265 = vadd.f32 %v263, %v264
  %v266 = vsel %vm164, %v151, 0.0
  %v267 = vadd.f32 %v265, %v266
  %v268 = vsel %vm164, %v152, 0.0
  %v269 = vadd.f32 %v267, %v268
  %v270 = vsel %vm164, %v153, 0.0
  %v271 = vadd.f32 %v269, %v270
  %v272 = vsel %vm164, %v154, 0.0
  %v273 = vadd.f32 %v271, %v272
  %v274 = vsel %vm164, %v155, 0.0
  %v275 = vadd.f32 %v273, %v274
  %v276 = vsel %vm164, %v156, 0.0
  %v277 = vadd.f32 %v275, %v276
  %v278 = vsel %vm164, %v157, 0.0
  %v279 = vadd.f32 %v277, %v278
  %v280 = vsel %vm164, %v158, 0.0
  %v281 = vadd.f32 %v279, %v280
  %v282 = vsel %vm164, %v159, 0.0
  %v283 = vadd.f32 %v281, %v282
  %v284 = vsel %vm164, %v160, 0.0
  %v285 = vadd.f32 %v283, %v284
  %v286 = vsel %vm164, %v161, 0.0
  %v287 = vadd.f32 %v285, %v286
  %v288 = vsel %vm164, %v162, 0.0
  %v289 = vadd.f32 %v287, %v288
  %v290 = vsel %vm164, %v163, 0.0
  %v291 = vadd.f32 %v289, %v290
  %v292 = vrot.slane %v291, 4
  %v293 = vadd.f32 %v291, %v292
  %v294 = vrot.slane %v293, 2
  %v295 = vadd.f32 %v293, %v294
  %v296 = vrot.slane %v295, 1
  %v297 = vadd.f32 %v295, %v296
  %v298 = vadd.f32 %v297, 0.0
  %v299 = vmul.f32 %v100, %v100
  %v300 = vmul.f32 %v101, %v101
  %v301 = vmul.f32 %v102, %v102
  %v302 = vmul.f32 %v103, %v103
  %v303 = vmul.f32 %v104, %v104
  %v304 = vmul.f32 %v105, %v105
  %v305 = vmul.f32 %v106, %v106
  %v306 = vmul.f32 %v107, %v107
  %v307 = vmul.f32 %v108, %v108
  %v308 = vmul.f32 %v109, %v109
  %v309 = vmul.f32 %v110, %v110
  %v310 = vmul.f32 %v111, %v111
  %v311 = vmul.f32 %v112, %v112
  %v312 = vmul.f32 %v113, %v113
  %v313 = vmul.f32 %v114, %v114
  %v314 = vmul.f32 %v115, %v115
  %v315 = vmul.f32 %v116, %v116
  %v316 = vmul.f32 %v117, %v117
  %v317 = vmul.f32 %v118, %v118
  %v318 = vmul.f32 %v119, %v119
  %v319 = vmul.f32 %v120, %v120
  %v320 = vmul.f32 %v121, %v121
  %v321 = vmul.f32 %v122, %v122
  %v322 = vmul.f32 %v123, %v123
  %v323 = vmul.f32 %v124, %v124
  %v324 = vmul.f32 %v125, %v125
  %v325 = vmul.f32 %v126, %v126
  %v326 = vmul.f32 %v127, %v127
  %v327 = vmul.f32 %v128, %v128
  %v328 = vmul.f32 %v129, %v129
  %v329 = vmul.f32 %v130, %v130
  %v330 = vmul.f32 %v131, %v131
  %v331 = vmul.f32 %v132, %v132
  %v332 = vmul.f32 %v133, %v133
  %v333 = vmul.f32 %v134, %v134
  %v334 = vmul.f32 %v135, %v135
  %v335 = vmul.f32 %v136, %v136
  %v336 = vmul.f32 %v137, %v137
  %v337 = vmul.f32 %v138, %v138
  %v338 = vmul.f32 %v139, %v139
  %v339 = vmul.f32 %v140, %v140
  %v340 = vmul.f32 %v141, %v141
  %v341 = vmul.f32 %v142, %v142
  %v342 = vmul.f32 %v143, %v143
  %v343 = vmul.f32 %v144, %v144
  %v344 = vmul.f32 %v145, %v145
  %v345 = vmul.f32 %v146, %v146
  %v346 = vmul.f32 %v147, %v147
  %v347 = vmul.f32 %v148, %v148
  %v348 = vmul.f32 %v149, %v149
  %v349 = vmul.f32 %v150, %v150
  %v350 = vmul.f32 %v151, %v151
  %v351 = vmul.f32 %v152, %v152
  %v352 = vmul.f32 %v153, %v153
  %v353 = vmul.f32 %v154, %v154
  %v354 = vmul.f32 %v155, %v155
  %v355 = vmul.f32 %v156, %v156
  %v356 = vmul.f32 %v157, %v157
  %v357 = vmul.f32 %v158, %v158
  %v358 = vmul.f32 %v159, %v159
  %v359 = vmul.f32 %v160, %v160
  %v360 = vmul.f32 %v161, %v161
  %v361 = vmul.f32 %v162, %v162
  %v362 = vmul.f32 %v163, %v163
  %v363 = vsel %vm164, %v299, 0.0
  %v364 = vsel %vm164, %v300, 0.0
  %v365 = vadd.f32 %v363, %v364
  %v366 = vsel %vm164, %v301, 0.0
  %v367 = vadd.f32 %v365, %v366
  %v368 = vsel %vm164, %v302, 0.0
  %v369 = vadd.f32 %v367, %v368
  %v370 = vsel %vm164, %v303, 0.0
  %v371 = vadd.f32 %v369, %v370
  %v372 = vsel %vm164, %v304, 0.0
  %v373 = vadd.f32 %v371, %v372
  %v374 = vsel %vm164, %v305, 0.0
  %v375 = vadd.f32 %v373, %v374
  %v376 = vsel %vm164, %v306, 0.0
  %v377 = vadd.f32 %v375, %v376
  %v378 = vsel %vm164, %v307, 0.0
  %v379 = vadd.f32 %v377, %v378
  %v380 = vsel %vm164, %v308, 0.0
  %v381 = vadd.f32 %v379, %v380
  %v382 = vsel %vm164, %v309, 0.0
  %v383 = vadd.f32 %v381, %v382
  %v384 = vsel %vm164, %v310, 0.0
  %v385 = vadd.f32 %v383, %v384
  %v386 = vsel %vm164, %v311, 0.0
  %v387 = vadd.f32 %v385, %v386
  %v388 = vsel %vm164, %v312, 0.0
  %v389 = vadd.f32 %v387, %v388
  %v390 = vsel %vm164, %v313, 0.0
  %v391 = vadd.f32 %v389, %v390
  %v392 = vsel %vm164, %v314, 0.0
  %v393 = vadd.f32 %v391, %v392
  %v394 = vsel %vm164, %v315, 0.0
  %v395 = vadd.f32 %v393, %v394
  %v396 = vsel %vm164, %v316, 0.0
  %v397 = vadd.f32 %v395, %v396
  %v398 = vsel %vm164, %v317, 0.0
  %v399 = vadd.f32 %v397, %v398
  %v400 = vsel %vm164, %v318, 0.0
  %v401 = vadd.f32 %v399, %v400
  %v402 = vsel %vm164, %v319, 0.0
  %v403 = vadd.f32 %v401, %v402
  %v404 = vsel %vm164, %v320, 0.0
  %v405 = vadd.f32 %v403, %v404
  %v406 = vsel %vm164, %v321, 0.0
  %v407 = vadd.f32 %v405, %v406
  %v408 = vsel %vm164, %v322, 0.0
  %v409 = vadd.f32 %v407, %v408
  %v410 = vsel %vm164, %v323, 0.0
  %v411 = vadd.f32 %v409, %v410
  %v412 = vsel %vm164, %v324, 0.0
  %v413 = vadd.f32 %v411, %v412
  %v414 = vsel %vm164, %v325, 0.0
  %v415 = vadd.f32 %v413, %v414
  %v416 = vsel %vm164, %v326, 0.0
  %v417 = vadd.f32 %v415, %v416
  %v418 = vsel %vm164, %v327, 0.0
  %v419 = vadd.f32 %v417, %v418
  %v420 = vsel %vm164, %v328, 0.0
  %v421 = vadd.f32 %v419, %v420
  %v422 = vsel %vm164, %v329, 0.0
  %v423 = vadd.f32 %v421, %v422
  %v424 = vsel %vm164, %v330, 0.0
  %v425 = vadd.f32 %v423, %v424
  %v426 = vsel %vm164, %v331, 0.0
  %v427 = vadd.f32 %v425, %v426
  %v428 = vsel %vm164, %v332, 0.0
  %v429 = vadd.f32 %v427, %v428
  %v430 = vsel %vm164, %v333, 0.0
  %v431 = vadd.f32 %v429, %v430
  %v432 = vsel %vm164, %v334, 0.0
  %v433 = vadd.f32 %v431, %v432
  %v434 = vsel %vm164, %v335, 0.0
  %v435 = vadd.f32 %v433, %v434
  %v436 = vsel %vm164, %v336, 0.0
  %v437 = vadd.f32 %v435, %v436
  %v438 = vsel %vm164, %v337, 0.0
  %v439 = vadd.f32 %v437, %v438
  %v440 = vsel %vm164, %v338, 0.0
  %v441 = vadd.f32 %v439, %v440
  %v442 = vsel %vm164, %v339, 0.0
  %v443 = vadd.f32 %v441, %v442
  %v444 = vsel %vm164, %v340, 0.0
  %v445 = vadd.f32 %v443, %v444
  %v446 = vsel %vm164, %v341, 0.0
  %v447 = vadd.f32 %v445, %v446
  %v448 = vsel %vm164, %v342, 0.0
  %v449 = vadd.f32 %v447, %v448
  %v450 = vsel %vm164, %v343, 0.0
  %v451 = vadd.f32 %v449, %v450
  %v452 = vsel %vm164, %v344, 0.0
  %v453 = vadd.f32 %v451, %v452
  %v454 = vsel %vm164, %v345, 0.0
  %v455 = vadd.f32 %v453, %v454
  %v456 = vsel %vm164, %v346, 0.0
  %v457 = vadd.f32 %v455, %v456
  %v458 = vsel %vm164, %v347, 0.0
  %v459 = vadd.f32 %v457, %v458
  %v460 = vsel %vm164, %v348, 0.0
  %v461 = vadd.f32 %v459, %v460
  %v462 = vsel %vm164, %v349, 0.0
  %v463 = vadd.f32 %v461, %v462
  %v464 = vsel %vm164, %v350, 0.0
  %v465 = vadd.f32 %v463, %v464
  %v466 = vsel %vm164, %v351, 0.0
  %v467 = vadd.f32 %v465, %v466
  %v468 = vsel %vm164, %v352, 0.0
  %v469 = vadd.f32 %v467, %v468
  %v470 = vsel %vm164, %v353, 0.0
  %v471 = vadd.f32 %v469, %v470
  %v472 = vsel %vm164, %v354, 0.0
  %v473 = vadd.f32 %v471, %v472
  %v474 = vsel %vm164, %v355, 0.0
  %v475 = vadd.f32 %v473, %v474
  %v476 = vsel %vm164, %v356, 0.0
  %v477 = vadd.f32 %v475, %v476
  %v478 = vsel %vm164, %v357, 0.0
  %v479 = vadd.f32 %v477, %v478
  %v480 = vsel %vm164, %v358, 0.0
  %v481 = vadd.f32 %v479, %v480
  %v482 = vsel %vm164, %v359, 0.0
  %v483 = vadd.f32 %v481, %v482
  %v484 = vsel %vm164, %v360, 0.0
  %v485 = vadd.f32 %v483, %v484
  %v486 = vsel %vm164, %v361, 0.0
  %v487 = vadd.f32 %v485, %v486
  %v488 = vsel %vm164, %v362, 0.0
  %v489 = vadd.f32 %v487, %v488
  %v490 = vrot.slane %v489, 4
  %v491 = vadd.f32 %v489, %v490
  %v492 = vrot.slane %v491, 2
  %v493 = vadd.f32 %v491, %v492
  %v494 = vrot.slane %v493, 1
  %v495 = vadd.f32 %v493, %v494
  %v496 = vadd.f32 %v495, 0.0
  %s497 = scalar_lea.vmem %s27, 256
  %v498 = vld [vmem:[%s497] sm:$0xf]
  %v499 = vld [vmem:[%s497 + $0x4] sm:$0xf]
  %v500 = vld [vmem:[%s497 + $0x8] sm:$0xf]
  %v501 = vld [vmem:[%s497 + $0xc] sm:$0xf]
  %v502 = vld [vmem:[%s497 + $0x10] sm:$0xf]
  %v503 = vld [vmem:[%s497 + $0x14] sm:$0xf]
  %v504 = vld [vmem:[%s497 + $0x18] sm:$0xf]
  %v505 = vld [vmem:[%s497 + $0x1c] sm:$0xf]
  %v506 = vld [vmem:[%s497 + $0x20] sm:$0xf]
  %v507 = vld [vmem:[%s497 + $0x24] sm:$0xf]
  %v508 = vld [vmem:[%s497 + $0x28] sm:$0xf]
  %v509 = vld [vmem:[%s497 + $0x2c] sm:$0xf]
  %v510 = vld [vmem:[%s497 + $0x30] sm:$0xf]
  %v511 = vld [vmem:[%s497 + $0x34] sm:$0xf]
  %v512 = vld [vmem:[%s497 + $0x38] sm:$0xf]
  %v513 = vld [vmem:[%s497 + $0x3c] sm:$0xf]
  %v514 = vld [vmem:[%s497 + $0x40] sm:$0xf]
  %v515 = vld [vmem:[%s497 + $0x44] sm:$0xf]
  %v516 = vld [vmem:[%s497 + $0x48] sm:$0xf]
  %v517 = vld [vmem:[%s497 + $0x4c] sm:$0xf]
  %v518 = vld [vmem:[%s497 + $0x50] sm:$0xf]
  %v519 = vld [vmem:[%s497 + $0x54] sm:$0xf]
  %v520 = vld [vmem:[%s497 + $0x58] sm:$0xf]
  %v521 = vld [vmem:[%s497 + $0x5c] sm:$0xf]
  %v522 = vld [vmem:[%s497 + $0x60] sm:$0xf]
  %v523 = vld [vmem:[%s497 + $0x64] sm:$0xf]
  %v524 = vld [vmem:[%s497 + $0x68] sm:$0xf]
  %v525 = vld [vmem:[%s497 + $0x6c] sm:$0xf]
  %v526 = vld [vmem:[%s497 + $0x70] sm:$0xf]
  %v527 = vld [vmem:[%s497 + $0x74] sm:$0xf]
  %v528 = vld [vmem:[%s497 + $0x78] sm:$0xf]
  %v529 = vld [vmem:[%s497 + $0x7c] sm:$0xf]
  %v530 = vld [vmem:[%s497 + $0x80] sm:$0xf]
  %v531 = vld [vmem:[%s497 + $0x84] sm:$0xf]
  %v532 = vld [vmem:[%s497 + $0x88] sm:$0xf]
  %v533 = vld [vmem:[%s497 + $0x8c] sm:$0xf]
  %v534 = vld [vmem:[%s497 + $0x90] sm:$0xf]
  %v535 = vld [vmem:[%s497 + $0x94] sm:$0xf]
  %v536 = vld [vmem:[%s497 + $0x98] sm:$0xf]
  %v537 = vld [vmem:[%s497 + $0x9c] sm:$0xf]
  %v538 = vld [vmem:[%s497 + $0xa0] sm:$0xf]
  %v539 = vld [vmem:[%s497 + $0xa4] sm:$0xf]
  %v540 = vld [vmem:[%s497 + $0xa8] sm:$0xf]
  %v541 = vld [vmem:[%s497 + $0xac] sm:$0xf]
  %v542 = vld [vmem:[%s497 + $0xb0] sm:$0xf]
  %v543 = vld [vmem:[%s497 + $0xb4] sm:$0xf]
  %v544 = vld [vmem:[%s497 + $0xb8] sm:$0xf]
  %v545 = vld [vmem:[%s497 + $0xbc] sm:$0xf]
  %v546 = vld [vmem:[%s497 + $0xc0] sm:$0xf]
  %v547 = vld [vmem:[%s497 + $0xc4] sm:$0xf]
  %v548 = vld [vmem:[%s497 + $0xc8] sm:$0xf]
  %v549 = vld [vmem:[%s497 + $0xcc] sm:$0xf]
  %v550 = vld [vmem:[%s497 + $0xd0] sm:$0xf]
  %v551 = vld [vmem:[%s497 + $0xd4] sm:$0xf]
  %v552 = vld [vmem:[%s497 + $0xd8] sm:$0xf]
  %v553 = vld [vmem:[%s497 + $0xdc] sm:$0xf]
  %v554 = vld [vmem:[%s497 + $0xe0] sm:$0xf]
  %v555 = vld [vmem:[%s497 + $0xe4] sm:$0xf]
  %v556 = vld [vmem:[%s497 + $0xe8] sm:$0xf]
  %v557 = vld [vmem:[%s497 + $0xec] sm:$0xf]
  %v558 = vld [vmem:[%s497 + $0xf0] sm:$0xf]
  %v559 = vld [vmem:[%s497 + $0xf4] sm:$0xf]
  %v560 = vld [vmem:[%s497 + $0xf8] sm:$0xf]
  %v561 = vld [vmem:[%s497 + $0xfc] sm:$0xf]
  %v562 = vunpack.c.l.bf16 %v498
  %v563 = vunpack.c.l.bf16 %v499
  %v564 = vunpack.c.l.bf16 %v500
  %v565 = vunpack.c.l.bf16 %v501
  %v566 = vunpack.c.l.bf16 %v502
  %v567 = vunpack.c.l.bf16 %v503
  %v568 = vunpack.c.l.bf16 %v504
  %v569 = vunpack.c.l.bf16 %v505
  %v570 = vunpack.c.l.bf16 %v506
  %v571 = vunpack.c.l.bf16 %v507
  %v572 = vunpack.c.l.bf16 %v508
  %v573 = vunpack.c.l.bf16 %v509
  %v574 = vunpack.c.l.bf16 %v510
  %v575 = vunpack.c.l.bf16 %v511
  %v576 = vunpack.c.l.bf16 %v512
  %v577 = vunpack.c.l.bf16 %v513
  %v578 = vunpack.c.l.bf16 %v514
  %v579 = vunpack.c.l.bf16 %v515
  %v580 = vunpack.c.l.bf16 %v516
  %v581 = vunpack.c.l.bf16 %v517
  %v582 = vunpack.c.l.bf16 %v518
  %v583 = vunpack.c.l.bf16 %v519
  %v584 = vunpack.c.l.bf16 %v520
  %v585 = vunpack.c.l.bf16 %v521
  %v586 = vunpack.c.l.bf16 %v522
  %v587 = vunpack.c.l.bf16 %v523
  %v588 = vunpack.c.l.bf16 %v524
  %v589 = vunpack.c.l.bf16 %v525
  %v590 = vunpack.c.l.bf16 %v526
  %v591 = vunpack.c.l.bf16 %v527
  %v592 = vunpack.c.l.bf16 %v528
  %v593 = vunpack.c.l.bf16 %v529
  %v594 = vunpack.c.l.bf16 %v530
  %v595 = vunpack.c.l.bf16 %v531
  %v596 = vunpack.c.l.bf16 %v532
  %v597 = vunpack.c.l.bf16 %v533
  %v598 = vunpack.c.l.bf16 %v534
  %v599 = vunpack.c.l.bf16 %v535
  %v600 = vunpack.c.l.bf16 %v536
  %v601 = vunpack.c.l.bf16 %v537
  %v602 = vunpack.c.l.bf16 %v538
  %v603 = vunpack.c.l.bf16 %v539
  %v604 = vunpack.c.l.bf16 %v540
  %v605 = vunpack.c.l.bf16 %v541
  %v606 = vunpack.c.l.bf16 %v542
  %v607 = vunpack.c.l.bf16 %v543
  %v608 = vunpack.c.l.bf16 %v544
  %v609 = vunpack.c.l.bf16 %v545
  %v610 = vunpack.c.l.bf16 %v546
  %v611 = vunpack.c.l.bf16 %v547
  %v612 = vunpack.c.l.bf16 %v548
  %v613 = vunpack.c.l.bf16 %v549
  %v614 = vunpack.c.l.bf16 %v550
  %v615 = vunpack.c.l.bf16 %v551
  %v616 = vunpack.c.l.bf16 %v552
  %v617 = vunpack.c.l.bf16 %v553
  %v618 = vunpack.c.l.bf16 %v554
  %v619 = vunpack.c.l.bf16 %v555
  %v620 = vunpack.c.l.bf16 %v556
  %v621 = vunpack.c.l.bf16 %v557
  %v622 = vunpack.c.l.bf16 %v558
  %v623 = vunpack.c.l.bf16 %v559
  %v624 = vunpack.c.l.bf16 %v560
  %v625 = vunpack.c.l.bf16 %v561
  %v626 = vsel %vm164, %v562, 0.0
  %v627 = vsel %vm164, %v563, 0.0
  %v628 = vadd.f32 %v626, %v627
  %v629 = vsel %vm164, %v564, 0.0
  %v630 = vadd.f32 %v628, %v629
  %v631 = vsel %vm164, %v565, 0.0
  %v632 = vadd.f32 %v630, %v631
  %v633 = vsel %vm164, %v566, 0.0
  %v634 = vadd.f32 %v632, %v633
  %v635 = vsel %vm164, %v567, 0.0
  %v636 = vadd.f32 %v634, %v635
  %v637 = vsel %vm164, %v568, 0.0
  %v638 = vadd.f32 %v636, %v637
  %v639 = vsel %vm164, %v569, 0.0
  %v640 = vadd.f32 %v638, %v639
  %v641 = vsel %vm164, %v570, 0.0
  %v642 = vadd.f32 %v640, %v641
  %v643 = vsel %vm164, %v571, 0.0
  %v644 = vadd.f32 %v642, %v643
  %v645 = vsel %vm164, %v572, 0.0
  %v646 = vadd.f32 %v644, %v645
  %v647 = vsel %vm164, %v573, 0.0
  %v648 = vadd.f32 %v646, %v647
  %v649 = vsel %vm164, %v574, 0.0
  %v650 = vadd.f32 %v648, %v649
  %v651 = vsel %vm164, %v575, 0.0
  %v652 = vadd.f32 %v650, %v651
  %v653 = vsel %vm164, %v576, 0.0
  %v654 = vadd.f32 %v652, %v653
  %v655 = vsel %vm164, %v577, 0.0
  %v656 = vadd.f32 %v654, %v655
  %v657 = vsel %vm164, %v578, 0.0
  %v658 = vadd.f32 %v656, %v657
  %v659 = vsel %vm164, %v579, 0.0
  %v660 = vadd.f32 %v658, %v659
  %v661 = vsel %vm164, %v580, 0.0
  %v662 = vadd.f32 %v660, %v661
  %v663 = vsel %vm164, %v581, 0.0
  %v664 = vadd.f32 %v662, %v663
  %v665 = vsel %vm164, %v582, 0.0
  %v666 = vadd.f32 %v664, %v665
  %v667 = vsel %vm164, %v583, 0.0
  %v668 = vadd.f32 %v666, %v667
  %v669 = vsel %vm164, %v584, 0.0
  %v670 = vadd.f32 %v668, %v669
  %v671 = vsel %vm164, %v585, 0.0
  %v672 = vadd.f32 %v670, %v671
  %v673 = vsel %vm164, %v586, 0.0
  %v674 = vadd.f32 %v672, %v673
  %v675 = vsel %vm164, %v587, 0.0
  %v676 = vadd.f32 %v674, %v675
  %v677 = vsel %vm164, %v588, 0.0
  %v678 = vadd.f32 %v676, %v677
  %v679 = vsel %vm164, %v589, 0.0
  %v680 = vadd.f32 %v678, %v679
  %v681 = vsel %vm164, %v590, 0.0
  %v682 = vadd.f32 %v680, %v681
  %v683 = vsel %vm164, %v591, 0.0
  %v684 = vadd.f32 %v682, %v683
  %v685 = vsel %vm164, %v592, 0.0
  %v686 = vadd.f32 %v684, %v685
  %v687 = vsel %vm164, %v593, 0.0
  %v688 = vadd.f32 %v686, %v687
  %v689 = vsel %vm164, %v594, 0.0
  %v690 = vadd.f32 %v688, %v689
  %v691 = vsel %vm164, %v595, 0.0
  %v692 = vadd.f32 %v690, %v691
  %v693 = vsel %vm164, %v596, 0.0
  %v694 = vadd.f32 %v692, %v693
  %v695 = vsel %vm164, %v597, 0.0
  %v696 = vadd.f32 %v694, %v695
  %v697 = vsel %vm164, %v598, 0.0
  %v698 = vadd.f32 %v696, %v697
  %v699 = vsel %vm164, %v599, 0.0
  %v700 = vadd.f32 %v698, %v699
  %v701 = vsel %vm164, %v600, 0.0
  %v702 = vadd.f32 %v700, %v701
  %v703 = vsel %vm164, %v601, 0.0
  %v704 = vadd.f32 %v702, %v703
  %v705 = vsel %vm164, %v602, 0.0
  %v706 = vadd.f32 %v704, %v705
  %v707 = vsel %vm164, %v603, 0.0
  %v708 = vadd.f32 %v706, %v707
  %v709 = vsel %vm164, %v604, 0.0
  %v710 = vadd.f32 %v708, %v709
  %v711 = vsel %vm164, %v605, 0.0
  %v712 = vadd.f32 %v710, %v711
  %v713 = vsel %vm164, %v606, 0.0
  %v714 = vadd.f32 %v712, %v713
  %v715 = vsel %vm164, %v607, 0.0
  %v716 = vadd.f32 %v714, %v715
  %v717 = vsel %vm164, %v608, 0.0
  %v718 = vadd.f32 %v716, %v717
  %v719 = vsel %vm164, %v609, 0.0
  %v720 = vadd.f32 %v718, %v719
  %v721 = vsel %vm164, %v610, 0.0
  %v722 = vadd.f32 %v720, %v721
  %v723 = vsel %vm164, %v611, 0.0
  %v724 = vadd.f32 %v722, %v723
  %v725 = vsel %vm164, %v612, 0.0
  %v726 = vadd.f32 %v724, %v725
  %v727 = vsel %vm164, %v613, 0.0
  %v728 = vadd.f32 %v726, %v727
  %v729 = vsel %vm164, %v614, 0.0
  %v730 = vadd.f32 %v728, %v729
  %v731 = vsel %vm164, %v615, 0.0
  %v732 = vadd.f32 %v730, %v731
  %v733 = vsel %vm164, %v616, 0.0
  %v734 = vadd.f32 %v732, %v733
  %v735 = vsel %vm164, %v617, 0.0
  %v736 = vadd.f32 %v734, %v735
  %v737 = vsel %vm164, %v618, 0.0
  %v738 = vadd.f32 %v736, %v737
  %v739 = vsel %vm164, %v619, 0.0
  %v740 = vadd.f32 %v738, %v739
  %v741 = vsel %vm164, %v620, 0.0
  %v742 = vadd.f32 %v740, %v741
  %v743 = vsel %vm164, %v621, 0.0
  %v744 = vadd.f32 %v742, %v743
  %v745 = vsel %vm164, %v622, 0.0
  %v746 = vadd.f32 %v744, %v745
  %v747 = vsel %vm164, %v623, 0.0
  %v748 = vadd.f32 %v746, %v747
  %v749 = vsel %vm164, %v624, 0.0
  %v750 = vadd.f32 %v748, %v749
  %v751 = vsel %vm164, %v625, 0.0
  %v752 = vadd.f32 %v750, %v751
  %v753 = vrot.slane %v752, 4
  %v754 = vadd.f32 %v752, %v753
  %v755 = vrot.slane %v754, 2
  %v756 = vadd.f32 %v754, %v755
  %v757 = vrot.slane %v756, 1
  %v758 = vadd.f32 %v756, %v757
  %v759 = vadd.f32 %v298, %v758
  %v760 = vmul.f32 %v562, %v562
  %v761 = vmul.f32 %v563, %v563
  %v762 = vmul.f32 %v564, %v564
  %v763 = vmul.f32 %v565, %v565
  %v764 = vmul.f32 %v566, %v566
  %v765 = vmul.f32 %v567, %v567
  %v766 = vmul.f32 %v568, %v568
  %v767 = vmul.f32 %v569, %v569
  %v768 = vmul.f32 %v570, %v570
  %v769 = vmul.f32 %v571, %v571
  %v770 = vmul.f32 %v572, %v572
  %v771 = vmul.f32 %v573, %v573
  %v772 = vmul.f32 %v574, %v574
  %v773 = vmul.f32 %v575, %v575
  %v774 = vmul.f32 %v576, %v576
  %v775 = vmul.f32 %v577, %v577
  %v776 = vmul.f32 %v578, %v578
  %v777 = vmul.f32 %v579, %v579
  %v778 = vmul.f32 %v580, %v580
  %v779 = vmul.f32 %v581, %v581
  %v780 = vmul.f32 %v582, %v582
  %v781 = vmul.f32 %v583, %v583
  %v782 = vmul.f32 %v584, %v584
  %v783 = vmul.f32 %v585, %v585
  %v784 = vmul.f32 %v586, %v586
  %v785 = vmul.f32 %v587, %v587
  %v786 = vmul.f32 %v588, %v588
  %v787 = vmul.f32 %v589, %v589
  %v788 = vmul.f32 %v590, %v590
  %v789 = vmul.f32 %v591, %v591
  %v790 = vmul.f32 %v592, %v592
  %v791 = vmul.f32 %v593, %v593
  %v792 = vmul.f32 %v594, %v594
  %v793 = vmul.f32 %v595, %v595
  %v794 = vmul.f32 %v596, %v596
  %v795 = vmul.f32 %v597, %v597
  %v796 = vmul.f32 %v598, %v598
  %v797 = vmul.f32 %v599, %v599
  %v798 = vmul.f32 %v600, %v600
  %v799 = vmul.f32 %v601, %v601
  %v800 = vmul.f32 %v602, %v602
  %v801 = vmul.f32 %v603, %v603
  %v802 = vmul.f32 %v604, %v604
  %v803 = vmul.f32 %v605, %v605
  %v804 = vmul.f32 %v606, %v606
  %v805 = vmul.f32 %v607, %v607
  %v806 = vmul.f32 %v608, %v608
  %v807 = vmul.f32 %v609, %v609
  %v808 = vmul.f32 %v610, %v610
  %v809 = vmul.f32 %v611, %v611
  %v810 = vmul.f32 %v612, %v612
  %v811 = vmul.f32 %v613, %v613
  %v812 = vmul.f32 %v614, %v614
  %v813 = vmul.f32 %v615, %v615
  %v814 = vmul.f32 %v616, %v616
  %v815 = vmul.f32 %v617, %v617
  %v816 = vmul.f32 %v618, %v618
  %v817 = vmul.f32 %v619, %v619
  %v818 = vmul.f32 %v620, %v620
  %v819 = vmul.f32 %v621, %v621
  %v820 = vmul.f32 %v622, %v622
  %v821 = vmul.f32 %v623, %v623
  %v822 = vmul.f32 %v624, %v624
  %v823 = vmul.f32 %v625, %v625
  %v824 = vsel %vm164, %v760, 0.0
  %v825 = vsel %vm164, %v761, 0.0
  %v826 = vadd.f32 %v824, %v825
  %v827 = vsel %vm164, %v762, 0.0
  %v828 = vadd.f32 %v826, %v827
  %v829 = vsel %vm164, %v763, 0.0
  %v830 = vadd.f32 %v828, %v829
  %v831 = vsel %vm164, %v764, 0.0
  %v832 = vadd.f32 %v830, %v831
  %v833 = vsel %vm164, %v765, 0.0
  %v834 = vadd.f32 %v832, %v833
  %v835 = vsel %vm164, %v766, 0.0
  %v836 = vadd.f32 %v834, %v835
  %v837 = vsel %vm164, %v767, 0.0
  %v838 = vadd.f32 %v836, %v837
  %v839 = vsel %vm164, %v768, 0.0
  %v840 = vadd.f32 %v838, %v839
  %v841 = vsel %vm164, %v769, 0.0
  %v842 = vadd.f32 %v840, %v841
  %v843 = vsel %vm164, %v770, 0.0
  %v844 = vadd.f32 %v842, %v843
  %v845 = vsel %vm164, %v771, 0.0
  %v846 = vadd.f32 %v844, %v845
  %v847 = vsel %vm164, %v772, 0.0
  %v848 = vadd.f32 %v846, %v847
  %v849 = vsel %vm164, %v773, 0.0
  %v850 = vadd.f32 %v848, %v849
  %v851 = vsel %vm164, %v774, 0.0
  %v852 = vadd.f32 %v850, %v851
  %v853 = vsel %vm164, %v775, 0.0
  %v854 = vadd.f32 %v852, %v853
  %v855 = vsel %vm164, %v776, 0.0
  %v856 = vadd.f32 %v854, %v855
  %v857 = vsel %vm164, %v777, 0.0
  %v858 = vadd.f32 %v856, %v857
  %v859 = vsel %vm164, %v778, 0.0
  %v860 = vadd.f32 %v858, %v859
  %v861 = vsel %vm164, %v779, 0.0
  %v862 = vadd.f32 %v860, %v861
  %v863 = vsel %vm164, %v780, 0.0
  %v864 = vadd.f32 %v862, %v863
  %v865 = vsel %vm164, %v781, 0.0
  %v866 = vadd.f32 %v864, %v865
  %v867 = vsel %vm164, %v782, 0.0
  %v868 = vadd.f32 %v866, %v867
  %v869 = vsel %vm164, %v783, 0.0
  %v870 = vadd.f32 %v868, %v869
  %v871 = vsel %vm164, %v784, 0.0
  %v872 = vadd.f32 %v870, %v871
  %v873 = vsel %vm164, %v785, 0.0
  %v874 = vadd.f32 %v872, %v873
  %v875 = vsel %vm164, %v786, 0.0
  %v876 = vadd.f32 %v874, %v875
  %v877 = vsel %vm164, %v787, 0.0
  %v878 = vadd.f32 %v876, %v877
  %v879 = vsel %vm164, %v788, 0.0
  %v880 = vadd.f32 %v878, %v879
  %v881 = vsel %vm164, %v789, 0.0
  %v882 = vadd.f32 %v880, %v881
  %v883 = vsel %vm164, %v790, 0.0
  %v884 = vadd.f32 %v882, %v883
  %v885 = vsel %vm164, %v791, 0.0
  %v886 = vadd.f32 %v884, %v885
  %v887 = vsel %vm164, %v792, 0.0
  %v888 = vadd.f32 %v886, %v887
  %v889 = vsel %vm164, %v793, 0.0
  %v890 = vadd.f32 %v888, %v889
  %v891 = vsel %vm164, %v794, 0.0
  %v892 = vadd.f32 %v890, %v891
  %v893 = vsel %vm164, %v795, 0.0
  %v894 = vadd.f32 %v892, %v893
  %v895 = vsel %vm164, %v796, 0.0
  %v896 = vadd.f32 %v894, %v895
  %v897 = vsel %vm164, %v797, 0.0
  %v898 = vadd.f32 %v896, %v897
  %v899 = vsel %vm164, %v798, 0.0
  %v900 = vadd.f32 %v898, %v899
  %v901 = vsel %vm164, %v799, 0.0
  %v902 = vadd.f32 %v900, %v901
  %v903 = vsel %vm164, %v800, 0.0
  %v904 = vadd.f32 %v902, %v903
  %v905 = vsel %vm164, %v801, 0.0
  %v906 = vadd.f32 %v904, %v905
  %v907 = vsel %vm164, %v802, 0.0
  %v908 = vadd.f32 %v906, %v907
  %v909 = vsel %vm164, %v803, 0.0
  %v910 = vadd.f32 %v908, %v909
  %v911 = vsel %vm164, %v804, 0.0
  %v912 = vadd.f32 %v910, %v911
  %v913 = vsel %vm164, %v805, 0.0
  %v914 = vadd.f32 %v912, %v913
  %v915 = vsel %vm164, %v806, 0.0
  %v916 = vadd.f32 %v914, %v915
  %v917 = vsel %vm164, %v807, 0.0
  %v918 = vadd.f32 %v916, %v917
  %v919 = vsel %vm164, %v808, 0.0
  %v920 = vadd.f32 %v918, %v919
  %v921 = vsel %vm164, %v809, 0.0
  %v922 = vadd.f32 %v920, %v921
  %v923 = vsel %vm164, %v810, 0.0
  %v924 = vadd.f32 %v922, %v923
  %v925 = vsel %vm164, %v811, 0.0
  %v926 = vadd.f32 %v924, %v925
  %v927 = vsel %vm164, %v812, 0.0
  %v928 = vadd.f32 %v926, %v927
  %v929 = vsel %vm164, %v813, 0.0
  %v930 = vadd.f32 %v928, %v929
  %v931 = vsel %vm164, %v814, 0.0
  %v932 = vadd.f32 %v930, %v931
  %v933 = vsel %vm164, %v815, 0.0
  %v934 = vadd.f32 %v932, %v933
  %v935 = vsel %vm164, %v816, 0.0
  %v936 = vadd.f32 %v934, %v935
  %v937 = vsel %vm164, %v817, 0.0
  %v938 = vadd.f32 %v936, %v937
  %v939 = vsel %vm164, %v818, 0.0
  %v940 = vadd.f32 %v938, %v939
  %v941 = vsel %vm164, %v819, 0.0
  %v942 = vadd.f32 %v940, %v941
  %v943 = vsel %vm164, %v820, 0.0
  %v944 = vadd.f32 %v942, %v943
  %v945 = vsel %vm164, %v821, 0.0
  %v946 = vadd.f32 %v944, %v945
  %v947 = vsel %vm164, %v822, 0.0
  %v948 = vadd.f32 %v946, %v947
  %v949 = vsel %vm164, %v823, 0.0
  %v950 = vadd.f32 %v948, %v949
  %v951 = vrot.slane %v950, 4
  %v952 = vadd.f32 %v950, %v951
  %v953 = vrot.slane %v952, 2
  %v954 = vadd.f32 %v952, %v953
  %v955 = vrot.slane %v954, 1
  %v956 = vadd.f32 %v954, %v955
  %v957 = vadd.f32 %v496, %v956
  %s958 = scalar_lea.vmem %s27, 512
  %v959 = vld [vmem:[%s958] sm:$0xf]
  %v960 = vld [vmem:[%s958 + $0x4] sm:$0xf]
  %v961 = vld [vmem:[%s958 + $0x8] sm:$0xf]
  %v962 = vld [vmem:[%s958 + $0xc] sm:$0xf]
  %v963 = vld [vmem:[%s958 + $0x10] sm:$0xf]
  %v964 = vld [vmem:[%s958 + $0x14] sm:$0xf]
  %v965 = vld [vmem:[%s958 + $0x18] sm:$0xf]
  %v966 = vld [vmem:[%s958 + $0x1c] sm:$0xf]
  %v967 = vld [vmem:[%s958 + $0x20] sm:$0xf]
  %v968 = vld [vmem:[%s958 + $0x24] sm:$0xf]
  %v969 = vld [vmem:[%s958 + $0x28] sm:$0xf]
  %v970 = vld [vmem:[%s958 + $0x2c] sm:$0xf]
  %v971 = vld [vmem:[%s958 + $0x30] sm:$0xf]
  %v972 = vld [vmem:[%s958 + $0x34] sm:$0xf]
  %v973 = vld [vmem:[%s958 + $0x38] sm:$0xf]
  %v974 = vld [vmem:[%s958 + $0x3c] sm:$0xf]
  %v975 = vld [vmem:[%s958 + $0x40] sm:$0xf]
  %v976 = vld [vmem:[%s958 + $0x44] sm:$0xf]
  %v977 = vld [vmem:[%s958 + $0x48] sm:$0xf]
  %v978 = vld [vmem:[%s958 + $0x4c] sm:$0xf]
  %v979 = vld [vmem:[%s958 + $0x50] sm:$0xf]
  %v980 = vld [vmem:[%s958 + $0x54] sm:$0xf]
  %v981 = vld [vmem:[%s958 + $0x58] sm:$0xf]
  %v982 = vld [vmem:[%s958 + $0x5c] sm:$0xf]
  %v983 = vld [vmem:[%s958 + $0x60] sm:$0xf]
  %v984 = vld [vmem:[%s958 + $0x64] sm:$0xf]
  %v985 = vld [vmem:[%s958 + $0x68] sm:$0xf]
  %v986 = vld [vmem:[%s958 + $0x6c] sm:$0xf]
  %v987 = vld [vmem:[%s958 + $0x70] sm:$0xf]
  %v988 = vld [vmem:[%s958 + $0x74] sm:$0xf]
  %v989 = vld [vmem:[%s958 + $0x78] sm:$0xf]
  %v990 = vld [vmem:[%s958 + $0x7c] sm:$0xf]
  %v991 = vld [vmem:[%s958 + $0x80] sm:$0xf]
  %v992 = vld [vmem:[%s958 + $0x84] sm:$0xf]
  %v993 = vld [vmem:[%s958 + $0x88] sm:$0xf]
  %v994 = vld [vmem:[%s958 + $0x8c] sm:$0xf]
  %v995 = vld [vmem:[%s958 + $0x90] sm:$0xf]
  %v996 = vld [vmem:[%s958 + $0x94] sm:$0xf]
  %v997 = vld [vmem:[%s958 + $0x98] sm:$0xf]
  %v998 = vld [vmem:[%s958 + $0x9c] sm:$0xf]
  %v999 = vld [vmem:[%s958 + $0xa0] sm:$0xf]
  %v1000 = vld [vmem:[%s958 + $0xa4] sm:$0xf]
  %v1001 = vld [vmem:[%s958 + $0xa8] sm:$0xf]
  %v1002 = vld [vmem:[%s958 + $0xac] sm:$0xf]
  %v1003 = vld [vmem:[%s958 + $0xb0] sm:$0xf]
  %v1004 = vld [vmem:[%s958 + $0xb4] sm:$0xf]
  %v1005 = vld [vmem:[%s958 + $0xb8] sm:$0xf]
  %v1006 = vld [vmem:[%s958 + $0xbc] sm:$0xf]
  %v1007 = vld [vmem:[%s958 + $0xc0] sm:$0xf]
  %v1008 = vld [vmem:[%s958 + $0xc4] sm:$0xf]
  %v1009 = vld [vmem:[%s958 + $0xc8] sm:$0xf]
  %v1010 = vld [vmem:[%s958 + $0xcc] sm:$0xf]
  %v1011 = vld [vmem:[%s958 + $0xd0] sm:$0xf]
  %v1012 = vld [vmem:[%s958 + $0xd4] sm:$0xf]
  %v1013 = vld [vmem:[%s958 + $0xd8] sm:$0xf]
  %v1014 = vld [vmem:[%s958 + $0xdc] sm:$0xf]
  %v1015 = vld [vmem:[%s958 + $0xe0] sm:$0xf]
  %v1016 = vld [vmem:[%s958 + $0xe4] sm:$0xf]
  %v1017 = vld [vmem:[%s958 + $0xe8] sm:$0xf]
  %v1018 = vld [vmem:[%s958 + $0xec] sm:$0xf]
  %v1019 = vld [vmem:[%s958 + $0xf0] sm:$0xf]
  %v1020 = vld [vmem:[%s958 + $0xf4] sm:$0xf]
  %v1021 = vld [vmem:[%s958 + $0xf8] sm:$0xf]
  %v1022 = vld [vmem:[%s958 + $0xfc] sm:$0xf]
  %v1023 = vunpack.c.l.bf16 %v959
  %v1024 = vunpack.c.l.bf16 %v960
  %v1025 = vunpack.c.l.bf16 %v961
  %v1026 = vunpack.c.l.bf16 %v962
  %v1027 = vunpack.c.l.bf16 %v963
  %v1028 = vunpack.c.l.bf16 %v964
  %v1029 = vunpack.c.l.bf16 %v965
  %v1030 = vunpack.c.l.bf16 %v966
  %v1031 = vunpack.c.l.bf16 %v967
  %v1032 = vunpack.c.l.bf16 %v968
  %v1033 = vunpack.c.l.bf16 %v969
  %v1034 = vunpack.c.l.bf16 %v970
  %v1035 = vunpack.c.l.bf16 %v971
  %v1036 = vunpack.c.l.bf16 %v972
  %v1037 = vunpack.c.l.bf16 %v973
  %v1038 = vunpack.c.l.bf16 %v974
  %v1039 = vunpack.c.l.bf16 %v975
  %v1040 = vunpack.c.l.bf16 %v976
  %v1041 = vunpack.c.l.bf16 %v977
  %v1042 = vunpack.c.l.bf16 %v978
  %v1043 = vunpack.c.l.bf16 %v979
  %v1044 = vunpack.c.l.bf16 %v980
  %v1045 = vunpack.c.l.bf16 %v981
  %v1046 = vunpack.c.l.bf16 %v982
  %v1047 = vunpack.c.l.bf16 %v983
  %v1048 = vunpack.c.l.bf16 %v984
  %v1049 = vunpack.c.l.bf16 %v985
  %v1050 = vunpack.c.l.bf16 %v986
  %v1051 = vunpack.c.l.bf16 %v987
  %v1052 = vunpack.c.l.bf16 %v988
  %v1053 = vunpack.c.l.bf16 %v989
  %v1054 = vunpack.c.l.bf16 %v990
  %v1055 = vunpack.c.l.bf16 %v991
  %v1056 = vunpack.c.l.bf16 %v992
  %v1057 = vunpack.c.l.bf16 %v993
  %v1058 = vunpack.c.l.bf16 %v994
  %v1059 = vunpack.c.l.bf16 %v995
  %v1060 = vunpack.c.l.bf16 %v996
  %v1061 = vunpack.c.l.bf16 %v997
  %v1062 = vunpack.c.l.bf16 %v998
  %v1063 = vunpack.c.l.bf16 %v999
  %v1064 = vunpack.c.l.bf16 %v1000
  %v1065 = vunpack.c.l.bf16 %v1001
  %v1066 = vunpack.c.l.bf16 %v1002
  %v1067 = vunpack.c.l.bf16 %v1003
  %v1068 = vunpack.c.l.bf16 %v1004
  %v1069 = vunpack.c.l.bf16 %v1005
  %v1070 = vunpack.c.l.bf16 %v1006
  %v1071 = vunpack.c.l.bf16 %v1007
  %v1072 = vunpack.c.l.bf16 %v1008
  %v1073 = vunpack.c.l.bf16 %v1009
  %v1074 = vunpack.c.l.bf16 %v1010
  %v1075 = vunpack.c.l.bf16 %v1011
  %v1076 = vunpack.c.l.bf16 %v1012
  %v1077 = vunpack.c.l.bf16 %v1013
  %v1078 = vunpack.c.l.bf16 %v1014
  %v1079 = vunpack.c.l.bf16 %v1015
  %v1080 = vunpack.c.l.bf16 %v1016
  %v1081 = vunpack.c.l.bf16 %v1017
  %v1082 = vunpack.c.l.bf16 %v1018
  %v1083 = vunpack.c.l.bf16 %v1019
  %v1084 = vunpack.c.l.bf16 %v1020
  %v1085 = vunpack.c.l.bf16 %v1021
  %v1086 = vunpack.c.l.bf16 %v1022
  %v1087 = vsel %vm164, %v1023, 0.0
  %v1088 = vsel %vm164, %v1024, 0.0
  %v1089 = vadd.f32 %v1087, %v1088
  %v1090 = vsel %vm164, %v1025, 0.0
  %v1091 = vadd.f32 %v1089, %v1090
  %v1092 = vsel %vm164, %v1026, 0.0
  %v1093 = vadd.f32 %v1091, %v1092
  %v1094 = vsel %vm164, %v1027, 0.0
  %v1095 = vadd.f32 %v1093, %v1094
  %v1096 = vsel %vm164, %v1028, 0.0
  %v1097 = vadd.f32 %v1095, %v1096
  %v1098 = vsel %vm164, %v1029, 0.0
  %v1099 = vadd.f32 %v1097, %v1098
  %v1100 = vsel %vm164, %v1030, 0.0
  %v1101 = vadd.f32 %v1099, %v1100
  %v1102 = vsel %vm164, %v1031, 0.0
  %v1103 = vadd.f32 %v1101, %v1102
  %v1104 = vsel %vm164, %v1032, 0.0
  %v1105 = vadd.f32 %v1103, %v1104
  %v1106 = vsel %vm164, %v1033, 0.0
  %v1107 = vadd.f32 %v1105, %v1106
  %v1108 = vsel %vm164, %v1034, 0.0
  %v1109 = vadd.f32 %v1107, %v1108
  %v1110 = vsel %vm164, %v1035, 0.0
  %v1111 = vadd.f32 %v1109, %v1110
  %v1112 = vsel %vm164, %v1036, 0.0
  %v1113 = vadd.f32 %v1111, %v1112
  %v1114 = vsel %vm164, %v1037, 0.0
  %v1115 = vadd.f32 %v1113, %v1114
  %v1116 = vsel %vm164, %v1038, 0.0
  %v1117 = vadd.f32 %v1115, %v1116
  %v1118 = vsel %vm164, %v1039, 0.0
  %v1119 = vadd.f32 %v1117, %v1118
  %v1120 = vsel %vm164, %v1040, 0.0
  %v1121 = vadd.f32 %v1119, %v1120
  %v1122 = vsel %vm164, %v1041, 0.0
  %v1123 = vadd.f32 %v1121, %v1122
  %v1124 = vsel %vm164, %v1042, 0.0
  %v1125 = vadd.f32 %v1123, %v1124
  %v1126 = vsel %vm164, %v1043, 0.0
  %v1127 = vadd.f32 %v1125, %v1126
  %v1128 = vsel %vm164, %v1044, 0.0
  %v1129 = vadd.f32 %v1127, %v1128
  %v1130 = vsel %vm164, %v1045, 0.0
  %v1131 = vadd.f32 %v1129, %v1130
  %v1132 = vsel %vm164, %v1046, 0.0
  %v1133 = vadd.f32 %v1131, %v1132
  %v1134 = vsel %vm164, %v1047, 0.0
  %v1135 = vadd.f32 %v1133, %v1134
  %v1136 = vsel %vm164, %v1048, 0.0
  %v1137 = vadd.f32 %v1135, %v1136
  %v1138 = vsel %vm164, %v1049, 0.0
  %v1139 = vadd.f32 %v1137, %v1138
  %v1140 = vsel %vm164, %v1050, 0.0
  %v1141 = vadd.f32 %v1139, %v1140
  %v1142 = vsel %vm164, %v1051, 0.0
  %v1143 = vadd.f32 %v1141, %v1142
  %v1144 = vsel %vm164, %v1052, 0.0
  %v1145 = vadd.f32 %v1143, %v1144
  %v1146 = vsel %vm164, %v1053, 0.0
  %v1147 = vadd.f32 %v1145, %v1146
  %v1148 = vsel %vm164, %v1054, 0.0
  %v1149 = vadd.f32 %v1147, %v1148
  %v1150 = vsel %vm164, %v1055, 0.0
  %v1151 = vadd.f32 %v1149, %v1150
  %v1152 = vsel %vm164, %v1056, 0.0
  %v1153 = vadd.f32 %v1151, %v1152
  %v1154 = vsel %vm164, %v1057, 0.0
  %v1155 = vadd.f32 %v1153, %v1154
  %v1156 = vsel %vm164, %v1058, 0.0
  %v1157 = vadd.f32 %v1155, %v1156
  %v1158 = vsel %vm164, %v1059, 0.0
  %v1159 = vadd.f32 %v1157, %v1158
  %v1160 = vsel %vm164, %v1060, 0.0
  %v1161 = vadd.f32 %v1159, %v1160
  %v1162 = vsel %vm164, %v1061, 0.0
  %v1163 = vadd.f32 %v1161, %v1162
  %v1164 = vsel %vm164, %v1062, 0.0
  %v1165 = vadd.f32 %v1163, %v1164
  %v1166 = vsel %vm164, %v1063, 0.0
  %v1167 = vadd.f32 %v1165, %v1166
  %v1168 = vsel %vm164, %v1064, 0.0
  %v1169 = vadd.f32 %v1167, %v1168
  %v1170 = vsel %vm164, %v1065, 0.0
  %v1171 = vadd.f32 %v1169, %v1170
  %v1172 = vsel %vm164, %v1066, 0.0
  %v1173 = vadd.f32 %v1171, %v1172
  %v1174 = vsel %vm164, %v1067, 0.0
  %v1175 = vadd.f32 %v1173, %v1174
  %v1176 = vsel %vm164, %v1068, 0.0
  %v1177 = vadd.f32 %v1175, %v1176
  %v1178 = vsel %vm164, %v1069, 0.0
  %v1179 = vadd.f32 %v1177, %v1178
  %v1180 = vsel %vm164, %v1070, 0.0
  %v1181 = vadd.f32 %v1179, %v1180
  %v1182 = vsel %vm164, %v1071, 0.0
  %v1183 = vadd.f32 %v1181, %v1182
  %v1184 = vsel %vm164, %v1072, 0.0
  %v1185 = vadd.f32 %v1183, %v1184
  %v1186 = vsel %vm164, %v1073, 0.0
  %v1187 = vadd.f32 %v1185, %v1186
  %v1188 = vsel %vm164, %v1074, 0.0
  %v1189 = vadd.f32 %v1187, %v1188
  %v1190 = vsel %vm164, %v1075, 0.0
  %v1191 = vadd.f32 %v1189, %v1190
  %v1192 = vsel %vm164, %v1076, 0.0
  %v1193 = vadd.f32 %v1191, %v1192
  %v1194 = vsel %vm164, %v1077, 0.0
  %v1195 = vadd.f32 %v1193, %v1194
  %v1196 = vsel %vm164, %v1078, 0.0
  %v1197 = vadd.f32 %v1195, %v1196
  %v1198 = vsel %vm164, %v1079, 0.0
  %v1199 = vadd.f32 %v1197, %v1198
  %v1200 = vsel %vm164, %v1080, 0.0
  %v1201 = vadd.f32 %v1199, %v1200
  %v1202 = vsel %vm164, %v1081, 0.0
  %v1203 = vadd.f32 %v1201, %v1202
  %v1204 = vsel %vm164, %v1082, 0.0
  %v1205 = vadd.f32 %v1203, %v1204
  %v1206 = vsel %vm164, %v1083, 0.0
  %v1207 = vadd.f32 %v1205, %v1206
  %v1208 = vsel %vm164, %v1084, 0.0
  %v1209 = vadd.f32 %v1207, %v1208
  %v1210 = vsel %vm164, %v1085, 0.0
  %v1211 = vadd.f32 %v1209, %v1210
  %v1212 = vsel %vm164, %v1086, 0.0
  %v1213 = vadd.f32 %v1211, %v1212
  %v1214 = vrot.slane %v1213, 4
  %v1215 = vadd.f32 %v1213, %v1214
  %v1216 = vrot.slane %v1215, 2
  %v1217 = vadd.f32 %v1215, %v1216
  %v1218 = vrot.slane %v1217, 1
  %v1219 = vadd.f32 %v1217, %v1218
  %v1220 = vadd.f32 %v759, %v1219
  %v1221 = vmul.f32 %v1023, %v1023
  %v1222 = vmul.f32 %v1024, %v1024
  %v1223 = vmul.f32 %v1025, %v1025
  %v1224 = vmul.f32 %v1026, %v1026
  %v1225 = vmul.f32 %v1027, %v1027
  %v1226 = vmul.f32 %v1028, %v1028
  %v1227 = vmul.f32 %v1029, %v1029
  %v1228 = vmul.f32 %v1030, %v1030
  %v1229 = vmul.f32 %v1031, %v1031
  %v1230 = vmul.f32 %v1032, %v1032
  %v1231 = vmul.f32 %v1033, %v1033
  %v1232 = vmul.f32 %v1034, %v1034
  %v1233 = vmul.f32 %v1035, %v1035
  %v1234 = vmul.f32 %v1036, %v1036
  %v1235 = vmul.f32 %v1037, %v1037
  %v1236 = vmul.f32 %v1038, %v1038
  %v1237 = vmul.f32 %v1039, %v1039
  %v1238 = vmul.f32 %v1040, %v1040
  %v1239 = vmul.f32 %v1041, %v1041
  %v1240 = vmul.f32 %v1042, %v1042
  %v1241 = vmul.f32 %v1043, %v1043
  %v1242 = vmul.f32 %v1044, %v1044
  %v1243 = vmul.f32 %v1045, %v1045
  %v1244 = vmul.f32 %v1046, %v1046
  %v1245 = vmul.f32 %v1047, %v1047
  %v1246 = vmul.f32 %v1048, %v1048
  %v1247 = vmul.f32 %v1049, %v1049
  %v1248 = vmul.f32 %v1050, %v1050
  %v1249 = vmul.f32 %v1051, %v1051
  %v1250 = vmul.f32 %v1052, %v1052
  %v1251 = vmul.f32 %v1053, %v1053
  %v1252 = vmul.f32 %v1054, %v1054
  %v1253 = vmul.f32 %v1055, %v1055
  %v1254 = vmul.f32 %v1056, %v1056
  %v1255 = vmul.f32 %v1057, %v1057
  %v1256 = vmul.f32 %v1058, %v1058
  %v1257 = vmul.f32 %v1059, %v1059
  %v1258 = vmul.f32 %v1060, %v1060
  %v1259 = vmul.f32 %v1061, %v1061
  %v1260 = vmul.f32 %v1062, %v1062
  %v1261 = vmul.f32 %v1063, %v1063
  %v1262 = vmul.f32 %v1064, %v1064
  %v1263 = vmul.f32 %v1065, %v1065
  %v1264 = vmul.f32 %v1066, %v1066
  %v1265 = vmul.f32 %v1067, %v1067
  %v1266 = vmul.f32 %v1068, %v1068
  %v1267 = vmul.f32 %v1069, %v1069
  %v1268 = vmul.f32 %v1070, %v1070
  %v1269 = vmul.f32 %v1071, %v1071
  %v1270 = vmul.f32 %v1072, %v1072
  %v1271 = vmul.f32 %v1073, %v1073
  %v1272 = vmul.f32 %v1074, %v1074
  %v1273 = vmul.f32 %v1075, %v1075
  %v1274 = vmul.f32 %v1076, %v1076
  %v1275 = vmul.f32 %v1077, %v1077
  %v1276 = vmul.f32 %v1078, %v1078
  %v1277 = vmul.f32 %v1079, %v1079
  %v1278 = vmul.f32 %v1080, %v1080
  %v1279 = vmul.f32 %v1081, %v1081
  %v1280 = vmul.f32 %v1082, %v1082
  %v1281 = vmul.f32 %v1083, %v1083
  %v1282 = vmul.f32 %v1084, %v1084
  %v1283 = vmul.f32 %v1085, %v1085
  %v1284 = vmul.f32 %v1086, %v1086
  %v1285 = vsel %vm164, %v1221, 0.0
  %v1286 = vsel %vm164, %v1222, 0.0
  %v1287 = vadd.f32 %v1285, %v1286
  %v1288 = vsel %vm164, %v1223, 0.0
  %v1289 = vadd.f32 %v1287, %v1288
  %v1290 = vsel %vm164, %v1224, 0.0
  %v1291 = vadd.f32 %v1289, %v1290
  %v1292 = vsel %vm164, %v1225, 0.0
  %v1293 = vadd.f32 %v1291, %v1292
  %v1294 = vsel %vm164, %v1226, 0.0
  %v1295 = vadd.f32 %v1293, %v1294
  %v1296 = vsel %vm164, %v1227, 0.0
  %v1297 = vadd.f32 %v1295, %v1296
  %v1298 = vsel %vm164, %v1228, 0.0
  %v1299 = vadd.f32 %v1297, %v1298
  %v1300 = vsel %vm164, %v1229, 0.0
  %v1301 = vadd.f32 %v1299, %v1300
  %v1302 = vsel %vm164, %v1230, 0.0
  %v1303 = vadd.f32 %v1301, %v1302
  %v1304 = vsel %vm164, %v1231, 0.0
  %v1305 = vadd.f32 %v1303, %v1304
  %v1306 = vsel %vm164, %v1232, 0.0
  %v1307 = vadd.f32 %v1305, %v1306
  %v1308 = vsel %vm164, %v1233, 0.0
  %v1309 = vadd.f32 %v1307, %v1308
  %v1310 = vsel %vm164, %v1234, 0.0
  %v1311 = vadd.f32 %v1309, %v1310
  %v1312 = vsel %vm164, %v1235, 0.0
  %v1313 = vadd.f32 %v1311, %v1312
  %v1314 = vsel %vm164, %v1236, 0.0
  %v1315 = vadd.f32 %v1313, %v1314
  %v1316 = vsel %vm164, %v1237, 0.0
  %v1317 = vadd.f32 %v1315, %v1316
  %v1318 = vsel %vm164, %v1238, 0.0
  %v1319 = vadd.f32 %v1317, %v1318
  %v1320 = vsel %vm164, %v1239, 0.0
  %v1321 = vadd.f32 %v1319, %v1320
  %v1322 = vsel %vm164, %v1240, 0.0
  %v1323 = vadd.f32 %v1321, %v1322
  %v1324 = vsel %vm164, %v1241, 0.0
  %v1325 = vadd.f32 %v1323, %v1324
  %v1326 = vsel %vm164, %v1242, 0.0
  %v1327 = vadd.f32 %v1325, %v1326
  %v1328 = vsel %vm164, %v1243, 0.0
  %v1329 = vadd.f32 %v1327, %v1328
  %v1330 = vsel %vm164, %v1244, 0.0
  %v1331 = vadd.f32 %v1329, %v1330
  %v1332 = vsel %vm164, %v1245, 0.0
  %v1333 = vadd.f32 %v1331, %v1332
  %v1334 = vsel %vm164, %v1246, 0.0
  %v1335 = vadd.f32 %v1333, %v1334
  %v1336 = vsel %vm164, %v1247, 0.0
  %v1337 = vadd.f32 %v1335, %v1336
  %v1338 = vsel %vm164, %v1248, 0.0
  %v1339 = vadd.f32 %v1337, %v1338
  %v1340 = vsel %vm164, %v1249, 0.0
  %v1341 = vadd.f32 %v1339, %v1340
  %v1342 = vsel %vm164, %v1250, 0.0
  %v1343 = vadd.f32 %v1341, %v1342
  %v1344 = vsel %vm164, %v1251, 0.0
  %v1345 = vadd.f32 %v1343, %v1344
  %v1346 = vsel %vm164, %v1252, 0.0
  %v1347 = vadd.f32 %v1345, %v1346
  %v1348 = vsel %vm164, %v1253, 0.0
  %v1349 = vadd.f32 %v1347, %v1348
  %v1350 = vsel %vm164, %v1254, 0.0
  %v1351 = vadd.f32 %v1349, %v1350
  %v1352 = vsel %vm164, %v1255, 0.0
  %v1353 = vadd.f32 %v1351, %v1352
  %v1354 = vsel %vm164, %v1256, 0.0
  %v1355 = vadd.f32 %v1353, %v1354
  %v1356 = vsel %vm164, %v1257, 0.0
  %v1357 = vadd.f32 %v1355, %v1356
  %v1358 = vsel %vm164, %v1258, 0.0
  %v1359 = vadd.f32 %v1357, %v1358
  %v1360 = vsel %vm164, %v1259, 0.0
  %v1361 = vadd.f32 %v1359, %v1360
  %v1362 = vsel %vm164, %v1260, 0.0
  %v1363 = vadd.f32 %v1361, %v1362
  %v1364 = vsel %vm164, %v1261, 0.0
  %v1365 = vadd.f32 %v1363, %v1364
  %v1366 = vsel %vm164, %v1262, 0.0
  %v1367 = vadd.f32 %v1365, %v1366
  %v1368 = vsel %vm164, %v1263, 0.0
  %v1369 = vadd.f32 %v1367, %v1368
  %v1370 = vsel %vm164, %v1264, 0.0
  %v1371 = vadd.f32 %v1369, %v1370
  %v1372 = vsel %vm164, %v1265, 0.0
  %v1373 = vadd.f32 %v1371, %v1372
  %v1374 = vsel %vm164, %v1266, 0.0
  %v1375 = vadd.f32 %v1373, %v1374
  %v1376 = vsel %vm164, %v1267, 0.0
  %v1377 = vadd.f32 %v1375, %v1376
  %v1378 = vsel %vm164, %v1268, 0.0
  %v1379 = vadd.f32 %v1377, %v1378
  %v1380 = vsel %vm164, %v1269, 0.0
  %v1381 = vadd.f32 %v1379, %v1380
  %v1382 = vsel %vm164, %v1270, 0.0
  %v1383 = vadd.f32 %v1381, %v1382
  %v1384 = vsel %vm164, %v1271, 0.0
  %v1385 = vadd.f32 %v1383, %v1384
  %v1386 = vsel %vm164, %v1272, 0.0
  %v1387 = vadd.f32 %v1385, %v1386
  %v1388 = vsel %vm164, %v1273, 0.0
  %v1389 = vadd.f32 %v1387, %v1388
  %v1390 = vsel %vm164, %v1274, 0.0
  %v1391 = vadd.f32 %v1389, %v1390
  %v1392 = vsel %vm164, %v1275, 0.0
  %v1393 = vadd.f32 %v1391, %v1392
  %v1394 = vsel %vm164, %v1276, 0.0
  %v1395 = vadd.f32 %v1393, %v1394
  %v1396 = vsel %vm164, %v1277, 0.0
  %v1397 = vadd.f32 %v1395, %v1396
  %v1398 = vsel %vm164, %v1278, 0.0
  %v1399 = vadd.f32 %v1397, %v1398
  %v1400 = vsel %vm164, %v1279, 0.0
  %v1401 = vadd.f32 %v1399, %v1400
  %v1402 = vsel %vm164, %v1280, 0.0
  %v1403 = vadd.f32 %v1401, %v1402
  %v1404 = vsel %vm164, %v1281, 0.0
  %v1405 = vadd.f32 %v1403, %v1404
  %v1406 = vsel %vm164, %v1282, 0.0
  %v1407 = vadd.f32 %v1405, %v1406
  %v1408 = vsel %vm164, %v1283, 0.0
  %v1409 = vadd.f32 %v1407, %v1408
  %v1410 = vsel %vm164, %v1284, 0.0
  %v1411 = vadd.f32 %v1409, %v1410
  %v1412 = vrot.slane %v1411, 4
  %v1413 = vadd.f32 %v1411, %v1412
  %v1414 = vrot.slane %v1413, 2
  %v1415 = vadd.f32 %v1413, %v1414
  %v1416 = vrot.slane %v1415, 1
  %v1417 = vadd.f32 %v1415, %v1416
  %v1418 = vadd.f32 %v957, %v1417
  %s1419 = scalar_lea.vmem %s27, 768
  %v1420 = vld [vmem:[%s1419] sm:$0xf]
  %v1421 = vld [vmem:[%s1419 + $0x4] sm:$0xf]
  %v1422 = vld [vmem:[%s1419 + $0x8] sm:$0xf]
  %v1423 = vld [vmem:[%s1419 + $0xc] sm:$0xf]
  %v1424 = vld [vmem:[%s1419 + $0x10] sm:$0xf]
  %v1425 = vld [vmem:[%s1419 + $0x14] sm:$0xf]
  %v1426 = vld [vmem:[%s1419 + $0x18] sm:$0xf]
  %v1427 = vld [vmem:[%s1419 + $0x1c] sm:$0xf]
  %v1428 = vld [vmem:[%s1419 + $0x20] sm:$0xf]
  %v1429 = vld [vmem:[%s1419 + $0x24] sm:$0xf]
  %v1430 = vld [vmem:[%s1419 + $0x28] sm:$0xf]
  %v1431 = vld [vmem:[%s1419 + $0x2c] sm:$0xf]
  %v1432 = vld [vmem:[%s1419 + $0x30] sm:$0xf]
  %v1433 = vld [vmem:[%s1419 + $0x34] sm:$0xf]
  %v1434 = vld [vmem:[%s1419 + $0x38] sm:$0xf]
  %v1435 = vld [vmem:[%s1419 + $0x3c] sm:$0xf]
  %v1436 = vld [vmem:[%s1419 + $0x40] sm:$0xf]
  %v1437 = vld [vmem:[%s1419 + $0x44] sm:$0xf]
  %v1438 = vld [vmem:[%s1419 + $0x48] sm:$0xf]
  %v1439 = vld [vmem:[%s1419 + $0x4c] sm:$0xf]
  %v1440 = vld [vmem:[%s1419 + $0x50] sm:$0xf]
  %v1441 = vld [vmem:[%s1419 + $0x54] sm:$0xf]
  %v1442 = vld [vmem:[%s1419 + $0x58] sm:$0xf]
  %v1443 = vld [vmem:[%s1419 + $0x5c] sm:$0xf]
  %v1444 = vld [vmem:[%s1419 + $0x60] sm:$0xf]
  %v1445 = vld [vmem:[%s1419 + $0x64] sm:$0xf]
  %v1446 = vld [vmem:[%s1419 + $0x68] sm:$0xf]
  %v1447 = vld [vmem:[%s1419 + $0x6c] sm:$0xf]
  %v1448 = vld [vmem:[%s1419 + $0x70] sm:$0xf]
  %v1449 = vld [vmem:[%s1419 + $0x74] sm:$0xf]
  %v1450 = vld [vmem:[%s1419 + $0x78] sm:$0xf]
  %v1451 = vld [vmem:[%s1419 + $0x7c] sm:$0xf]
  %v1452 = vld [vmem:[%s1419 + $0x80] sm:$0xf]
  %v1453 = vld [vmem:[%s1419 + $0x84] sm:$0xf]
  %v1454 = vld [vmem:[%s1419 + $0x88] sm:$0xf]
  %v1455 = vld [vmem:[%s1419 + $0x8c] sm:$0xf]
  %v1456 = vld [vmem:[%s1419 + $0x90] sm:$0xf]
  %v1457 = vld [vmem:[%s1419 + $0x94] sm:$0xf]
  %v1458 = vld [vmem:[%s1419 + $0x98] sm:$0xf]
  %v1459 = vld [vmem:[%s1419 + $0x9c] sm:$0xf]
  %v1460 = vld [vmem:[%s1419 + $0xa0] sm:$0xf]
  %v1461 = vld [vmem:[%s1419 + $0xa4] sm:$0xf]
  %v1462 = vld [vmem:[%s1419 + $0xa8] sm:$0xf]
  %v1463 = vld [vmem:[%s1419 + $0xac] sm:$0xf]
  %v1464 = vld [vmem:[%s1419 + $0xb0] sm:$0xf]
  %v1465 = vld [vmem:[%s1419 + $0xb4] sm:$0xf]
  %v1466 = vld [vmem:[%s1419 + $0xb8] sm:$0xf]
  %v1467 = vld [vmem:[%s1419 + $0xbc] sm:$0xf]
  %v1468 = vld [vmem:[%s1419 + $0xc0] sm:$0xf]
  %v1469 = vld [vmem:[%s1419 + $0xc4] sm:$0xf]
  %v1470 = vld [vmem:[%s1419 + $0xc8] sm:$0xf]
  %v1471 = vld [vmem:[%s1419 + $0xcc] sm:$0xf]
  %v1472 = vld [vmem:[%s1419 + $0xd0] sm:$0xf]
  %v1473 = vld [vmem:[%s1419 + $0xd4] sm:$0xf]
  %v1474 = vld [vmem:[%s1419 + $0xd8] sm:$0xf]
  %v1475 = vld [vmem:[%s1419 + $0xdc] sm:$0xf]
  %v1476 = vld [vmem:[%s1419 + $0xe0] sm:$0xf]
  %v1477 = vld [vmem:[%s1419 + $0xe4] sm:$0xf]
  %v1478 = vld [vmem:[%s1419 + $0xe8] sm:$0xf]
  %v1479 = vld [vmem:[%s1419 + $0xec] sm:$0xf]
  %v1480 = vld [vmem:[%s1419 + $0xf0] sm:$0xf]
  %v1481 = vld [vmem:[%s1419 + $0xf4] sm:$0xf]
  %v1482 = vld [vmem:[%s1419 + $0xf8] sm:$0xf]
  %v1483 = vld [vmem:[%s1419 + $0xfc] sm:$0xf]
  %v1484 = vunpack.c.l.bf16 %v1420
  %v1485 = vunpack.c.l.bf16 %v1421
  %v1486 = vunpack.c.l.bf16 %v1422
  %v1487 = vunpack.c.l.bf16 %v1423
  %v1488 = vunpack.c.l.bf16 %v1424
  %v1489 = vunpack.c.l.bf16 %v1425
  %v1490 = vunpack.c.l.bf16 %v1426
  %v1491 = vunpack.c.l.bf16 %v1427
  %v1492 = vunpack.c.l.bf16 %v1428
  %v1493 = vunpack.c.l.bf16 %v1429
  %v1494 = vunpack.c.l.bf16 %v1430
  %v1495 = vunpack.c.l.bf16 %v1431
  %v1496 = vunpack.c.l.bf16 %v1432
  %v1497 = vunpack.c.l.bf16 %v1433
  %v1498 = vunpack.c.l.bf16 %v1434
  %v1499 = vunpack.c.l.bf16 %v1435
  %v1500 = vunpack.c.l.bf16 %v1436
  %v1501 = vunpack.c.l.bf16 %v1437
  %v1502 = vunpack.c.l.bf16 %v1438
  %v1503 = vunpack.c.l.bf16 %v1439
  %v1504 = vunpack.c.l.bf16 %v1440
  %v1505 = vunpack.c.l.bf16 %v1441
  %v1506 = vunpack.c.l.bf16 %v1442
  %v1507 = vunpack.c.l.bf16 %v1443
  %v1508 = vunpack.c.l.bf16 %v1444
  %v1509 = vunpack.c.l.bf16 %v1445
  %v1510 = vunpack.c.l.bf16 %v1446
  %v1511 = vunpack.c.l.bf16 %v1447
  %v1512 = vunpack.c.l.bf16 %v1448
  %v1513 = vunpack.c.l.bf16 %v1449
  %v1514 = vunpack.c.l.bf16 %v1450
  %v1515 = vunpack.c.l.bf16 %v1451
  %v1516 = vunpack.c.l.bf16 %v1452
  %v1517 = vunpack.c.l.bf16 %v1453
  %v1518 = vunpack.c.l.bf16 %v1454
  %v1519 = vunpack.c.l.bf16 %v1455
  %v1520 = vunpack.c.l.bf16 %v1456
  %v1521 = vunpack.c.l.bf16 %v1457
  %v1522 = vunpack.c.l.bf16 %v1458
  %v1523 = vunpack.c.l.bf16 %v1459
  %v1524 = vunpack.c.l.bf16 %v1460
  %v1525 = vunpack.c.l.bf16 %v1461
  %v1526 = vunpack.c.l.bf16 %v1462
  %v1527 = vunpack.c.l.bf16 %v1463
  %v1528 = vunpack.c.l.bf16 %v1464
  %v1529 = vunpack.c.l.bf16 %v1465
  %v1530 = vunpack.c.l.bf16 %v1466
  %v1531 = vunpack.c.l.bf16 %v1467
  %v1532 = vunpack.c.l.bf16 %v1468
  %v1533 = vunpack.c.l.bf16 %v1469
  %v1534 = vunpack.c.l.bf16 %v1470
  %v1535 = vunpack.c.l.bf16 %v1471
  %v1536 = vunpack.c.l.bf16 %v1472
  %v1537 = vunpack.c.l.bf16 %v1473
  %v1538 = vunpack.c.l.bf16 %v1474
  %v1539 = vunpack.c.l.bf16 %v1475
  %v1540 = vunpack.c.l.bf16 %v1476
  %v1541 = vunpack.c.l.bf16 %v1477
  %v1542 = vunpack.c.l.bf16 %v1478
  %v1543 = vunpack.c.l.bf16 %v1479
  %v1544 = vunpack.c.l.bf16 %v1480
  %v1545 = vunpack.c.l.bf16 %v1481
  %v1546 = vunpack.c.l.bf16 %v1482
  %v1547 = vunpack.c.l.bf16 %v1483
  %v1548 = vsel %vm164, %v1484, 0.0
  %v1549 = vsel %vm164, %v1485, 0.0
  %v1550 = vadd.f32 %v1548, %v1549
  %v1551 = vsel %vm164, %v1486, 0.0
  %v1552 = vadd.f32 %v1550, %v1551
  %v1553 = vsel %vm164, %v1487, 0.0
  %v1554 = vadd.f32 %v1552, %v1553
  %v1555 = vsel %vm164, %v1488, 0.0
  %v1556 = vadd.f32 %v1554, %v1555
  %v1557 = vsel %vm164, %v1489, 0.0
  %v1558 = vadd.f32 %v1556, %v1557
  %v1559 = vsel %vm164, %v1490, 0.0
  %v1560 = vadd.f32 %v1558, %v1559
  %v1561 = vsel %vm164, %v1491, 0.0
  %v1562 = vadd.f32 %v1560, %v1561
  %v1563 = vsel %vm164, %v1492, 0.0
  %v1564 = vadd.f32 %v1562, %v1563
  %v1565 = vsel %vm164, %v1493, 0.0
  %v1566 = vadd.f32 %v1564, %v1565
  %v1567 = vsel %vm164, %v1494, 0.0
  %v1568 = vadd.f32 %v1566, %v1567
  %v1569 = vsel %vm164, %v1495, 0.0
  %v1570 = vadd.f32 %v1568, %v1569
  %v1571 = vsel %vm164, %v1496, 0.0
  %v1572 = vadd.f32 %v1570, %v1571
  %v1573 = vsel %vm164, %v1497, 0.0
  %v1574 = vadd.f32 %v1572, %v1573
  %v1575 = vsel %vm164, %v1498, 0.0
  %v1576 = vadd.f32 %v1574, %v1575
  %v1577 = vsel %vm164, %v1499, 0.0
  %v1578 = vadd.f32 %v1576, %v1577
  %v1579 = vsel %vm164, %v1500, 0.0
  %v1580 = vadd.f32 %v1578, %v1579
  %v1581 = vsel %vm164, %v1501, 0.0
  %v1582 = vadd.f32 %v1580, %v1581
  %v1583 = vsel %vm164, %v1502, 0.0
  %v1584 = vadd.f32 %v1582, %v1583
  %v1585 = vsel %vm164, %v1503, 0.0
  %v1586 = vadd.f32 %v1584, %v1585
  %v1587 = vsel %vm164, %v1504, 0.0
  %v1588 = vadd.f32 %v1586, %v1587
  %v1589 = vsel %vm164, %v1505, 0.0
  %v1590 = vadd.f32 %v1588, %v1589
  %v1591 = vsel %vm164, %v1506, 0.0
  %v1592 = vadd.f32 %v1590, %v1591
  %v1593 = vsel %vm164, %v1507, 0.0
  %v1594 = vadd.f32 %v1592, %v1593
  %v1595 = vsel %vm164, %v1508, 0.0
  %v1596 = vadd.f32 %v1594, %v1595
  %v1597 = vsel %vm164, %v1509, 0.0
  %v1598 = vadd.f32 %v1596, %v1597
  %v1599 = vsel %vm164, %v1510, 0.0
  %v1600 = vadd.f32 %v1598, %v1599
  %v1601 = vsel %vm164, %v1511, 0.0
  %v1602 = vadd.f32 %v1600, %v1601
  %v1603 = vsel %vm164, %v1512, 0.0
  %v1604 = vadd.f32 %v1602, %v1603
  %v1605 = vsel %vm164, %v1513, 0.0
  %v1606 = vadd.f32 %v1604, %v1605
  %v1607 = vsel %vm164, %v1514, 0.0
  %v1608 = vadd.f32 %v1606, %v1607
  %v1609 = vsel %vm164, %v1515, 0.0
  %v1610 = vadd.f32 %v1608, %v1609
  %v1611 = vsel %vm164, %v1516, 0.0
  %v1612 = vadd.f32 %v1610, %v1611
  %v1613 = vsel %vm164, %v1517, 0.0
  %v1614 = vadd.f32 %v1612, %v1613
  %v1615 = vsel %vm164, %v1518, 0.0
  %v1616 = vadd.f32 %v1614, %v1615
  %v1617 = vsel %vm164, %v1519, 0.0
  %v1618 = vadd.f32 %v1616, %v1617
  %v1619 = vsel %vm164, %v1520, 0.0
  %v1620 = vadd.f32 %v1618, %v1619
  %v1621 = vsel %vm164, %v1521, 0.0
  %v1622 = vadd.f32 %v1620, %v1621
  %v1623 = vsel %vm164, %v1522, 0.0
  %v1624 = vadd.f32 %v1622, %v1623
  %v1625 = vsel %vm164, %v1523, 0.0
  %v1626 = vadd.f32 %v1624, %v1625
  %v1627 = vsel %vm164, %v1524, 0.0
  %v1628 = vadd.f32 %v1626, %v1627
  %v1629 = vsel %vm164, %v1525, 0.0
  %v1630 = vadd.f32 %v1628, %v1629
  %v1631 = vsel %vm164, %v1526, 0.0
  %v1632 = vadd.f32 %v1630, %v1631
  %v1633 = vsel %vm164, %v1527, 0.0
  %v1634 = vadd.f32 %v1632, %v1633
  %v1635 = vsel %vm164, %v1528, 0.0
  %v1636 = vadd.f32 %v1634, %v1635
  %v1637 = vsel %vm164, %v1529, 0.0
  %v1638 = vadd.f32 %v1636, %v1637
  %v1639 = vsel %vm164, %v1530, 0.0
  %v1640 = vadd.f32 %v1638, %v1639
  %v1641 = vsel %vm164, %v1531, 0.0
  %v1642 = vadd.f32 %v1640, %v1641
  %v1643 = vsel %vm164, %v1532, 0.0
  %v1644 = vadd.f32 %v1642, %v1643
  %v1645 = vsel %vm164, %v1533, 0.0
  %v1646 = vadd.f32 %v1644, %v1645
  %v1647 = vsel %vm164, %v1534, 0.0
  %v1648 = vadd.f32 %v1646, %v1647
  %v1649 = vsel %vm164, %v1535, 0.0
  %v1650 = vadd.f32 %v1648, %v1649
  %v1651 = vsel %vm164, %v1536, 0.0
  %v1652 = vadd.f32 %v1650, %v1651
  %v1653 = vsel %vm164, %v1537, 0.0
  %v1654 = vadd.f32 %v1652, %v1653
  %v1655 = vsel %vm164, %v1538, 0.0
  %v1656 = vadd.f32 %v1654, %v1655
  %v1657 = vsel %vm164, %v1539, 0.0
  %v1658 = vadd.f32 %v1656, %v1657
  %v1659 = vsel %vm164, %v1540, 0.0
  %v1660 = vadd.f32 %v1658, %v1659
  %v1661 = vsel %vm164, %v1541, 0.0
  %v1662 = vadd.f32 %v1660, %v1661
  %v1663 = vsel %vm164, %v1542, 0.0
  %v1664 = vadd.f32 %v1662, %v1663
  %v1665 = vsel %vm164, %v1543, 0.0
  %v1666 = vadd.f32 %v1664, %v1665
  %v1667 = vsel %vm164, %v1544, 0.0
  %v1668 = vadd.f32 %v1666, %v1667
  %v1669 = vsel %vm164, %v1545, 0.0
  %v1670 = vadd.f32 %v1668, %v1669
  %v1671 = vsel %vm164, %v1546, 0.0
  %v1672 = vadd.f32 %v1670, %v1671
  %v1673 = vsel %vm164, %v1547, 0.0
  %v1674 = vadd.f32 %v1672, %v1673
  %v1675 = vrot.slane %v1674, 4
  %v1676 = vadd.f32 %v1674, %v1675
  %v1677 = vrot.slane %v1676, 2
  %v1678 = vadd.f32 %v1676, %v1677
  %v1679 = vrot.slane %v1678, 1
  %v1680 = vadd.f32 %v1678, %v1679
  %v1681 = vadd.f32 %v1220, %v1680
  %v1682 = vmul.f32 %v1484, %v1484
  %v1683 = vmul.f32 %v1485, %v1485
  %v1684 = vmul.f32 %v1486, %v1486
  %v1685 = vmul.f32 %v1487, %v1487
  %v1686 = vmul.f32 %v1488, %v1488
  %v1687 = vmul.f32 %v1489, %v1489
  %v1688 = vmul.f32 %v1490, %v1490
  %v1689 = vmul.f32 %v1491, %v1491
  %v1690 = vmul.f32 %v1492, %v1492
  %v1691 = vmul.f32 %v1493, %v1493
  %v1692 = vmul.f32 %v1494, %v1494
  %v1693 = vmul.f32 %v1495, %v1495
  %v1694 = vmul.f32 %v1496, %v1496
  %v1695 = vmul.f32 %v1497, %v1497
  %v1696 = vmul.f32 %v1498, %v1498
  %v1697 = vmul.f32 %v1499, %v1499
  %v1698 = vmul.f32 %v1500, %v1500
  %v1699 = vmul.f32 %v1501, %v1501
  %v1700 = vmul.f32 %v1502, %v1502
  %v1701 = vmul.f32 %v1503, %v1503
  %v1702 = vmul.f32 %v1504, %v1504
  %v1703 = vmul.f32 %v1505, %v1505
  %v1704 = vmul.f32 %v1506, %v1506
  %v1705 = vmul.f32 %v1507, %v1507
  %v1706 = vmul.f32 %v1508, %v1508
  %v1707 = vmul.f32 %v1509, %v1509
  %v1708 = vmul.f32 %v1510, %v1510
  %v1709 = vmul.f32 %v1511, %v1511
  %v1710 = vmul.f32 %v1512, %v1512
  %v1711 = vmul.f32 %v1513, %v1513
  %v1712 = vmul.f32 %v1514, %v1514
  %v1713 = vmul.f32 %v1515, %v1515
  %v1714 = vmul.f32 %v1516, %v1516
  %v1715 = vmul.f32 %v1517, %v1517
  %v1716 = vmul.f32 %v1518, %v1518
  %v1717 = vmul.f32 %v1519, %v1519
  %v1718 = vmul.f32 %v1520, %v1520
  %v1719 = vmul.f32 %v1521, %v1521
  %v1720 = vmul.f32 %v1522, %v1522
  %v1721 = vmul.f32 %v1523, %v1523
  %v1722 = vmul.f32 %v1524, %v1524
  %v1723 = vmul.f32 %v1525, %v1525
  %v1724 = vmul.f32 %v1526, %v1526
  %v1725 = vmul.f32 %v1527, %v1527
  %v1726 = vmul.f32 %v1528, %v1528
  %v1727 = vmul.f32 %v1529, %v1529
  %v1728 = vmul.f32 %v1530, %v1530
  %v1729 = vmul.f32 %v1531, %v1531
  %v1730 = vmul.f32 %v1532, %v1532
  %v1731 = vmul.f32 %v1533, %v1533
  %v1732 = vmul.f32 %v1534, %v1534
  %v1733 = vmul.f32 %v1535, %v1535
  %v1734 = vmul.f32 %v1536, %v1536
  %v1735 = vmul.f32 %v1537, %v1537
  %v1736 = vmul.f32 %v1538, %v1538
  %v1737 = vmul.f32 %v1539, %v1539
  %v1738 = vmul.f32 %v1540, %v1540
  %v1739 = vmul.f32 %v1541, %v1541
  %v1740 = vmul.f32 %v1542, %v1542
  %v1741 = vmul.f32 %v1543, %v1543
  %v1742 = vmul.f32 %v1544, %v1544
  %v1743 = vmul.f32 %v1545, %v1545
  %v1744 = vmul.f32 %v1546, %v1546
  %v1745 = vmul.f32 %v1547, %v1547
  %v1746 = vsel %vm164, %v1682, 0.0
  %v1747 = vsel %vm164, %v1683, 0.0
  %v1748 = vadd.f32 %v1746, %v1747
  %v1749 = vsel %vm164, %v1684, 0.0
  %v1750 = vadd.f32 %v1748, %v1749
  %v1751 = vsel %vm164, %v1685, 0.0
  %v1752 = vadd.f32 %v1750, %v1751
  %v1753 = vsel %vm164, %v1686, 0.0
  %v1754 = vadd.f32 %v1752, %v1753
  %v1755 = vsel %vm164, %v1687, 0.0
  %v1756 = vadd.f32 %v1754, %v1755
  %v1757 = vsel %vm164, %v1688, 0.0
  %v1758 = vadd.f32 %v1756, %v1757
  %v1759 = vsel %vm164, %v1689, 0.0
  %v1760 = vadd.f32 %v1758, %v1759
  %v1761 = vsel %vm164, %v1690, 0.0
  %v1762 = vadd.f32 %v1760, %v1761
  %v1763 = vsel %vm164, %v1691, 0.0
  %v1764 = vadd.f32 %v1762, %v1763
  %v1765 = vsel %vm164, %v1692, 0.0
  %v1766 = vadd.f32 %v1764, %v1765
  %v1767 = vsel %vm164, %v1693, 0.0
  %v1768 = vadd.f32 %v1766, %v1767
  %v1769 = vsel %vm164, %v1694, 0.0
  %v1770 = vadd.f32 %v1768, %v1769
  %v1771 = vsel %vm164, %v1695, 0.0
  %v1772 = vadd.f32 %v1770, %v1771
  %v1773 = vsel %vm164, %v1696, 0.0
  %v1774 = vadd.f32 %v1772, %v1773
  %v1775 = vsel %vm164, %v1697, 0.0
  %v1776 = vadd.f32 %v1774, %v1775
  %v1777 = vsel %vm164, %v1698, 0.0
  %v1778 = vadd.f32 %v1776, %v1777
  %v1779 = vsel %vm164, %v1699, 0.0
  %v1780 = vadd.f32 %v1778, %v1779
  %v1781 = vsel %vm164, %v1700, 0.0
  %v1782 = vadd.f32 %v1780, %v1781
  %v1783 = vsel %vm164, %v1701, 0.0
  %v1784 = vadd.f32 %v1782, %v1783
  %v1785 = vsel %vm164, %v1702, 0.0
  %v1786 = vadd.f32 %v1784, %v1785
  %v1787 = vsel %vm164, %v1703, 0.0
  %v1788 = vadd.f32 %v1786, %v1787
  %v1789 = vsel %vm164, %v1704, 0.0
  %v1790 = vadd.f32 %v1788, %v1789
  %v1791 = vsel %vm164, %v1705, 0.0
  %v1792 = vadd.f32 %v1790, %v1791
  %v1793 = vsel %vm164, %v1706, 0.0
  %v1794 = vadd.f32 %v1792, %v1793
  %v1795 = vsel %vm164, %v1707, 0.0
  %v1796 = vadd.f32 %v1794, %v1795
  %v1797 = vsel %vm164, %v1708, 0.0
  %v1798 = vadd.f32 %v1796, %v1797
  %v1799 = vsel %vm164, %v1709, 0.0
  %v1800 = vadd.f32 %v1798, %v1799
  %v1801 = vsel %vm164, %v1710, 0.0
  %v1802 = vadd.f32 %v1800, %v1801
  %v1803 = vsel %vm164, %v1711, 0.0
  %v1804 = vadd.f32 %v1802, %v1803
  %v1805 = vsel %vm164, %v1712, 0.0
  %v1806 = vadd.f32 %v1804, %v1805
  %v1807 = vsel %vm164, %v1713, 0.0
  %v1808 = vadd.f32 %v1806, %v1807
  %v1809 = vsel %vm164, %v1714, 0.0
  %v1810 = vadd.f32 %v1808, %v1809
  %v1811 = vsel %vm164, %v1715, 0.0
  %v1812 = vadd.f32 %v1810, %v1811
  %v1813 = vsel %vm164, %v1716, 0.0
  %v1814 = vadd.f32 %v1812, %v1813
  %v1815 = vsel %vm164, %v1717, 0.0
  %v1816 = vadd.f32 %v1814, %v1815
  %v1817 = vsel %vm164, %v1718, 0.0
  %v1818 = vadd.f32 %v1816, %v1817
  %v1819 = vsel %vm164, %v1719, 0.0
  %v1820 = vadd.f32 %v1818, %v1819
  %v1821 = vsel %vm164, %v1720, 0.0
  %v1822 = vadd.f32 %v1820, %v1821
  %v1823 = vsel %vm164, %v1721, 0.0
  %v1824 = vadd.f32 %v1822, %v1823
  %v1825 = vsel %vm164, %v1722, 0.0
  %v1826 = vadd.f32 %v1824, %v1825
  %v1827 = vsel %vm164, %v1723, 0.0
  %v1828 = vadd.f32 %v1826, %v1827
  %v1829 = vsel %vm164, %v1724, 0.0
  %v1830 = vadd.f32 %v1828, %v1829
  %v1831 = vsel %vm164, %v1725, 0.0
  %v1832 = vadd.f32 %v1830, %v1831
  %v1833 = vsel %vm164, %v1726, 0.0
  %v1834 = vadd.f32 %v1832, %v1833
  %v1835 = vsel %vm164, %v1727, 0.0
  %v1836 = vadd.f32 %v1834, %v1835
  %v1837 = vsel %vm164, %v1728, 0.0
  %v1838 = vadd.f32 %v1836, %v1837
  %v1839 = vsel %vm164, %v1729, 0.0
  %v1840 = vadd.f32 %v1838, %v1839
  %v1841 = vsel %vm164, %v1730, 0.0
  %v1842 = vadd.f32 %v1840, %v1841
  %v1843 = vsel %vm164, %v1731, 0.0
  %v1844 = vadd.f32 %v1842, %v1843
  %v1845 = vsel %vm164, %v1732, 0.0
  %v1846 = vadd.f32 %v1844, %v1845
  %v1847 = vsel %vm164, %v1733, 0.0
  %v1848 = vadd.f32 %v1846, %v1847
  %v1849 = vsel %vm164, %v1734, 0.0
  %v1850 = vadd.f32 %v1848, %v1849
  %v1851 = vsel %vm164, %v1735, 0.0
  %v1852 = vadd.f32 %v1850, %v1851
  %v1853 = vsel %vm164, %v1736, 0.0
  %v1854 = vadd.f32 %v1852, %v1853
  %v1855 = vsel %vm164, %v1737, 0.0
  %v1856 = vadd.f32 %v1854, %v1855
  %v1857 = vsel %vm164, %v1738, 0.0
  %v1858 = vadd.f32 %v1856, %v1857
  %v1859 = vsel %vm164, %v1739, 0.0
  %v1860 = vadd.f32 %v1858, %v1859
  %v1861 = vsel %vm164, %v1740, 0.0
  %v1862 = vadd.f32 %v1860, %v1861
  %v1863 = vsel %vm164, %v1741, 0.0
  %v1864 = vadd.f32 %v1862, %v1863
  %v1865 = vsel %vm164, %v1742, 0.0
  %v1866 = vadd.f32 %v1864, %v1865
  %v1867 = vsel %vm164, %v1743, 0.0
  %v1868 = vadd.f32 %v1866, %v1867
  %v1869 = vsel %vm164, %v1744, 0.0
  %v1870 = vadd.f32 %v1868, %v1869
  %v1871 = vsel %vm164, %v1745, 0.0
  %v1872 = vadd.f32 %v1870, %v1871
  %v1873 = vrot.slane %v1872, 4
  %v1874 = vadd.f32 %v1872, %v1873
  %v1875 = vrot.slane %v1874, 2
  %v1876 = vadd.f32 %v1874, %v1875
  %v1877 = vrot.slane %v1876, 1
  %v1878 = vadd.f32 %v1876, %v1877
  %v1879 = vadd.f32 %v1418, %v1878
  %v1880 = vld [vmem:[%s1] sm:$0x1]
  %v1881 = vadd.f32 %v1880, %v1681
  %vm1882 = vcmask 778240
  %1883 = vst.msk [vmem:[%s1] sm:$0x1] %vm1882, %v1881
  %v1884 = vld [vmem:[%s1 + $0x1] sm:$0x1]
  %v1885 = vadd.f32 %v1884, %v1879
  %1886 = vst.msk [vmem:[%s1 + $0x1] sm:$0x1] %vm1882, %v1885
  // Predicated region
  $region10: #{transition_forward.2} parent=0 // pred_check
    _
  $region11: #{transition_forward.2} parent=0 // pred_check_branch
    %1888 = sbr.rel (0) target = $region13
  $region12: #{transition_forward.2} parent=0 // pred_region
    _
  $region13: #{transition_forward.2} parent=0 // pred_fallthru
    _
  // Predicated region
  $region14: #{transition_forward.2} parent=0 // pred_check
    _
  $region15: #{transition_forward.2} parent=0 // pred_check_branch
    %1890 = sbr.rel (0) target = $region17
  $region16: #{transition_forward.2} parent=0 // pred_region
    _
  $region17: #{transition_forward.2} parent=0 // pred_fallthru
    _

// kernel: transition_forward.3
$region0: #{transition_forward.3}
  #allocation0 [shape = 'u32[]', space=smem, size = 0x4, offset = 0x4, fixed_abs, tag = 'smem constant byte address 0x4 - core index']
  #allocation1 [shape = 'u32[144,128]{1,0:T(1,128)}', space=vmem, size = 0x12000, scoped, tag = 'internal scratch']
  #allocation2 [shape = 'bf16[512,96]{1,0:T(8,128)(2,1)}', space=vmem, size = 0x20000, scoped, tag = 'scratch operand']
  %s0 = inlined_call_operand.vmem [shape: bf16[4,512,96], index: 0, kind: input, shape index: {}]
  %s1 = inlined_call_operand.vmem [shape: f32[2,96], index: 1, kind: input, shape index: {}]
  %s2 = inlined_call_operand.vmem [shape: bf16[96,128], index: 2, kind: input, shape index: {}]
  %s3 = inlined_call_operand.hbm [shape: f32[512,128], index: 3, kind: output, shape index: {}]
  %s4 = sld [smem:[#allocation0]]
  $region26: #{transition_forward.3} parent=0
    _
  %s6 = ssub.s32 1, %s4
  %s7 = scalar_select 0, %s6, %s4
  $region1: #{transition_forward.3} parent=0
    #allocation3 [shape = 'u8[262144]{0}', space=vmem, size = 0x40000, scoped, tag = 'output window, operand 0, single buffered']
    #allocation4 [shape = 's32[1]{0}', space=sflag, size = 0x4, scoped, tag = 'scoped memory for transition_forward.3']
    %8 = vsyncpa [#allocation4], 0
    // Predicated region
    $region2: #{transition_forward.3} parent=1 // pred_check
      _
    $region3: #{transition_forward.3} parent=1 // pred_check_branch
      %10 = sbr.rel (0) target = $region5
    $region4: #{transition_forward.3} parent=1 // pred_region
      _
    $region5: #{transition_forward.3} parent=1 // pred_fallthru
      _
    // Predicated region
    $region6: #{transition_forward.3} parent=1 // pred_check
      _
    $region7: #{transition_forward.3} parent=1 // pred_check_branch
      %12 = sbr.rel (0) target = $region9
    $region8: #{transition_forward.3} parent=1 // pred_region
      _
    $region9: #{transition_forward.3} parent=1 // pred_fallthru
      _
    // Predicated region
    $region10: #{transition_forward.3} parent=1 // pred_check
      _
    $region11: #{transition_forward.3} parent=1 // pred_check_branch
      %14 = sbr.rel (0) target = $region13
    $region12: #{transition_forward.3} parent=1 // pred_region
      _
    $region13: #{transition_forward.3} parent=1 // pred_fallthru
      _
    %p16 = scmp.eq.s32.totalorder 0, 0
    // Predicated region
    $region14: #{transition_forward.3} parent=1 // pred_check
      %p17 = pneg %p16
    $region15: #{transition_forward.3} parent=1 // pred_check_branch
      %19 = sbr.rel (%p17) target = $region17
    $region16: #{transition_forward.3} parent=1 // pred_region
      %v20 = vld [vmem:[%s1] sm:$0x1]
      %v21 = vld [vmem:[%s1 + $0x1] sm:$0x1]
      %v22 = vld [vmem:[%s0] sm:$0xf]
      %v23 = vld [vmem:[%s0 + $0x4] sm:$0xf]
      %v24 = vld [vmem:[%s0 + $0x8] sm:$0xf]
      %v25 = vld [vmem:[%s0 + $0xc] sm:$0xf]
      %v26 = vld [vmem:[%s0 + $0x10] sm:$0xf]
      %v27 = vld [vmem:[%s0 + $0x14] sm:$0xf]
      %v28 = vld [vmem:[%s0 + $0x18] sm:$0xf]
      %v29 = vld [vmem:[%s0 + $0x1c] sm:$0xf]
      %v30 = vld [vmem:[%s0 + $0x20] sm:$0xf]
      %v31 = vld [vmem:[%s0 + $0x24] sm:$0xf]
      %v32 = vld [vmem:[%s0 + $0x28] sm:$0xf]
      %v33 = vld [vmem:[%s0 + $0x2c] sm:$0xf]
      %v34 = vld [vmem:[%s0 + $0x30] sm:$0xf]
      %v35 = vld [vmem:[%s0 + $0x34] sm:$0xf]
      %v36 = vld [vmem:[%s0 + $0x38] sm:$0xf]
      %v37 = vld [vmem:[%s0 + $0x3c] sm:$0xf]
      %v38 = vld [vmem:[%s0 + $0x40] sm:$0xf]
      %v39 = vld [vmem:[%s0 + $0x44] sm:$0xf]
      %v40 = vld [vmem:[%s0 + $0x48] sm:$0xf]
      %v41 = vld [vmem:[%s0 + $0x4c] sm:$0xf]
      %v42 = vld [vmem:[%s0 + $0x50] sm:$0xf]
      %v43 = vld [vmem:[%s0 + $0x54] sm:$0xf]
      %v44 = vld [vmem:[%s0 + $0x58] sm:$0xf]
      %v45 = vld [vmem:[%s0 + $0x5c] sm:$0xf]
      %v46 = vld [vmem:[%s0 + $0x60] sm:$0xf]
      %v47 = vld [vmem:[%s0 + $0x64] sm:$0xf]
      %v48 = vld [vmem:[%s0 + $0x68] sm:$0xf]
      %v49 = vld [vmem:[%s0 + $0x6c] sm:$0xf]
      %v50 = vld [vmem:[%s0 + $0x70] sm:$0xf]
      %v51 = vld [vmem:[%s0 + $0x74] sm:$0xf]
      %v52 = vld [vmem:[%s0 + $0x78] sm:$0xf]
      %v53 = vld [vmem:[%s0 + $0x7c] sm:$0xf]
      %v54 = vld [vmem:[%s0 + $0x80] sm:$0xf]
      %v55 = vld [vmem:[%s0 + $0x84] sm:$0xf]
      %v56 = vld [vmem:[%s0 + $0x88] sm:$0xf]
      %v57 = vld [vmem:[%s0 + $0x8c] sm:$0xf]
      %v58 = vld [vmem:[%s0 + $0x90] sm:$0xf]
      %v59 = vld [vmem:[%s0 + $0x94] sm:$0xf]
      %v60 = vld [vmem:[%s0 + $0x98] sm:$0xf]
      %v61 = vld [vmem:[%s0 + $0x9c] sm:$0xf]
      %v62 = vld [vmem:[%s0 + $0xa0] sm:$0xf]
      %v63 = vld [vmem:[%s0 + $0xa4] sm:$0xf]
      %v64 = vld [vmem:[%s0 + $0xa8] sm:$0xf]
      %v65 = vld [vmem:[%s0 + $0xac] sm:$0xf]
      %v66 = vld [vmem:[%s0 + $0xb0] sm:$0xf]
      %v67 = vld [vmem:[%s0 + $0xb4] sm:$0xf]
      %v68 = vld [vmem:[%s0 + $0xb8] sm:$0xf]
      %v69 = vld [vmem:[%s0 + $0xbc] sm:$0xf]
      %v70 = vld [vmem:[%s0 + $0xc0] sm:$0xf]
      %v71 = vld [vmem:[%s0 + $0xc4] sm:$0xf]
      %v72 = vld [vmem:[%s0 + $0xc8] sm:$0xf]
      %v73 = vld [vmem:[%s0 + $0xcc] sm:$0xf]
      %v74 = vld [vmem:[%s0 + $0xd0] sm:$0xf]
      %v75 = vld [vmem:[%s0 + $0xd4] sm:$0xf]
      %v76 = vld [vmem:[%s0 + $0xd8] sm:$0xf]
      %v77 = vld [vmem:[%s0 + $0xdc] sm:$0xf]
      %v78 = vld [vmem:[%s0 + $0xe0] sm:$0xf]
      %v79 = vld [vmem:[%s0 + $0xe4] sm:$0xf]
      %v80 = vld [vmem:[%s0 + $0xe8] sm:$0xf]
      %v81 = vld [vmem:[%s0 + $0xec] sm:$0xf]
      %v82 = vld [vmem:[%s0 + $0xf0] sm:$0xf]
      %v83 = vld [vmem:[%s0 + $0xf4] sm:$0xf]
      %v84 = vld [vmem:[%s0 + $0xf8] sm:$0xf]
      %v85 = vld [vmem:[%s0 + $0xfc] sm:$0xf]
      %v86 = vunpack.c.l.bf16 %v22
      %v87 = vunpack.c.l.bf16 %v23
      %v88 = vunpack.c.l.bf16 %v24
      %v89 = vunpack.c.l.bf16 %v25
      %v90 = vunpack.c.l.bf16 %v26
      %v91 = vunpack.c.l.bf16 %v27
      %v92 = vunpack.c.l.bf16 %v28
      %v93 = vunpack.c.l.bf16 %v29
      %v94 = vunpack.c.l.bf16 %v30
      %v95 = vunpack.c.l.bf16 %v31
      %v96 = vunpack.c.l.bf16 %v32
      %v97 = vunpack.c.l.bf16 %v33
      %v98 = vunpack.c.l.bf16 %v34
      %v99 = vunpack.c.l.bf16 %v35
      %v100 = vunpack.c.l.bf16 %v36
      %v101 = vunpack.c.l.bf16 %v37
      %v102 = vunpack.c.l.bf16 %v38
      %v103 = vunpack.c.l.bf16 %v39
      %v104 = vunpack.c.l.bf16 %v40
      %v105 = vunpack.c.l.bf16 %v41
      %v106 = vunpack.c.l.bf16 %v42
      %v107 = vunpack.c.l.bf16 %v43
      %v108 = vunpack.c.l.bf16 %v44
      %v109 = vunpack.c.l.bf16 %v45
      %v110 = vunpack.c.l.bf16 %v46
      %v111 = vunpack.c.l.bf16 %v47
      %v112 = vunpack.c.l.bf16 %v48
      %v113 = vunpack.c.l.bf16 %v49
      %v114 = vunpack.c.l.bf16 %v50
      %v115 = vunpack.c.l.bf16 %v51
      %v116 = vunpack.c.l.bf16 %v52
      %v117 = vunpack.c.l.bf16 %v53
      %v118 = vunpack.c.l.bf16 %v54
      %v119 = vunpack.c.l.bf16 %v55
      %v120 = vunpack.c.l.bf16 %v56
      %v121 = vunpack.c.l.bf16 %v57
      %v122 = vunpack.c.l.bf16 %v58
      %v123 = vunpack.c.l.bf16 %v59
      %v124 = vunpack.c.l.bf16 %v60
      %v125 = vunpack.c.l.bf16 %v61
      %v126 = vunpack.c.l.bf16 %v62
      %v127 = vunpack.c.l.bf16 %v63
      %v128 = vunpack.c.l.bf16 %v64
      %v129 = vunpack.c.l.bf16 %v65
      %v130 = vunpack.c.l.bf16 %v66
      %v131 = vunpack.c.l.bf16 %v67
      %v132 = vunpack.c.l.bf16 %v68
      %v133 = vunpack.c.l.bf16 %v69
      %v134 = vunpack.c.l.bf16 %v70
      %v135 = vunpack.c.l.bf16 %v71
      %v136 = vunpack.c.l.bf16 %v72
      %v137 = vunpack.c.l.bf16 %v73
      %v138 = vunpack.c.l.bf16 %v74
      %v139 = vunpack.c.l.bf16 %v75
      %v140 = vunpack.c.l.bf16 %v76
      %v141 = vunpack.c.l.bf16 %v77
      %v142 = vunpack.c.l.bf16 %v78
      %v143 = vunpack.c.l.bf16 %v79
      %v144 = vunpack.c.l.bf16 %v80
      %v145 = vunpack.c.l.bf16 %v81
      %v146 = vunpack.c.l.bf16 %v82
      %v147 = vunpack.c.l.bf16 %v83
      %v148 = vunpack.c.l.bf16 %v84
      %v149 = vunpack.c.l.bf16 %v85
      %v150 = vlaneseq
      %v151 = vshrl.u32 %v150, 7
      %v152 = vsub.s32 0, %v151
      %v153 = vrot.slane %v20, %v152
      %v154 = vmul.f32 %v86, %v153
      %v155 = vmul.f32 %v87, %v153
      %v156 = vmul.f32 %v88, %v153
      %v157 = vmul.f32 %v89, %v153
      %v158 = vmul.f32 %v90, %v153
      %v159 = vmul.f32 %v91, %v153
      %v160 = vmul.f32 %v92, %v153
      %v161 = vmul.f32 %v93, %v153
      %v162 = vmul.f32 %v94, %v153
      %v163 = vmul.f32 %v95, %v153
      %v164 = vmul.f32 %v96, %v153
      %v165 = vmul.f32 %v97, %v153
      %v166 = vmul.f32 %v98, %v153
      %v167 = vmul.f32 %v99, %v153
      %v168 = vmul.f32 %v100, %v153
      %v169 = vmul.f32 %v101, %v153
      %v170 = vmul.f32 %v102, %v153
      %v171 = vmul.f32 %v103, %v153
      %v172 = vmul.f32 %v104, %v153
      %v173 = vmul.f32 %v105, %v153
      %v174 = vmul.f32 %v106, %v153
      %v175 = vmul.f32 %v107, %v153
      %v176 = vmul.f32 %v108, %v153
      %v177 = vmul.f32 %v109, %v153
      %v178 = vmul.f32 %v110, %v153
      %v179 = vmul.f32 %v111, %v153
      %v180 = vmul.f32 %v112, %v153
      %v181 = vmul.f32 %v113, %v153
      %v182 = vmul.f32 %v114, %v153
      %v183 = vmul.f32 %v115, %v153
      %v184 = vmul.f32 %v116, %v153
      %v185 = vmul.f32 %v117, %v153
      %v186 = vmul.f32 %v118, %v153
      %v187 = vmul.f32 %v119, %v153
      %v188 = vmul.f32 %v120, %v153
      %v189 = vmul.f32 %v121, %v153
      %v190 = vmul.f32 %v122, %v153
      %v191 = vmul.f32 %v123, %v153
      %v192 = vmul.f32 %v124, %v153
      %v193 = vmul.f32 %v125, %v153
      %v194 = vmul.f32 %v126, %v153
      %v195 = vmul.f32 %v127, %v153
      %v196 = vmul.f32 %v128, %v153
      %v197 = vmul.f32 %v129, %v153
      %v198 = vmul.f32 %v130, %v153
      %v199 = vmul.f32 %v131, %v153
      %v200 = vmul.f32 %v132, %v153
      %v201 = vmul.f32 %v133, %v153
      %v202 = vmul.f32 %v134, %v153
      %v203 = vmul.f32 %v135, %v153
      %v204 = vmul.f32 %v136, %v153
      %v205 = vmul.f32 %v137, %v153
      %v206 = vmul.f32 %v138, %v153
      %v207 = vmul.f32 %v139, %v153
      %v208 = vmul.f32 %v140, %v153
      %v209 = vmul.f32 %v141, %v153
      %v210 = vmul.f32 %v142, %v153
      %v211 = vmul.f32 %v143, %v153
      %v212 = vmul.f32 %v144, %v153
      %v213 = vmul.f32 %v145, %v153
      %v214 = vmul.f32 %v146, %v153
      %v215 = vmul.f32 %v147, %v153
      %v216 = vmul.f32 %v148, %v153
      %v217 = vmul.f32 %v149, %v153
      %v218 = vlaneseq
      %v219 = vshrl.u32 %v218, 7
      %v220 = vsub.s32 0, %v219
      %v221 = vrot.slane %v21, %v220
      %v222 = vadd.f32 %v154, %v221
      %v223 = vadd.f32 %v155, %v221
      %v224 = vadd.f32 %v156, %v221
      %v225 = vadd.f32 %v157, %v221
      %v226 = vadd.f32 %v158, %v221
      %v227 = vadd.f32 %v159, %v221
      %v228 = vadd.f32 %v160, %v221
      %v229 = vadd.f32 %v161, %v221
      %v230 = vadd.f32 %v162, %v221
      %v231 = vadd.f32 %v163, %v221
      %v232 = vadd.f32 %v164, %v221
      %v233 = vadd.f32 %v165, %v221
      %v234 = vadd.f32 %v166, %v221
      %v235 = vadd.f32 %v167, %v221
      %v236 = vadd.f32 %v168, %v221
      %v237 = vadd.f32 %v169, %v221
      %v238 = vadd.f32 %v170, %v221
      %v239 = vadd.f32 %v171, %v221
      %v240 = vadd.f32 %v172, %v221
      %v241 = vadd.f32 %v173, %v221
      %v242 = vadd.f32 %v174, %v221
      %v243 = vadd.f32 %v175, %v221
      %v244 = vadd.f32 %v176, %v221
      %v245 = vadd.f32 %v177, %v221
      %v246 = vadd.f32 %v178, %v221
      %v247 = vadd.f32 %v179, %v221
      %v248 = vadd.f32 %v180, %v221
      %v249 = vadd.f32 %v181, %v221
      %v250 = vadd.f32 %v182, %v221
      %v251 = vadd.f32 %v183, %v221
      %v252 = vadd.f32 %v184, %v221
      %v253 = vadd.f32 %v185, %v221
      %v254 = vadd.f32 %v186, %v221
      %v255 = vadd.f32 %v187, %v221
      %v256 = vadd.f32 %v188, %v221
      %v257 = vadd.f32 %v189, %v221
      %v258 = vadd.f32 %v190, %v221
      %v259 = vadd.f32 %v191, %v221
      %v260 = vadd.f32 %v192, %v221
      %v261 = vadd.f32 %v193, %v221
      %v262 = vadd.f32 %v194, %v221
      %v263 = vadd.f32 %v195, %v221
      %v264 = vadd.f32 %v196, %v221
      %v265 = vadd.f32 %v197, %v221
      %v266 = vadd.f32 %v198, %v221
      %v267 = vadd.f32 %v199, %v221
      %v268 = vadd.f32 %v200, %v221
      %v269 = vadd.f32 %v201, %v221
      %v270 = vadd.f32 %v202, %v221
      %v271 = vadd.f32 %v203, %v221
      %v272 = vadd.f32 %v204, %v221
      %v273 = vadd.f32 %v205, %v221
      %v274 = vadd.f32 %v206, %v221
      %v275 = vadd.f32 %v207, %v221
      %v276 = vadd.f32 %v208, %v221
      %v277 = vadd.f32 %v209, %v221
      %v278 = vadd.f32 %v210, %v221
      %v279 = vadd.f32 %v211, %v221
      %v280 = vadd.f32 %v212, %v221
      %v281 = vadd.f32 %v213, %v221
      %v282 = vadd.f32 %v214, %v221
      %v283 = vadd.f32 %v215, %v221
      %v284 = vadd.f32 %v216, %v221
      %v285 = vadd.f32 %v217, %v221
      %v286 = vmax.f32 %v222, 0.0
      %v287 = vmax.f32 %v223, 0.0
      %v288 = vmax.f32 %v224, 0.0
      %v289 = vmax.f32 %v225, 0.0
      %v290 = vmax.f32 %v226, 0.0
      %v291 = vmax.f32 %v227, 0.0
      %v292 = vmax.f32 %v228, 0.0
      %v293 = vmax.f32 %v229, 0.0
      %v294 = vmax.f32 %v230, 0.0
      %v295 = vmax.f32 %v231, 0.0
      %v296 = vmax.f32 %v232, 0.0
      %v297 = vmax.f32 %v233, 0.0
      %v298 = vmax.f32 %v234, 0.0
      %v299 = vmax.f32 %v235, 0.0
      %v300 = vmax.f32 %v236, 0.0
      %v301 = vmax.f32 %v237, 0.0
      %v302 = vmax.f32 %v238, 0.0
      %v303 = vmax.f32 %v239, 0.0
      %v304 = vmax.f32 %v240, 0.0
      %v305 = vmax.f32 %v241, 0.0
      %v306 = vmax.f32 %v242, 0.0
      %v307 = vmax.f32 %v243, 0.0
      %v308 = vmax.f32 %v244, 0.0
      %v309 = vmax.f32 %v245, 0.0
      %v310 = vmax.f32 %v246, 0.0
      %v311 = vmax.f32 %v247, 0.0
      %v312 = vmax.f32 %v248, 0.0
      %v313 = vmax.f32 %v249, 0.0
      %v314 = vmax.f32 %v250, 0.0
      %v315 = vmax.f32 %v251, 0.0
      %v316 = vmax.f32 %v252, 0.0
      %v317 = vmax.f32 %v253, 0.0
      %v318 = vmax.f32 %v254, 0.0
      %v319 = vmax.f32 %v255, 0.0
      %v320 = vmax.f32 %v256, 0.0
      %v321 = vmax.f32 %v257, 0.0
      %v322 = vmax.f32 %v258, 0.0
      %v323 = vmax.f32 %v259, 0.0
      %v324 = vmax.f32 %v260, 0.0
      %v325 = vmax.f32 %v261, 0.0
      %v326 = vmax.f32 %v262, 0.0
      %v327 = vmax.f32 %v263, 0.0
      %v328 = vmax.f32 %v264, 0.0
      %v329 = vmax.f32 %v265, 0.0
      %v330 = vmax.f32 %v266, 0.0
      %v331 = vmax.f32 %v267, 0.0
      %v332 = vmax.f32 %v268, 0.0
      %v333 = vmax.f32 %v269, 0.0
      %v334 = vmax.f32 %v270, 0.0
      %v335 = vmax.f32 %v271, 0.0
      %v336 = vmax.f32 %v272, 0.0
      %v337 = vmax.f32 %v273, 0.0
      %v338 = vmax.f32 %v274, 0.0
      %v339 = vmax.f32 %v275, 0.0
      %v340 = vmax.f32 %v276, 0.0
      %v341 = vmax.f32 %v277, 0.0
      %v342 = vmax.f32 %v278, 0.0
      %v343 = vmax.f32 %v279, 0.0
      %v344 = vmax.f32 %v280, 0.0
      %v345 = vmax.f32 %v281, 0.0
      %v346 = vmax.f32 %v282, 0.0
      %v347 = vmax.f32 %v283, 0.0
      %v348 = vmax.f32 %v284, 0.0
      %v349 = vmax.f32 %v285, 0.0
      %s350 = scalar_lea.vmem %s0, 256
      %v351 = vld [vmem:[%s350] sm:$0xf]
      %v352 = vld [vmem:[%s350 + $0x4] sm:$0xf]
      %v353 = vld [vmem:[%s350 + $0x8] sm:$0xf]
      %v354 = vld [vmem:[%s350 + $0xc] sm:$0xf]
      %v355 = vld [vmem:[%s350 + $0x10] sm:$0xf]
      %v356 = vld [vmem:[%s350 + $0x14] sm:$0xf]
      %v357 = vld [vmem:[%s350 + $0x18] sm:$0xf]
      %v358 = vld [vmem:[%s350 + $0x1c] sm:$0xf]
      %v359 = vld [vmem:[%s350 + $0x20] sm:$0xf]
      %v360 = vld [vmem:[%s350 + $0x24] sm:$0xf]
      %v361 = vld [vmem:[%s350 + $0x28] sm:$0xf]
      %v362 = vld [vmem:[%s350 + $0x2c] sm:$0xf]
      %v363 = vld [vmem:[%s350 + $0x30] sm:$0xf]
      %v364 = vld [vmem:[%s350 + $0x34] sm:$0xf]
      %v365 = vld [vmem:[%s350 + $0x38] sm:$0xf]
      %v366 = vld [vmem:[%s350 + $0x3c] sm:$0xf]
      %v367 = vld [vmem:[%s350 + $0x40] sm:$0xf]
      %v368 = vld [vmem:[%s350 + $0x44] sm:$0xf]
      %v369 = vld [vmem:[%s350 + $0x48] sm:$0xf]
      %v370 = vld [vmem:[%s350 + $0x4c] sm:$0xf]
      %v371 = vld [vmem:[%s350 + $0x50] sm:$0xf]
      %v372 = vld [vmem:[%s350 + $0x54] sm:$0xf]
      %v373 = vld [vmem:[%s350 + $0x58] sm:$0xf]
      %v374 = vld [vmem:[%s350 + $0x5c] sm:$0xf]
      %v375 = vld [vmem:[%s350 + $0x60] sm:$0xf]
      %v376 = vld [vmem:[%s350 + $0x64] sm:$0xf]
      %v377 = vld [vmem:[%s350 + $0x68] sm:$0xf]
      %v378 = vld [vmem:[%s350 + $0x6c] sm:$0xf]
      %v379 = vld [vmem:[%s350 + $0x70] sm:$0xf]
      %v380 = vld [vmem:[%s350 + $0x74] sm:$0xf]
      %v381 = vld [vmem:[%s350 + $0x78] sm:$0xf]
      %v382 = vld [vmem:[%s350 + $0x7c] sm:$0xf]
      %v383 = vld [vmem:[%s350 + $0x80] sm:$0xf]
      %v384 = vld [vmem:[%s350 + $0x84] sm:$0xf]
      %v385 = vld [vmem:[%s350 + $0x88] sm:$0xf]
      %v386 = vld [vmem:[%s350 + $0x8c] sm:$0xf]
      %v387 = vld [vmem:[%s350 + $0x90] sm:$0xf]
      %v388 = vld [vmem:[%s350 + $0x94] sm:$0xf]
      %v389 = vld [vmem:[%s350 + $0x98] sm:$0xf]
      %v390 = vld [vmem:[%s350 + $0x9c] sm:$0xf]
      %v391 = vld [vmem:[%s350 + $0xa0] sm:$0xf]
      %v392 = vld [vmem:[%s350 + $0xa4] sm:$0xf]
      %v393 = vld [vmem:[%s350 + $0xa8] sm:$0xf]
      %v394 = vld [vmem:[%s350 + $0xac] sm:$0xf]
      %v395 = vld [vmem:[%s350 + $0xb0] sm:$0xf]
      %v396 = vld [vmem:[%s350 + $0xb4] sm:$0xf]
      %v397 = vld [vmem:[%s350 + $0xb8] sm:$0xf]
      %v398 = vld [vmem:[%s350 + $0xbc] sm:$0xf]
      %v399 = vld [vmem:[%s350 + $0xc0] sm:$0xf]
      %v400 = vld [vmem:[%s350 + $0xc4] sm:$0xf]
      %v401 = vld [vmem:[%s350 + $0xc8] sm:$0xf]
      %v402 = vld [vmem:[%s350 + $0xcc] sm:$0xf]
      %v403 = vld [vmem:[%s350 + $0xd0] sm:$0xf]
      %v404 = vld [vmem:[%s350 + $0xd4] sm:$0xf]
      %v405 = vld [vmem:[%s350 + $0xd8] sm:$0xf]
      %v406 = vld [vmem:[%s350 + $0xdc] sm:$0xf]
      %v407 = vld [vmem:[%s350 + $0xe0] sm:$0xf]
      %v408 = vld [vmem:[%s350 + $0xe4] sm:$0xf]
      %v409 = vld [vmem:[%s350 + $0xe8] sm:$0xf]
      %v410 = vld [vmem:[%s350 + $0xec] sm:$0xf]
      %v411 = vld [vmem:[%s350 + $0xf0] sm:$0xf]
      %v412 = vld [vmem:[%s350 + $0xf4] sm:$0xf]
      %v413 = vld [vmem:[%s350 + $0xf8] sm:$0xf]
      %v414 = vld [vmem:[%s350 + $0xfc] sm:$0xf]
      %v415 = vunpack.c.l.bf16 %v351
      %v416 = vunpack.c.l.bf16 %v352
      %v417 = vunpack.c.l.bf16 %v353
      %v418 = vunpack.c.l.bf16 %v354
      %v419 = vunpack.c.l.bf16 %v355
      %v420 = vunpack.c.l.bf16 %v356
      %v421 = vunpack.c.l.bf16 %v357
      %v422 = vunpack.c.l.bf16 %v358
      %v423 = vunpack.c.l.bf16 %v359
      %v424 = vunpack.c.l.bf16 %v360
      %v425 = vunpack.c.l.bf16 %v361
      %v426 = vunpack.c.l.bf16 %v362
      %v427 = vunpack.c.l.bf16 %v363
      %v428 = vunpack.c.l.bf16 %v364
      %v429 = vunpack.c.l.bf16 %v365
      %v430 = vunpack.c.l.bf16 %v366
      %v431 = vunpack.c.l.bf16 %v367
      %v432 = vunpack.c.l.bf16 %v368
      %v433 = vunpack.c.l.bf16 %v369
      %v434 = vunpack.c.l.bf16 %v370
      %v435 = vunpack.c.l.bf16 %v371
      %v436 = vunpack.c.l.bf16 %v372
      %v437 = vunpack.c.l.bf16 %v373
      %v438 = vunpack.c.l.bf16 %v374
      %v439 = vunpack.c.l.bf16 %v375
      %v440 = vunpack.c.l.bf16 %v376
      %v441 = vunpack.c.l.bf16 %v377
      %v442 = vunpack.c.l.bf16 %v378
      %v443 = vunpack.c.l.bf16 %v379
      %v444 = vunpack.c.l.bf16 %v380
      %v445 = vunpack.c.l.bf16 %v381
      %v446 = vunpack.c.l.bf16 %v382
      %v447 = vunpack.c.l.bf16 %v383
      %v448 = vunpack.c.l.bf16 %v384
      %v449 = vunpack.c.l.bf16 %v385
      %v450 = vunpack.c.l.bf16 %v386
      %v451 = vunpack.c.l.bf16 %v387
      %v452 = vunpack.c.l.bf16 %v388
      %v453 = vunpack.c.l.bf16 %v389
      %v454 = vunpack.c.l.bf16 %v390
      %v455 = vunpack.c.l.bf16 %v391
      %v456 = vunpack.c.l.bf16 %v392
      %v457 = vunpack.c.l.bf16 %v393
      %v458 = vunpack.c.l.bf16 %v394
      %v459 = vunpack.c.l.bf16 %v395
      %v460 = vunpack.c.l.bf16 %v396
      %v461 = vunpack.c.l.bf16 %v397
      %v462 = vunpack.c.l.bf16 %v398
      %v463 = vunpack.c.l.bf16 %v399
      %v464 = vunpack.c.l.bf16 %v400
      %v465 = vunpack.c.l.bf16 %v401
      %v466 = vunpack.c.l.bf16 %v402
      %v467 = vunpack.c.l.bf16 %v403
      %v468 = vunpack.c.l.bf16 %v404
      %v469 = vunpack.c.l.bf16 %v405
      %v470 = vunpack.c.l.bf16 %v406
      %v471 = vunpack.c.l.bf16 %v407
      %v472 = vunpack.c.l.bf16 %v408
      %v473 = vunpack.c.l.bf16 %v409
      %v474 = vunpack.c.l.bf16 %v410
      %v475 = vunpack.c.l.bf16 %v411
      %v476 = vunpack.c.l.bf16 %v412
      %v477 = vunpack.c.l.bf16 %v413
      %v478 = vunpack.c.l.bf16 %v414
      %v479 = vmul.f32 %v415, %v153
      %v480 = vmul.f32 %v416, %v153
      %v481 = vmul.f32 %v417, %v153
      %v482 = vmul.f32 %v418, %v153
      %v483 = vmul.f32 %v419, %v153
      %v484 = vmul.f32 %v420, %v153
      %v485 = vmul.f32 %v421, %v153
      %v486 = vmul.f32 %v422, %v153
      %v487 = vmul.f32 %v423, %v153
      %v488 = vmul.f32 %v424, %v153
      %v489 = vmul.f32 %v425, %v153
      %v490 = vmul.f32 %v426, %v153
      %v491 = vmul.f32 %v427, %v153
      %v492 = vmul.f32 %v428, %v153
      %v493 = vmul.f32 %v429, %v153
      %v494 = vmul.f32 %v430, %v153
      %v495 = vmul.f32 %v431, %v153
      %v496 = vmul.f32 %v432, %v153
      %v497 = vmul.f32 %v433, %v153
      %v498 = vmul.f32 %v434, %v153
      %v499 = vmul.f32 %v435, %v153
      %v500 = vmul.f32 %v436, %v153
      %v501 = vmul.f32 %v437, %v153
      %v502 = vmul.f32 %v438, %v153
      %v503 = vmul.f32 %v439, %v153
      %v504 = vmul.f32 %v440, %v153
      %v505 = vmul.f32 %v441, %v153
      %v506 = vmul.f32 %v442, %v153
      %v507 = vmul.f32 %v443, %v153
      %v508 = vmul.f32 %v444, %v153
      %v509 = vmul.f32 %v445, %v153
      %v510 = vmul.f32 %v446, %v153
      %v511 = vmul.f32 %v447, %v153
      %v512 = vmul.f32 %v448, %v153
      %v513 = vmul.f32 %v449, %v153
      %v514 = vmul.f32 %v450, %v153
      %v515 = vmul.f32 %v451, %v153
      %v516 = vmul.f32 %v452, %v153
      %v517 = vmul.f32 %v453, %v153
      %v518 = vmul.f32 %v454, %v153
      %v519 = vmul.f32 %v455, %v153
      %v520 = vmul.f32 %v456, %v153
      %v521 = vmul.f32 %v457, %v153
      %v522 = vmul.f32 %v458, %v153
      %v523 = vmul.f32 %v459, %v153
      %v524 = vmul.f32 %v460, %v153
      %v525 = vmul.f32 %v461, %v153
      %v526 = vmul.f32 %v462, %v153
      %v527 = vmul.f32 %v463, %v153
      %v528 = vmul.f32 %v464, %v153
      %v529 = vmul.f32 %v465, %v153
      %v530 = vmul.f32 %v466, %v153
      %v531 = vmul.f32 %v467, %v153
      %v532 = vmul.f32 %v468, %v153
      %v533 = vmul.f32 %v469, %v153
      %v534 = vmul.f32 %v470, %v153
      %v535 = vmul.f32 %v471, %v153
      %v536 = vmul.f32 %v472, %v153
      %v537 = vmul.f32 %v473, %v153
      %v538 = vmul.f32 %v474, %v153
      %v539 = vmul.f32 %v475, %v153
      %v540 = vmul.f32 %v476, %v153
      %v541 = vmul.f32 %v477, %v153
      %v542 = vmul.f32 %v478, %v153
      %v543 = vadd.f32 %v479, %v221
      %v544 = vadd.f32 %v480, %v221
      %v545 = vadd.f32 %v481, %v221
      %v546 = vadd.f32 %v482, %v221
      %v547 = vadd.f32 %v483, %v221
      %v548 = vadd.f32 %v484, %v221
      %v549 = vadd.f32 %v485, %v221
      %v550 = vadd.f32 %v486, %v221
      %v551 = vadd.f32 %v487, %v221
      %v552 = vadd.f32 %v488, %v221
      %v553 = vadd.f32 %v489, %v221
      %v554 = vadd.f32 %v490, %v221
      %v555 = vadd.f32 %v491, %v221
      %v556 = vadd.f32 %v492, %v221
      %v557 = vadd.f32 %v493, %v221
      %v558 = vadd.f32 %v494, %v221
      %v559 = vadd.f32 %v495, %v221
      %v560 = vadd.f32 %v496, %v221
      %v561 = vadd.f32 %v497, %v221
      %v562 = vadd.f32 %v498, %v221
      %v563 = vadd.f32 %v499, %v221
      %v564 = vadd.f32 %v500, %v221
      %v565 = vadd.f32 %v501, %v221
      %v566 = vadd.f32 %v502, %v221
      %v567 = vadd.f32 %v503, %v221
      %v568 = vadd.f32 %v504, %v221
      %v569 = vadd.f32 %v505, %v221
      %v570 = vadd.f32 %v506, %v221
      %v571 = vadd.f32 %v507, %v221
      %v572 = vadd.f32 %v508, %v221
      %v573 = vadd.f32 %v509, %v221
      %v574 = vadd.f32 %v510, %v221
      %v575 = vadd.f32 %v511, %v221
      %v576 = vadd.f32 %v512, %v221
      %v577 = vadd.f32 %v513, %v221
      %v578 = vadd.f32 %v514, %v221
      %v579 = vadd.f32 %v515, %v221
      %v580 = vadd.f32 %v516, %v221
      %v581 = vadd.f32 %v517, %v221
      %v582 = vadd.f32 %v518, %v221
      %v583 = vadd.f32 %v519, %v221
      %v584 = vadd.f32 %v520, %v221
      %v585 = vadd.f32 %v521, %v221
      %v586 = vadd.f32 %v522, %v221
      %v587 = vadd.f32 %v523, %v221
      %v588 = vadd.f32 %v524, %v221
      %v589 = vadd.f32 %v525, %v221
      %v590 = vadd.f32 %v526, %v221
      %v591 = vadd.f32 %v527, %v221
      %v592 = vadd.f32 %v528, %v221
      %v593 = vadd.f32 %v529, %v221
      %v594 = vadd.f32 %v530, %v221
      %v595 = vadd.f32 %v531, %v221
      %v596 = vadd.f32 %v532, %v221
      %v597 = vadd.f32 %v533, %v221
      %v598 = vadd.f32 %v534, %v221
      %v599 = vadd.f32 %v535, %v221
      %v600 = vadd.f32 %v536, %v221
      %v601 = vadd.f32 %v537, %v221
      %v602 = vadd.f32 %v538, %v221
      %v603 = vadd.f32 %v539, %v221
      %v604 = vadd.f32 %v540, %v221
      %v605 = vadd.f32 %v541, %v221
      %v606 = vadd.f32 %v542, %v221
      %v607 = vmax.f32 %v543, 0.0
      %v608 = vmax.f32 %v544, 0.0
      %v609 = vmax.f32 %v545, 0.0
      %v610 = vmax.f32 %v546, 0.0
      %v611 = vmax.f32 %v547, 0.0
      %v612 = vmax.f32 %v548, 0.0
      %v613 = vmax.f32 %v549, 0.0
      %v614 = vmax.f32 %v550, 0.0
      %v615 = vmax.f32 %v551, 0.0
      %v616 = vmax.f32 %v552, 0.0
      %v617 = vmax.f32 %v553, 0.0
      %v618 = vmax.f32 %v554, 0.0
      %v619 = vmax.f32 %v555, 0.0
      %v620 = vmax.f32 %v556, 0.0
      %v621 = vmax.f32 %v557, 0.0
      %v622 = vmax.f32 %v558, 0.0
      %v623 = vmax.f32 %v559, 0.0
      %v624 = vmax.f32 %v560, 0.0
      %v625 = vmax.f32 %v561, 0.0
      %v626 = vmax.f32 %v562, 0.0
      %v627 = vmax.f32 %v563, 0.0
      %v628 = vmax.f32 %v564, 0.0
      %v629 = vmax.f32 %v565, 0.0
      %v630 = vmax.f32 %v566, 0.0
      %v631 = vmax.f32 %v567, 0.0
      %v632 = vmax.f32 %v568, 0.0
      %v633 = vmax.f32 %v569, 0.0
      %v634 = vmax.f32 %v570, 0.0
      %v635 = vmax.f32 %v571, 0.0
      %v636 = vmax.f32 %v572, 0.0
      %v637 = vmax.f32 %v573, 0.0
      %v638 = vmax.f32 %v574, 0.0
      %v639 = vmax.f32 %v575, 0.0
      %v640 = vmax.f32 %v576, 0.0
      %v641 = vmax.f32 %v577, 0.0
      %v642 = vmax.f32 %v578, 0.0
      %v643 = vmax.f32 %v579, 0.0
      %v644 = vmax.f32 %v580, 0.0
      %v645 = vmax.f32 %v581, 0.0
      %v646 = vmax.f32 %v582, 0.0
      %v647 = vmax.f32 %v583, 0.0
      %v648 = vmax.f32 %v584, 0.0
      %v649 = vmax.f32 %v585, 0.0
      %v650 = vmax.f32 %v586, 0.0
      %v651 = vmax.f32 %v587, 0.0
      %v652 = vmax.f32 %v588, 0.0
      %v653 = vmax.f32 %v589, 0.0
      %v654 = vmax.f32 %v590, 0.0
      %v655 = vmax.f32 %v591, 0.0
      %v656 = vmax.f32 %v592, 0.0
      %v657 = vmax.f32 %v593, 0.0
      %v658 = vmax.f32 %v594, 0.0
      %v659 = vmax.f32 %v595, 0.0
      %v660 = vmax.f32 %v596, 0.0
      %v661 = vmax.f32 %v597, 0.0
      %v662 = vmax.f32 %v598, 0.0
      %v663 = vmax.f32 %v599, 0.0
      %v664 = vmax.f32 %v600, 0.0
      %v665 = vmax.f32 %v601, 0.0
      %v666 = vmax.f32 %v602, 0.0
      %v667 = vmax.f32 %v603, 0.0
      %v668 = vmax.f32 %v604, 0.0
      %v669 = vmax.f32 %v605, 0.0
      %v670 = vmax.f32 %v606, 0.0
      %v671 = vadd.f32 %v286, %v607
      %v672 = vadd.f32 %v287, %v608
      %v673 = vadd.f32 %v288, %v609
      %v674 = vadd.f32 %v289, %v610
      %v675 = vadd.f32 %v290, %v611
      %v676 = vadd.f32 %v291, %v612
      %v677 = vadd.f32 %v292, %v613
      %v678 = vadd.f32 %v293, %v614
      %v679 = vadd.f32 %v294, %v615
      %v680 = vadd.f32 %v295, %v616
      %v681 = vadd.f32 %v296, %v617
      %v682 = vadd.f32 %v297, %v618
      %v683 = vadd.f32 %v298, %v619
      %v684 = vadd.f32 %v299, %v620
      %v685 = vadd.f32 %v300, %v621
      %v686 = vadd.f32 %v301, %v622
      %v687 = vadd.f32 %v302, %v623
      %v688 = vadd.f32 %v303, %v624
      %v689 = vadd.f32 %v304, %v625
      %v690 = vadd.f32 %v305, %v626
      %v691 = vadd.f32 %v306, %v627
      %v692 = vadd.f32 %v307, %v628
      %v693 = vadd.f32 %v308, %v629
      %v694 = vadd.f32 %v309, %v630
      %v695 = vadd.f32 %v310, %v631
      %v696 = vadd.f32 %v311, %v632
      %v697 = vadd.f32 %v312, %v633
      %v698 = vadd.f32 %v313, %v634
      %v699 = vadd.f32 %v314, %v635
      %v700 = vadd.f32 %v315, %v636
      %v701 = vadd.f32 %v316, %v637
      %v702 = vadd.f32 %v317, %v638
      %v703 = vadd.f32 %v318, %v639
      %v704 = vadd.f32 %v319, %v640
      %v705 = vadd.f32 %v320, %v641
      %v706 = vadd.f32 %v321, %v642
      %v707 = vadd.f32 %v322, %v643
      %v708 = vadd.f32 %v323, %v644
      %v709 = vadd.f32 %v324, %v645
      %v710 = vadd.f32 %v325, %v646
      %v711 = vadd.f32 %v326, %v647
      %v712 = vadd.f32 %v327, %v648
      %v713 = vadd.f32 %v328, %v649
      %v714 = vadd.f32 %v329, %v650
      %v715 = vadd.f32 %v330, %v651
      %v716 = vadd.f32 %v331, %v652
      %v717 = vadd.f32 %v332, %v653
      %v718 = vadd.f32 %v333, %v654
      %v719 = vadd.f32 %v334, %v655
      %v720 = vadd.f32 %v335, %v656
      %v721 = vadd.f32 %v336, %v657
      %v722 = vadd.f32 %v337, %v658
      %v723 = vadd.f32 %v338, %v659
      %v724 = vadd.f32 %v339, %v660
      %v725 = vadd.f32 %v340, %v661
      %v726 = vadd.f32 %v341, %v662
      %v727 = vadd.f32 %v342, %v663
      %v728 = vadd.f32 %v343, %v664
      %v729 = vadd.f32 %v344, %v665
      %v730 = vadd.f32 %v345, %v666
      %v731 = vadd.f32 %v346, %v667
      %v732 = vadd.f32 %v347, %v668
      %v733 = vadd.f32 %v348, %v669
      %v734 = vadd.f32 %v349, %v670
      %s735 = scalar_lea.vmem %s0, 512
      %v736 = vld [vmem:[%s735] sm:$0xf]
      %v737 = vld [vmem:[%s735 + $0x4] sm:$0xf]
      %v738 = vld [vmem:[%s735 + $0x8] sm:$0xf]
      %v739 = vld [vmem:[%s735 + $0xc] sm:$0xf]
      %v740 = vld [vmem:[%s735 + $0x10] sm:$0xf]
      %v741 = vld [vmem:[%s735 + $0x14] sm:$0xf]
      %v742 = vld [vmem:[%s735 + $0x18] sm:$0xf]
      %v743 = vld [vmem:[%s735 + $0x1c] sm:$0xf]
      %v744 = vld [vmem:[%s735 + $0x20] sm:$0xf]
      %v745 = vld [vmem:[%s735 + $0x24] sm:$0xf]
      %v746 = vld [vmem:[%s735 + $0x28] sm:$0xf]
      %v747 = vld [vmem:[%s735 + $0x2c] sm:$0xf]
      %v748 = vld [vmem:[%s735 + $0x30] sm:$0xf]
      %v749 = vld [vmem:[%s735 + $0x34] sm:$0xf]
      %v750 = vld [vmem:[%s735 + $0x38] sm:$0xf]
      %v751 = vld [vmem:[%s735 + $0x3c] sm:$0xf]
      %v752 = vld [vmem:[%s735 + $0x40] sm:$0xf]
      %v753 = vld [vmem:[%s735 + $0x44] sm:$0xf]
      %v754 = vld [vmem:[%s735 + $0x48] sm:$0xf]
      %v755 = vld [vmem:[%s735 + $0x4c] sm:$0xf]
      %v756 = vld [vmem:[%s735 + $0x50] sm:$0xf]
      %v757 = vld [vmem:[%s735 + $0x54] sm:$0xf]
      %v758 = vld [vmem:[%s735 + $0x58] sm:$0xf]
      %v759 = vld [vmem:[%s735 + $0x5c] sm:$0xf]
      %v760 = vld [vmem:[%s735 + $0x60] sm:$0xf]
      %v761 = vld [vmem:[%s735 + $0x64] sm:$0xf]
      %v762 = vld [vmem:[%s735 + $0x68] sm:$0xf]
      %v763 = vld [vmem:[%s735 + $0x6c] sm:$0xf]
      %v764 = vld [vmem:[%s735 + $0x70] sm:$0xf]
      %v765 = vld [vmem:[%s735 + $0x74] sm:$0xf]
      %v766 = vld [vmem:[%s735 + $0x78] sm:$0xf]
      %v767 = vld [vmem:[%s735 + $0x7c] sm:$0xf]
      %v768 = vld [vmem:[%s735 + $0x80] sm:$0xf]
      %v769 = vld [vmem:[%s735 + $0x84] sm:$0xf]
      %v770 = vld [vmem:[%s735 + $0x88] sm:$0xf]
      %v771 = vld [vmem:[%s735 + $0x8c] sm:$0xf]
      %v772 = vld [vmem:[%s735 + $0x90] sm:$0xf]
      %v773 = vld [vmem:[%s735 + $0x94] sm:$0xf]
      %v774 = vld [vmem:[%s735 + $0x98] sm:$0xf]
      %v775 = vld [vmem:[%s735 + $0x9c] sm:$0xf]
      %v776 = vld [vmem:[%s735 + $0xa0] sm:$0xf]
      %v777 = vld [vmem:[%s735 + $0xa4] sm:$0xf]
      %v778 = vld [vmem:[%s735 + $0xa8] sm:$0xf]
      %v779 = vld [vmem:[%s735 + $0xac] sm:$0xf]
      %v780 = vld [vmem:[%s735 + $0xb0] sm:$0xf]
      %v781 = vld [vmem:[%s735 + $0xb4] sm:$0xf]
      %v782 = vld [vmem:[%s735 + $0xb8] sm:$0xf]
      %v783 = vld [vmem:[%s735 + $0xbc] sm:$0xf]
      %v784 = vld [vmem:[%s735 + $0xc0] sm:$0xf]
      %v785 = vld [vmem:[%s735 + $0xc4] sm:$0xf]
      %v786 = vld [vmem:[%s735 + $0xc8] sm:$0xf]
      %v787 = vld [vmem:[%s735 + $0xcc] sm:$0xf]
      %v788 = vld [vmem:[%s735 + $0xd0] sm:$0xf]
      %v789 = vld [vmem:[%s735 + $0xd4] sm:$0xf]
      %v790 = vld [vmem:[%s735 + $0xd8] sm:$0xf]
      %v791 = vld [vmem:[%s735 + $0xdc] sm:$0xf]
      %v792 = vld [vmem:[%s735 + $0xe0] sm:$0xf]
      %v793 = vld [vmem:[%s735 + $0xe4] sm:$0xf]
      %v794 = vld [vmem:[%s735 + $0xe8] sm:$0xf]
      %v795 = vld [vmem:[%s735 + $0xec] sm:$0xf]
      %v796 = vld [vmem:[%s735 + $0xf0] sm:$0xf]
      %v797 = vld [vmem:[%s735 + $0xf4] sm:$0xf]
      %v798 = vld [vmem:[%s735 + $0xf8] sm:$0xf]
      %v799 = vld [vmem:[%s735 + $0xfc] sm:$0xf]
      %v800 = vunpack.c.l.bf16 %v736
      %v801 = vunpack.c.l.bf16 %v737
      %v802 = vunpack.c.l.bf16 %v738
      %v803 = vunpack.c.l.bf16 %v739
      %v804 = vunpack.c.l.bf16 %v740
      %v805 = vunpack.c.l.bf16 %v741
      %v806 = vunpack.c.l.bf16 %v742
      %v807 = vunpack.c.l.bf16 %v743
      %v808 = vunpack.c.l.bf16 %v744
      %v809 = vunpack.c.l.bf16 %v745
      %v810 = vunpack.c.l.bf16 %v746
      %v811 = vunpack.c.l.bf16 %v747
      %v812 = vunpack.c.l.bf16 %v748
      %v813 = vunpack.c.l.bf16 %v749
      %v814 = vunpack.c.l.bf16 %v750
      %v815 = vunpack.c.l.bf16 %v751
      %v816 = vunpack.c.l.bf16 %v752
      %v817 = vunpack.c.l.bf16 %v753
      %v818 = vunpack.c.l.bf16 %v754
      %v819 = vunpack.c.l.bf16 %v755
      %v820 = vunpack.c.l.bf16 %v756
      %v821 = vunpack.c.l.bf16 %v757
      %v822 = vunpack.c.l.bf16 %v758
      %v823 = vunpack.c.l.bf16 %v759
      %v824 = vunpack.c.l.bf16 %v760
      %v825 = vunpack.c.l.bf16 %v761
      %v826 = vunpack.c.l.bf16 %v762
      %v827 = vunpack.c.l.bf16 %v763
      %v828 = vunpack.c.l.bf16 %v764
      %v829 = vunpack.c.l.bf16 %v765
      %v830 = vunpack.c.l.bf16 %v766
      %v831 = vunpack.c.l.bf16 %v767
      %v832 = vunpack.c.l.bf16 %v768
      %v833 = vunpack.c.l.bf16 %v769
      %v834 = vunpack.c.l.bf16 %v770
      %v835 = vunpack.c.l.bf16 %v771
      %v836 = vunpack.c.l.bf16 %v772
      %v837 = vunpack.c.l.bf16 %v773
      %v838 = vunpack.c.l.bf16 %v774
      %v839 = vunpack.c.l.bf16 %v775
      %v840 = vunpack.c.l.bf16 %v776
      %v841 = vunpack.c.l.bf16 %v777
      %v842 = vunpack.c.l.bf16 %v778
      %v843 = vunpack.c.l.bf16 %v779
      %v844 = vunpack.c.l.bf16 %v780
      %v845 = vunpack.c.l.bf16 %v781
      %v846 = vunpack.c.l.bf16 %v782
      %v847 = vunpack.c.l.bf16 %v783
      %v848 = vunpack.c.l.bf16 %v784
      %v849 = vunpack.c.l.bf16 %v785
      %v850 = vunpack.c.l.bf16 %v786
      %v851 = vunpack.c.l.bf16 %v787
      %v852 = vunpack.c.l.bf16 %v788
      %v853 = vunpack.c.l.bf16 %v789
      %v854 = vunpack.c.l.bf16 %v790
      %v855 = vunpack.c.l.bf16 %v791
      %v856 = vunpack.c.l.bf16 %v792
      %v857 = vunpack.c.l.bf16 %v793
      %v858 = vunpack.c.l.bf16 %v794
      %v859 = vunpack.c.l.bf16 %v795
      %v860 = vunpack.c.l.bf16 %v796
      %v861 = vunpack.c.l.bf16 %v797
      %v862 = vunpack.c.l.bf16 %v798
      %v863 = vunpack.c.l.bf16 %v799
      %v864 = vmul.f32 %v800, %v153
      %v865 = vmul.f32 %v801, %v153
      %v866 = vmul.f32 %v802, %v153
      %v867 = vmul.f32 %v803, %v153
      %v868 = vmul.f32 %v804, %v153
      %v869 = vmul.f32 %v805, %v153
      %v870 = vmul.f32 %v806, %v153
      %v871 = vmul.f32 %v807, %v153
      %v872 = vmul.f32 %v808, %v153
      %v873 = vmul.f32 %v809, %v153
      %v874 = vmul.f32 %v810, %v153
      %v875 = vmul.f32 %v811, %v153
      %v876 = vmul.f32 %v812, %v153
      %v877 = vmul.f32 %v813, %v153
      %v878 = vmul.f32 %v814, %v153
      %v879 = vmul.f32 %v815, %v153
      %v880 = vmul.f32 %v816, %v153
      %v881 = vmul.f32 %v817, %v153
      %v882 = vmul.f32 %v818, %v153
      %v883 = vmul.f32 %v819, %v153
      %v884 = vmul.f32 %v820, %v153
      %v885 = vmul.f32 %v821, %v153
      %v886 = vmul.f32 %v822, %v153
      %v887 = vmul.f32 %v823, %v153
      %v888 = vmul.f32 %v824, %v153
      %v889 = vmul.f32 %v825, %v153
      %v890 = vmul.f32 %v826, %v153
      %v891 = vmul.f32 %v827, %v153
      %v892 = vmul.f32 %v828, %v153
      %v893 = vmul.f32 %v829, %v153
      %v894 = vmul.f32 %v830, %v153
      %v895 = vmul.f32 %v831, %v153
      %v896 = vmul.f32 %v832, %v153
      %v897 = vmul.f32 %v833, %v153
      %v898 = vmul.f32 %v834, %v153
      %v899 = vmul.f32 %v835, %v153
      %v900 = vmul.f32 %v836, %v153
      %v901 = vmul.f32 %v837, %v153
      %v902 = vmul.f32 %v838, %v153
      %v903 = vmul.f32 %v839, %v153
      %v904 = vmul.f32 %v840, %v153
      %v905 = vmul.f32 %v841, %v153
      %v906 = vmul.f32 %v842, %v153
      %v907 = vmul.f32 %v843, %v153
      %v908 = vmul.f32 %v844, %v153
      %v909 = vmul.f32 %v845, %v153
      %v910 = vmul.f32 %v846, %v153
      %v911 = vmul.f32 %v847, %v153
      %v912 = vmul.f32 %v848, %v153
      %v913 = vmul.f32 %v849, %v153
      %v914 = vmul.f32 %v850, %v153
      %v915 = vmul.f32 %v851, %v153
      %v916 = vmul.f32 %v852, %v153
      %v917 = vmul.f32 %v853, %v153
      %v918 = vmul.f32 %v854, %v153
      %v919 = vmul.f32 %v855, %v153
      %v920 = vmul.f32 %v856, %v153
      %v921 = vmul.f32 %v857, %v153
      %v922 = vmul.f32 %v858, %v153
      %v923 = vmul.f32 %v859, %v153
      %v924 = vmul.f32 %v860, %v153
      %v925 = vmul.f32 %v861, %v153
      %v926 = vmul.f32 %v862, %v153
      %v927 = vmul.f32 %v863, %v153
      %v928 = vadd.f32 %v864, %v221
      %v929 = vadd.f32 %v865, %v221
      %v930 = vadd.f32 %v866, %v221
      %v931 = vadd.f32 %v867, %v221
      %v932 = vadd.f32 %v868, %v221
      %v933 = vadd.f32 %v869, %v221
      %v934 = vadd.f32 %v870, %v221
      %v935 = vadd.f32 %v871, %v221
      %v936 = vadd.f32 %v872, %v221
      %v937 = vadd.f32 %v873, %v221
      %v938 = vadd.f32 %v874, %v221
      %v939 = vadd.f32 %v875, %v221
      %v940 = vadd.f32 %v876, %v221
      %v941 = vadd.f32 %v877, %v221
      %v942 = vadd.f32 %v878, %v221
      %v943 = vadd.f32 %v879, %v221
      %v944 = vadd.f32 %v880, %v221
      %v945 = vadd.f32 %v881, %v221
      %v946 = vadd.f32 %v882, %v221
      %v947 = vadd.f32 %v883, %v221
      %v948 = vadd.f32 %v884, %v221
      %v949 = vadd.f32 %v885, %v221
      %v950 = vadd.f32 %v886, %v221
      %v951 = vadd.f32 %v887, %v221
      %v952 = vadd.f32 %v888, %v221
      %v953 = vadd.f32 %v889, %v221
      %v954 = vadd.f32 %v890, %v221
      %v955 = vadd.f32 %v891, %v221
      %v956 = vadd.f32 %v892, %v221
      %v957 = vadd.f32 %v893, %v221
      %v958 = vadd.f32 %v894, %v221
      %v959 = vadd.f32 %v895, %v221
      %v960 = vadd.f32 %v896, %v221
      %v961 = vadd.f32 %v897, %v221
      %v962 = vadd.f32 %v898, %v221
      %v963 = vadd.f32 %v899, %v221
      %v964 = vadd.f32 %v900, %v221
      %v965 = vadd.f32 %v901, %v221
      %v966 = vadd.f32 %v902, %v221
      %v967 = vadd.f32 %v903, %v221
      %v968 = vadd.f32 %v904, %v221
      %v969 = vadd.f32 %v905, %v221
      %v970 = vadd.f32 %v906, %v221
      %v971 = vadd.f32 %v907, %v221
      %v972 = vadd.f32 %v908, %v221
      %v973 = vadd.f32 %v909, %v221
      %v974 = vadd.f32 %v910, %v221
      %v975 = vadd.f32 %v911, %v221
      %v976 = vadd.f32 %v912, %v221
      %v977 = vadd.f32 %v913, %v221
      %v978 = vadd.f32 %v914, %v221
      %v979 = vadd.f32 %v915, %v221
      %v980 = vadd.f32 %v916, %v221
      %v981 = vadd.f32 %v917, %v221
      %v982 = vadd.f32 %v918, %v221
      %v983 = vadd.f32 %v919, %v221
      %v984 = vadd.f32 %v920, %v221
      %v985 = vadd.f32 %v921, %v221
      %v986 = vadd.f32 %v922, %v221
      %v987 = vadd.f32 %v923, %v221
      %v988 = vadd.f32 %v924, %v221
      %v989 = vadd.f32 %v925, %v221
      %v990 = vadd.f32 %v926, %v221
      %v991 = vadd.f32 %v927, %v221
      %v992 = vmax.f32 %v928, 0.0
      %v993 = vmax.f32 %v929, 0.0
      %v994 = vmax.f32 %v930, 0.0
      %v995 = vmax.f32 %v931, 0.0
      %v996 = vmax.f32 %v932, 0.0
      %v997 = vmax.f32 %v933, 0.0
      %v998 = vmax.f32 %v934, 0.0
      %v999 = vmax.f32 %v935, 0.0
      %v1000 = vmax.f32 %v936, 0.0
      %v1001 = vmax.f32 %v937, 0.0
      %v1002 = vmax.f32 %v938, 0.0
      %v1003 = vmax.f32 %v939, 0.0
      %v1004 = vmax.f32 %v940, 0.0
      %v1005 = vmax.f32 %v941, 0.0
      %v1006 = vmax.f32 %v942, 0.0
      %v1007 = vmax.f32 %v943, 0.0
      %v1008 = vmax.f32 %v944, 0.0
      %v1009 = vmax.f32 %v945, 0.0
      %v1010 = vmax.f32 %v946, 0.0
      %v1011 = vmax.f32 %v947, 0.0
      %v1012 = vmax.f32 %v948, 0.0
      %v1013 = vmax.f32 %v949, 0.0
      %v1014 = vmax.f32 %v950, 0.0
      %v1015 = vmax.f32 %v951, 0.0
      %v1016 = vmax.f32 %v952, 0.0
      %v1017 = vmax.f32 %v953, 0.0
      %v1018 = vmax.f32 %v954, 0.0
      %v1019 = vmax.f32 %v955, 0.0
      %v1020 = vmax.f32 %v956, 0.0
      %v1021 = vmax.f32 %v957, 0.0
      %v1022 = vmax.f32 %v958, 0.0
      %v1023 = vmax.f32 %v959, 0.0
      %v1024 = vmax.f32 %v960, 0.0
      %v1025 = vmax.f32 %v961, 0.0
      %v1026 = vmax.f32 %v962, 0.0
      %v1027 = vmax.f32 %v963, 0.0
      %v1028 = vmax.f32 %v964, 0.0
      %v1029 = vmax.f32 %v965, 0.0
      %v1030 = vmax.f32 %v966, 0.0
      %v1031 = vmax.f32 %v967, 0.0
      %v1032 = vmax.f32 %v968, 0.0
      %v1033 = vmax.f32 %v969, 0.0
      %v1034 = vmax.f32 %v970, 0.0
      %v1035 = vmax.f32 %v971, 0.0
      %v1036 = vmax.f32 %v972, 0.0
      %v1037 = vmax.f32 %v973, 0.0
      %v1038 = vmax.f32 %v974, 0.0
      %v1039 = vmax.f32 %v975, 0.0
      %v1040 = vmax.f32 %v976, 0.0
      %v1041 = vmax.f32 %v977, 0.0
      %v1042 = vmax.f32 %v978, 0.0
      %v1043 = vmax.f32 %v979, 0.0
      %v1044 = vmax.f32 %v980, 0.0
      %v1045 = vmax.f32 %v981, 0.0
      %v1046 = vmax.f32 %v982, 0.0
      %v1047 = vmax.f32 %v983, 0.0
      %v1048 = vmax.f32 %v984, 0.0
      %v1049 = vmax.f32 %v985, 0.0
      %v1050 = vmax.f32 %v986, 0.0
      %v1051 = vmax.f32 %v987, 0.0
      %v1052 = vmax.f32 %v988, 0.0
      %v1053 = vmax.f32 %v989, 0.0
      %v1054 = vmax.f32 %v990, 0.0
      %v1055 = vmax.f32 %v991, 0.0
      %v1056 = vadd.f32 %v671, %v992
      %v1057 = vadd.f32 %v672, %v993
      %v1058 = vadd.f32 %v673, %v994
      %v1059 = vadd.f32 %v674, %v995
      %v1060 = vadd.f32 %v675, %v996
      %v1061 = vadd.f32 %v676, %v997
      %v1062 = vadd.f32 %v677, %v998
      %v1063 = vadd.f32 %v678, %v999
      %v1064 = vadd.f32 %v679, %v1000
      %v1065 = vadd.f32 %v680, %v1001
      %v1066 = vadd.f32 %v681, %v1002
      %v1067 = vadd.f32 %v682, %v1003
      %v1068 = vadd.f32 %v683, %v1004
      %v1069 = vadd.f32 %v684, %v1005
      %v1070 = vadd.f32 %v685, %v1006
      %v1071 = vadd.f32 %v686, %v1007
      %v1072 = vadd.f32 %v687, %v1008
      %v1073 = vadd.f32 %v688, %v1009
      %v1074 = vadd.f32 %v689, %v1010
      %v1075 = vadd.f32 %v690, %v1011
      %v1076 = vadd.f32 %v691, %v1012
      %v1077 = vadd.f32 %v692, %v1013
      %v1078 = vadd.f32 %v693, %v1014
      %v1079 = vadd.f32 %v694, %v1015
      %v1080 = vadd.f32 %v695, %v1016
      %v1081 = vadd.f32 %v696, %v1017
      %v1082 = vadd.f32 %v697, %v1018
      %v1083 = vadd.f32 %v698, %v1019
      %v1084 = vadd.f32 %v699, %v1020
      %v1085 = vadd.f32 %v700, %v1021
      %v1086 = vadd.f32 %v701, %v1022
      %v1087 = vadd.f32 %v702, %v1023
      %v1088 = vadd.f32 %v703, %v1024
      %v1089 = vadd.f32 %v704, %v1025
      %v1090 = vadd.f32 %v705, %v1026
      %v1091 = vadd.f32 %v706, %v1027
      %v1092 = vadd.f32 %v707, %v1028
      %v1093 = vadd.f32 %v708, %v1029
      %v1094 = vadd.f32 %v709, %v1030
      %v1095 = vadd.f32 %v710, %v1031
      %v1096 = vadd.f32 %v711, %v1032
      %v1097 = vadd.f32 %v712, %v1033
      %v1098 = vadd.f32 %v713, %v1034
      %v1099 = vadd.f32 %v714, %v1035
      %v1100 = vadd.f32 %v715, %v1036
      %v1101 = vadd.f32 %v716, %v1037
      %v1102 = vadd.f32 %v717, %v1038
      %v1103 = vadd.f32 %v718, %v1039
      %v1104 = vadd.f32 %v719, %v1040
      %v1105 = vadd.f32 %v720, %v1041
      %v1106 = vadd.f32 %v721, %v1042
      %v1107 = vadd.f32 %v722, %v1043
      %v1108 = vadd.f32 %v723, %v1044
      %v1109 = vadd.f32 %v724, %v1045
      %v1110 = vadd.f32 %v725, %v1046
      %v1111 = vadd.f32 %v726, %v1047
      %v1112 = vadd.f32 %v727, %v1048
      %v1113 = vadd.f32 %v728, %v1049
      %v1114 = vadd.f32 %v729, %v1050
      %v1115 = vadd.f32 %v730, %v1051
      %v1116 = vadd.f32 %v731, %v1052
      %v1117 = vadd.f32 %v732, %v1053
      %v1118 = vadd.f32 %v733, %v1054
      %v1119 = vadd.f32 %v734, %v1055
      %s1120 = scalar_lea.vmem %s0, 768
      %v1121 = vld [vmem:[%s1120] sm:$0xf]
      %v1122 = vld [vmem:[%s1120 + $0x4] sm:$0xf]
      %v1123 = vld [vmem:[%s1120 + $0x8] sm:$0xf]
      %v1124 = vld [vmem:[%s1120 + $0xc] sm:$0xf]
      %v1125 = vld [vmem:[%s1120 + $0x10] sm:$0xf]
      %v1126 = vld [vmem:[%s1120 + $0x14] sm:$0xf]
      %v1127 = vld [vmem:[%s1120 + $0x18] sm:$0xf]
      %v1128 = vld [vmem:[%s1120 + $0x1c] sm:$0xf]
      %v1129 = vld [vmem:[%s1120 + $0x20] sm:$0xf]
      %v1130 = vld [vmem:[%s1120 + $0x24] sm:$0xf]
      %v1131 = vld [vmem:[%s1120 + $0x28] sm:$0xf]
      %v1132 = vld [vmem:[%s1120 + $0x2c] sm:$0xf]
      %v1133 = vld [vmem:[%s1120 + $0x30] sm:$0xf]
      %v1134 = vld [vmem:[%s1120 + $0x34] sm:$0xf]
      %v1135 = vld [vmem:[%s1120 + $0x38] sm:$0xf]
      %v1136 = vld [vmem:[%s1120 + $0x3c] sm:$0xf]
      %v1137 = vld [vmem:[%s1120 + $0x40] sm:$0xf]
      %v1138 = vld [vmem:[%s1120 + $0x44] sm:$0xf]
      %v1139 = vld [vmem:[%s1120 + $0x48] sm:$0xf]
      %v1140 = vld [vmem:[%s1120 + $0x4c] sm:$0xf]
      %v1141 = vld [vmem:[%s1120 + $0x50] sm:$0xf]
      %v1142 = vld [vmem:[%s1120 + $0x54] sm:$0xf]
      %v1143 = vld [vmem:[%s1120 + $0x58] sm:$0xf]
      %v1144 = vld [vmem:[%s1120 + $0x5c] sm:$0xf]
      %v1145 = vld [vmem:[%s1120 + $0x60] sm:$0xf]
      %v1146 = vld [vmem:[%s1120 + $0x64] sm:$0xf]
      %v1147 = vld [vmem:[%s1120 + $0x68] sm:$0xf]
      %v1148 = vld [vmem:[%s1120 + $0x6c] sm:$0xf]
      %v1149 = vld [vmem:[%s1120 + $0x70] sm:$0xf]
      %v1150 = vld [vmem:[%s1120 + $0x74] sm:$0xf]
      %v1151 = vld [vmem:[%s1120 + $0x78] sm:$0xf]
      %v1152 = vld [vmem:[%s1120 + $0x7c] sm:$0xf]
      %v1153 = vld [vmem:[%s1120 + $0x80] sm:$0xf]
      %v1154 = vld [vmem:[%s1120 + $0x84] sm:$0xf]
      %v1155 = vld [vmem:[%s1120 + $0x88] sm:$0xf]
      %v1156 = vld [vmem:[%s1120 + $0x8c] sm:$0xf]
      %v1157 = vld [vmem:[%s1120 + $0x90] sm:$0xf]
      %v1158 = vld [vmem:[%s1120 + $0x94] sm:$0xf]
      %v1159 = vld [vmem:[%s1120 + $0x98] sm:$0xf]
      %v1160 = vld [vmem:[%s1120 + $0x9c] sm:$0xf]
      %v1161 = vld [vmem:[%s1120 + $0xa0] sm:$0xf]
      %v1162 = vld [vmem:[%s1120 + $0xa4] sm:$0xf]
      %v1163 = vld [vmem:[%s1120 + $0xa8] sm:$0xf]
      %v1164 = vld [vmem:[%s1120 + $0xac] sm:$0xf]
      %v1165 = vld [vmem:[%s1120 + $0xb0] sm:$0xf]
      %v1166 = vld [vmem:[%s1120 + $0xb4] sm:$0xf]
      %v1167 = vld [vmem:[%s1120 + $0xb8] sm:$0xf]
      %v1168 = vld [vmem:[%s1120 + $0xbc] sm:$0xf]
      %v1169 = vld [vmem:[%s1120 + $0xc0] sm:$0xf]
      %v1170 = vld [vmem:[%s1120 + $0xc4] sm:$0xf]
      %v1171 = vld [vmem:[%s1120 + $0xc8] sm:$0xf]
      %v1172 = vld [vmem:[%s1120 + $0xcc] sm:$0xf]
      %v1173 = vld [vmem:[%s1120 + $0xd0] sm:$0xf]
      %v1174 = vld [vmem:[%s1120 + $0xd4] sm:$0xf]
      %v1175 = vld [vmem:[%s1120 + $0xd8] sm:$0xf]
      %v1176 = vld [vmem:[%s1120 + $0xdc] sm:$0xf]
      %v1177 = vld [vmem:[%s1120 + $0xe0] sm:$0xf]
      %v1178 = vld [vmem:[%s1120 + $0xe4] sm:$0xf]
      %v1179 = vld [vmem:[%s1120 + $0xe8] sm:$0xf]
      %v1180 = vld [vmem:[%s1120 + $0xec] sm:$0xf]
      %v1181 = vld [vmem:[%s1120 + $0xf0] sm:$0xf]
      %v1182 = vld [vmem:[%s1120 + $0xf4] sm:$0xf]
      %v1183 = vld [vmem:[%s1120 + $0xf8] sm:$0xf]
      %v1184 = vld [vmem:[%s1120 + $0xfc] sm:$0xf]
      %v1185 = vunpack.c.l.bf16 %v1121
      %v1186 = vunpack.c.l.bf16 %v1122
      %v1187 = vunpack.c.l.bf16 %v1123
      %v1188 = vunpack.c.l.bf16 %v1124
      %v1189 = vunpack.c.l.bf16 %v1125
      %v1190 = vunpack.c.l.bf16 %v1126
      %v1191 = vunpack.c.l.bf16 %v1127
      %v1192 = vunpack.c.l.bf16 %v1128
      %v1193 = vunpack.c.l.bf16 %v1129
      %v1194 = vunpack.c.l.bf16 %v1130
      %v1195 = vunpack.c.l.bf16 %v1131
      %v1196 = vunpack.c.l.bf16 %v1132
      %v1197 = vunpack.c.l.bf16 %v1133
      %v1198 = vunpack.c.l.bf16 %v1134
      %v1199 = vunpack.c.l.bf16 %v1135
      %v1200 = vunpack.c.l.bf16 %v1136
      %v1201 = vunpack.c.l.bf16 %v1137
      %v1202 = vunpack.c.l.bf16 %v1138
      %v1203 = vunpack.c.l.bf16 %v1139
      %v1204 = vunpack.c.l.bf16 %v1140
      %v1205 = vunpack.c.l.bf16 %v1141
      %v1206 = vunpack.c.l.bf16 %v1142
      %v1207 = vunpack.c.l.bf16 %v1143
      %v1208 = vunpack.c.l.bf16 %v1144
      %v1209 = vunpack.c.l.bf16 %v1145
      %v1210 = vunpack.c.l.bf16 %v1146
      %v1211 = vunpack.c.l.bf16 %v1147
      %v1212 = vunpack.c.l.bf16 %v1148
      %v1213 = vunpack.c.l.bf16 %v1149
      %v1214 = vunpack.c.l.bf16 %v1150
      %v1215 = vunpack.c.l.bf16 %v1151
      %v1216 = vunpack.c.l.bf16 %v1152
      %v1217 = vunpack.c.l.bf16 %v1153
      %v1218 = vunpack.c.l.bf16 %v1154
      %v1219 = vunpack.c.l.bf16 %v1155
      %v1220 = vunpack.c.l.bf16 %v1156
      %v1221 = vunpack.c.l.bf16 %v1157
      %v1222 = vunpack.c.l.bf16 %v1158
      %v1223 = vunpack.c.l.bf16 %v1159
      %v1224 = vunpack.c.l.bf16 %v1160
      %v1225 = vunpack.c.l.bf16 %v1161
      %v1226 = vunpack.c.l.bf16 %v1162
      %v1227 = vunpack.c.l.bf16 %v1163
      %v1228 = vunpack.c.l.bf16 %v1164
      %v1229 = vunpack.c.l.bf16 %v1165
      %v1230 = vunpack.c.l.bf16 %v1166
      %v1231 = vunpack.c.l.bf16 %v1167
      %v1232 = vunpack.c.l.bf16 %v1168
      %v1233 = vunpack.c.l.bf16 %v1169
      %v1234 = vunpack.c.l.bf16 %v1170
      %v1235 = vunpack.c.l.bf16 %v1171
      %v1236 = vunpack.c.l.bf16 %v1172
      %v1237 = vunpack.c.l.bf16 %v1173
      %v1238 = vunpack.c.l.bf16 %v1174
      %v1239 = vunpack.c.l.bf16 %v1175
      %v1240 = vunpack.c.l.bf16 %v1176
      %v1241 = vunpack.c.l.bf16 %v1177
      %v1242 = vunpack.c.l.bf16 %v1178
      %v1243 = vunpack.c.l.bf16 %v1179
      %v1244 = vunpack.c.l.bf16 %v1180
      %v1245 = vunpack.c.l.bf16 %v1181
      %v1246 = vunpack.c.l.bf16 %v1182
      %v1247 = vunpack.c.l.bf16 %v1183
      %v1248 = vunpack.c.l.bf16 %v1184
      %v1249 = vmul.f32 %v1185, %v153
      %v1250 = vmul.f32 %v1186, %v153
      %v1251 = vmul.f32 %v1187, %v153
      %v1252 = vmul.f32 %v1188, %v153
      %v1253 = vmul.f32 %v1189, %v153
      %v1254 = vmul.f32 %v1190, %v153
      %v1255 = vmul.f32 %v1191, %v153
      %v1256 = vmul.f32 %v1192, %v153
      %v1257 = vmul.f32 %v1193, %v153
      %v1258 = vmul.f32 %v1194, %v153
      %v1259 = vmul.f32 %v1195, %v153
      %v1260 = vmul.f32 %v1196, %v153
      %v1261 = vmul.f32 %v1197, %v153
      %v1262 = vmul.f32 %v1198, %v153
      %v1263 = vmul.f32 %v1199, %v153
      %v1264 = vmul.f32 %v1200, %v153
      %v1265 = vmul.f32 %v1201, %v153
      %v1266 = vmul.f32 %v1202, %v153
      %v1267 = vmul.f32 %v1203, %v153
      %v1268 = vmul.f32 %v1204, %v153
      %v1269 = vmul.f32 %v1205, %v153
      %v1270 = vmul.f32 %v1206, %v153
      %v1271 = vmul.f32 %v1207, %v153
      %v1272 = vmul.f32 %v1208, %v153
      %v1273 = vmul.f32 %v1209, %v153
      %v1274 = vmul.f32 %v1210, %v153
      %v1275 = vmul.f32 %v1211, %v153
      %v1276 = vmul.f32 %v1212, %v153
      %v1277 = vmul.f32 %v1213, %v153
      %v1278 = vmul.f32 %v1214, %v153
      %v1279 = vmul.f32 %v1215, %v153
      %v1280 = vmul.f32 %v1216, %v153
      %v1281 = vmul.f32 %v1217, %v153
      %v1282 = vmul.f32 %v1218, %v153
      %v1283 = vmul.f32 %v1219, %v153
      %v1284 = vmul.f32 %v1220, %v153
      %v1285 = vmul.f32 %v1221, %v153
      %v1286 = vmul.f32 %v1222, %v153
      %v1287 = vmul.f32 %v1223, %v153
      %v1288 = vmul.f32 %v1224, %v153
      %v1289 = vmul.f32 %v1225, %v153
      %v1290 = vmul.f32 %v1226, %v153
      %v1291 = vmul.f32 %v1227, %v153
      %v1292 = vmul.f32 %v1228, %v153
      %v1293 = vmul.f32 %v1229, %v153
      %v1294 = vmul.f32 %v1230, %v153
      %v1295 = vmul.f32 %v1231, %v153
      %v1296 = vmul.f32 %v1232, %v153
      %v1297 = vmul.f32 %v1233, %v153
      %v1298 = vmul.f32 %v1234, %v153
      %v1299 = vmul.f32 %v1235, %v153
      %v1300 = vmul.f32 %v1236, %v153
      %v1301 = vmul.f32 %v1237, %v153
      %v1302 = vmul.f32 %v1238, %v153
      %v1303 = vmul.f32 %v1239, %v153
      %v1304 = vmul.f32 %v1240, %v153
      %v1305 = vmul.f32 %v1241, %v153
      %v1306 = vmul.f32 %v1242, %v153
      %v1307 = vmul.f32 %v1243, %v153
      %v1308 = vmul.f32 %v1244, %v153
      %v1309 = vmul.f32 %v1245, %v153
      %v1310 = vmul.f32 %v1246, %v153
      %v1311 = vmul.f32 %v1247, %v153
      %v1312 = vmul.f32 %v1248, %v153
      %v1313 = vadd.f32 %v1249, %v221
      %v1314 = vadd.f32 %v1250, %v221
      %v1315 = vadd.f32 %v1251, %v221
      %v1316 = vadd.f32 %v1252, %v221
      %v1317 = vadd.f32 %v1253, %v221
      %v1318 = vadd.f32 %v1254, %v221
      %v1319 = vadd.f32 %v1255, %v221
      %v1320 = vadd.f32 %v1256, %v221
      %v1321 = vadd.f32 %v1257, %v221
      %v1322 = vadd.f32 %v1258, %v221
      %v1323 = vadd.f32 %v1259, %v221
      %v1324 = vadd.f32 %v1260, %v221
      %v1325 = vadd.f32 %v1261, %v221
      %v1326 = vadd.f32 %v1262, %v221
      %v1327 = vadd.f32 %v1263, %v221
      %v1328 = vadd.f32 %v1264, %v221
      %v1329 = vadd.f32 %v1265, %v221
      %v1330 = vadd.f32 %v1266, %v221
      %v1331 = vadd.f32 %v1267, %v221
      %v1332 = vadd.f32 %v1268, %v221
      %v1333 = vadd.f32 %v1269, %v221
      %v1334 = vadd.f32 %v1270, %v221
      %v1335 = vadd.f32 %v1271, %v221
      %v1336 = vadd.f32 %v1272, %v221
      %v1337 = vadd.f32 %v1273, %v221
      %v1338 = vadd.f32 %v1274, %v221
      %v1339 = vadd.f32 %v1275, %v221
      %v1340 = vadd.f32 %v1276, %v221
      %v1341 = vadd.f32 %v1277, %v221
      %v1342 = vadd.f32 %v1278, %v221
      %v1343 = vadd.f32 %v1279, %v221
      %v1344 = vadd.f32 %v1280, %v221
      %v1345 = vadd.f32 %v1281, %v221
      %v1346 = vadd.f32 %v1282, %v221
      %v1347 = vadd.f32 %v1283, %v221
      %v1348 = vadd.f32 %v1284, %v221
      %v1349 = vadd.f32 %v1285, %v221
      %v1350 = vadd.f32 %v1286, %v221
      %v1351 = vadd.f32 %v1287, %v221
      %v1352 = vadd.f32 %v1288, %v221
      %v1353 = vadd.f32 %v1289, %v221
      %v1354 = vadd.f32 %v1290, %v221
      %v1355 = vadd.f32 %v1291, %v221
      %v1356 = vadd.f32 %v1292, %v221
      %v1357 = vadd.f32 %v1293, %v221
      %v1358 = vadd.f32 %v1294, %v221
      %v1359 = vadd.f32 %v1295, %v221
      %v1360 = vadd.f32 %v1296, %v221
      %v1361 = vadd.f32 %v1297, %v221
      %v1362 = vadd.f32 %v1298, %v221
      %v1363 = vadd.f32 %v1299, %v221
      %v1364 = vadd.f32 %v1300, %v221
      %v1365 = vadd.f32 %v1301, %v221
      %v1366 = vadd.f32 %v1302, %v221
      %v1367 = vadd.f32 %v1303, %v221
      %v1368 = vadd.f32 %v1304, %v221
      %v1369 = vadd.f32 %v1305, %v221
      %v1370 = vadd.f32 %v1306, %v221
      %v1371 = vadd.f32 %v1307, %v221
      %v1372 = vadd.f32 %v1308, %v221
      %v1373 = vadd.f32 %v1309, %v221
      %v1374 = vadd.f32 %v1310, %v221
      %v1375 = vadd.f32 %v1311, %v221
      %v1376 = vadd.f32 %v1312, %v221
      %v1377 = vmax.f32 %v1313, 0.0
      %v1378 = vmax.f32 %v1314, 0.0
      %v1379 = vmax.f32 %v1315, 0.0
      %v1380 = vmax.f32 %v1316, 0.0
      %v1381 = vmax.f32 %v1317, 0.0
      %v1382 = vmax.f32 %v1318, 0.0
      %v1383 = vmax.f32 %v1319, 0.0
      %v1384 = vmax.f32 %v1320, 0.0
      %v1385 = vmax.f32 %v1321, 0.0
      %v1386 = vmax.f32 %v1322, 0.0
      %v1387 = vmax.f32 %v1323, 0.0
      %v1388 = vmax.f32 %v1324, 0.0
      %v1389 = vmax.f32 %v1325, 0.0
      %v1390 = vmax.f32 %v1326, 0.0
      %v1391 = vmax.f32 %v1327, 0.0
      %v1392 = vmax.f32 %v1328, 0.0
      %v1393 = vmax.f32 %v1329, 0.0
      %v1394 = vmax.f32 %v1330, 0.0
      %v1395 = vmax.f32 %v1331, 0.0
      %v1396 = vmax.f32 %v1332, 0.0
      %v1397 = vmax.f32 %v1333, 0.0
      %v1398 = vmax.f32 %v1334, 0.0
      %v1399 = vmax.f32 %v1335, 0.0
      %v1400 = vmax.f32 %v1336, 0.0
      %v1401 = vmax.f32 %v1337, 0.0
      %v1402 = vmax.f32 %v1338, 0.0
      %v1403 = vmax.f32 %v1339, 0.0
      %v1404 = vmax.f32 %v1340, 0.0
      %v1405 = vmax.f32 %v1341, 0.0
      %v1406 = vmax.f32 %v1342, 0.0
      %v1407 = vmax.f32 %v1343, 0.0
      %v1408 = vmax.f32 %v1344, 0.0
      %v1409 = vmax.f32 %v1345, 0.0
      %v1410 = vmax.f32 %v1346, 0.0
      %v1411 = vmax.f32 %v1347, 0.0
      %v1412 = vmax.f32 %v1348, 0.0
      %v1413 = vmax.f32 %v1349, 0.0
      %v1414 = vmax.f32 %v1350, 0.0
      %v1415 = vmax.f32 %v1351, 0.0
      %v1416 = vmax.f32 %v1352, 0.0
      %v1417 = vmax.f32 %v1353, 0.0
      %v1418 = vmax.f32 %v1354, 0.0
      %v1419 = vmax.f32 %v1355, 0.0
      %v1420 = vmax.f32 %v1356, 0.0
      %v1421 = vmax.f32 %v1357, 0.0
      %v1422 = vmax.f32 %v1358, 0.0
      %v1423 = vmax.f32 %v1359, 0.0
      %v1424 = vmax.f32 %v1360, 0.0
      %v1425 = vmax.f32 %v1361, 0.0
      %v1426 = vmax.f32 %v1362, 0.0
      %v1427 = vmax.f32 %v1363, 0.0
      %v1428 = vmax.f32 %v1364, 0.0
      %v1429 = vmax.f32 %v1365, 0.0
      %v1430 = vmax.f32 %v1366, 0.0
      %v1431 = vmax.f32 %v1367, 0.0
      %v1432 = vmax.f32 %v1368, 0.0
      %v1433 = vmax.f32 %v1369, 0.0
      %v1434 = vmax.f32 %v1370, 0.0
      %v1435 = vmax.f32 %v1371, 0.0
      %v1436 = vmax.f32 %v1372, 0.0
      %v1437 = vmax.f32 %v1373, 0.0
      %v1438 = vmax.f32 %v1374, 0.0
      %v1439 = vmax.f32 %v1375, 0.0
      %v1440 = vmax.f32 %v1376, 0.0
      %v1441 = vadd.f32 %v1056, %v1377
      %v1442 = vadd.f32 %v1057, %v1378
      %v1443 = vadd.f32 %v1058, %v1379
      %v1444 = vadd.f32 %v1059, %v1380
      %v1445 = vadd.f32 %v1060, %v1381
      %v1446 = vadd.f32 %v1061, %v1382
      %v1447 = vadd.f32 %v1062, %v1383
      %v1448 = vadd.f32 %v1063, %v1384
      %v1449 = vadd.f32 %v1064, %v1385
      %v1450 = vadd.f32 %v1065, %v1386
      %v1451 = vadd.f32 %v1066, %v1387
      %v1452 = vadd.f32 %v1067, %v1388
      %v1453 = vadd.f32 %v1068, %v1389
      %v1454 = vadd.f32 %v1069, %v1390
      %v1455 = vadd.f32 %v1070, %v1391
      %v1456 = vadd.f32 %v1071, %v1392
      %v1457 = vadd.f32 %v1072, %v1393
      %v1458 = vadd.f32 %v1073, %v1394
      %v1459 = vadd.f32 %v1074, %v1395
      %v1460 = vadd.f32 %v1075, %v1396
      %v1461 = vadd.f32 %v1076, %v1397
      %v1462 = vadd.f32 %v1077, %v1398
      %v1463 = vadd.f32 %v1078, %v1399
      %v1464 = vadd.f32 %v1079, %v1400
      %v1465 = vadd.f32 %v1080, %v1401
      %v1466 = vadd.f32 %v1081, %v1402
      %v1467 = vadd.f32 %v1082, %v1403
      %v1468 = vadd.f32 %v1083, %v1404
      %v1469 = vadd.f32 %v1084, %v1405
      %v1470 = vadd.f32 %v1085, %v1406
      %v1471 = vadd.f32 %v1086, %v1407
      %v1472 = vadd.f32 %v1087, %v1408
      %v1473 = vadd.f32 %v1088, %v1409
      %v1474 = vadd.f32 %v1089, %v1410
      %v1475 = vadd.f32 %v1090, %v1411
      %v1476 = vadd.f32 %v1091, %v1412
      %v1477 = vadd.f32 %v1092, %v1413
      %v1478 = vadd.f32 %v1093, %v1414
      %v1479 = vadd.f32 %v1094, %v1415
      %v1480 = vadd.f32 %v1095, %v1416
      %v1481 = vadd.f32 %v1096, %v1417
      %v1482 = vadd.f32 %v1097, %v1418
      %v1483 = vadd.f32 %v1098, %v1419
      %v1484 = vadd.f32 %v1099, %v1420
      %v1485 = vadd.f32 %v1100, %v1421
      %v1486 = vadd.f32 %v1101, %v1422
      %v1487 = vadd.f32 %v1102, %v1423
      %v1488 = vadd.f32 %v1103, %v1424
      %v1489 = vadd.f32 %v1104, %v1425
      %v1490 = vadd.f32 %v1105, %v1426
      %v1491 = vadd.f32 %v1106, %v1427
      %v1492 = vadd.f32 %v1107, %v1428
      %v1493 = vadd.f32 %v1108, %v1429
      %v1494 = vadd.f32 %v1109, %v1430
      %v1495 = vadd.f32 %v1110, %v1431
      %v1496 = vadd.f32 %v1111, %v1432
      %v1497 = vadd.f32 %v1112, %v1433
      %v1498 = vadd.f32 %v1113, %v1434
      %v1499 = vadd.f32 %v1114, %v1435
      %v1500 = vadd.f32 %v1115, %v1436
      %v1501 = vadd.f32 %v1116, %v1437
      %v1502 = vadd.f32 %v1117, %v1438
      %v1503 = vadd.f32 %v1118, %v1439
      %v1504 = vadd.f32 %v1119, %v1440
      %v1505 = vmul.f32 %v1441, 0.25
      %v1506 = vmul.f32 %v1442, 0.25
      %v1507 = vmul.f32 %v1443, 0.25
      %v1508 = vmul.f32 %v1444, 0.25
      %v1509 = vmul.f32 %v1445, 0.25
      %v1510 = vmul.f32 %v1446, 0.25
      %v1511 = vmul.f32 %v1447, 0.25
      %v1512 = vmul.f32 %v1448, 0.25
      %v1513 = vmul.f32 %v1449, 0.25
      %v1514 = vmul.f32 %v1450, 0.25
      %v1515 = vmul.f32 %v1451, 0.25
      %v1516 = vmul.f32 %v1452, 0.25
      %v1517 = vmul.f32 %v1453, 0.25
      %v1518 = vmul.f32 %v1454, 0.25
      %v1519 = vmul.f32 %v1455, 0.25
      %v1520 = vmul.f32 %v1456, 0.25
      %v1521 = vmul.f32 %v1457, 0.25
      %v1522 = vmul.f32 %v1458, 0.25
      %v1523 = vmul.f32 %v1459, 0.25
      %v1524 = vmul.f32 %v1460, 0.25
      %v1525 = vmul.f32 %v1461, 0.25
      %v1526 = vmul.f32 %v1462, 0.25
      %v1527 = vmul.f32 %v1463, 0.25
      %v1528 = vmul.f32 %v1464, 0.25
      %v1529 = vmul.f32 %v1465, 0.25
      %v1530 = vmul.f32 %v1466, 0.25
      %v1531 = vmul.f32 %v1467, 0.25
      %v1532 = vmul.f32 %v1468, 0.25
      %v1533 = vmul.f32 %v1469, 0.25
      %v1534 = vmul.f32 %v1470, 0.25
      %v1535 = vmul.f32 %v1471, 0.25
      %v1536 = vmul.f32 %v1472, 0.25
      %v1537 = vmul.f32 %v1473, 0.25
      %v1538 = vmul.f32 %v1474, 0.25
      %v1539 = vmul.f32 %v1475, 0.25
      %v1540 = vmul.f32 %v1476, 0.25
      %v1541 = vmul.f32 %v1477, 0.25
      %v1542 = vmul.f32 %v1478, 0.25
      %v1543 = vmul.f32 %v1479, 0.25
      %v1544 = vmul.f32 %v1480, 0.25
      %v1545 = vmul.f32 %v1481, 0.25
      %v1546 = vmul.f32 %v1482, 0.25
      %v1547 = vmul.f32 %v1483, 0.25
      %v1548 = vmul.f32 %v1484, 0.25
      %v1549 = vmul.f32 %v1485, 0.25
      %v1550 = vmul.f32 %v1486, 0.25
      %v1551 = vmul.f32 %v1487, 0.25
      %v1552 = vmul.f32 %v1488, 0.25
      %v1553 = vmul.f32 %v1489, 0.25
      %v1554 = vmul.f32 %v1490, 0.25
      %v1555 = vmul.f32 %v1491, 0.25
      %v1556 = vmul.f32 %v1492, 0.25
      %v1557 = vmul.f32 %v1493, 0.25
      %v1558 = vmul.f32 %v1494, 0.25
      %v1559 = vmul.f32 %v1495, 0.25
      %v1560 = vmul.f32 %v1496, 0.25
      %v1561 = vmul.f32 %v1497, 0.25
      %v1562 = vmul.f32 %v1498, 0.25
      %v1563 = vmul.f32 %v1499, 0.25
      %v1564 = vmul.f32 %v1500, 0.25
      %v1565 = vmul.f32 %v1501, 0.25
      %v1566 = vmul.f32 %v1502, 0.25
      %v1567 = vmul.f32 %v1503, 0.25
      %v1568 = vmul.f32 %v1504, 0.25
      %v1569 = vpack.c.bf16 %v1506, %v1505
      %v1570 = vpack.c.bf16 %v1508, %v1507
      %v1571 = vpack.c.bf16 %v1510, %v1509
      %v1572 = vpack.c.bf16 %v1512, %v1511
      %v1573 = vpack.c.bf16 %v1514, %v1513
      %v1574 = vpack.c.bf16 %v1516, %v1515
      %v1575 = vpack.c.bf16 %v1518, %v1517
      %v1576 = vpack.c.bf16 %v1520, %v1519
      %v1577 = vpack.c.bf16 %v1522, %v1521
      %v1578 = vpack.c.bf16 %v1524, %v1523
      %v1579 = vpack.c.bf16 %v1526, %v1525
      %v1580 = vpack.c.bf16 %v1528, %v1527
      %v1581 = vpack.c.bf16 %v1530, %v1529
      %v1582 = vpack.c.bf16 %v1532, %v1531
      %v1583 = vpack.c.bf16 %v1534, %v1533
      %v1584 = vpack.c.bf16 %v1536, %v1535
      %v1585 = vpack.c.bf16 %v1538, %v1537
      %v1586 = vpack.c.bf16 %v1540, %v1539
      %v1587 = vpack.c.bf16 %v1542, %v1541
      %v1588 = vpack.c.bf16 %v1544, %v1543
      %v1589 = vpack.c.bf16 %v1546, %v1545
      %v1590 = vpack.c.bf16 %v1548, %v1547
      %v1591 = vpack.c.bf16 %v1550, %v1549
      %v1592 = vpack.c.bf16 %v1552, %v1551
      %v1593 = vpack.c.bf16 %v1554, %v1553
      %v1594 = vpack.c.bf16 %v1556, %v1555
      %v1595 = vpack.c.bf16 %v1558, %v1557
      %v1596 = vpack.c.bf16 %v1560, %v1559
      %v1597 = vpack.c.bf16 %v1562, %v1561
      %v1598 = vpack.c.bf16 %v1564, %v1563
      %v1599 = vpack.c.bf16 %v1566, %v1565
      %v1600 = vpack.c.bf16 %v1568, %v1567
      %v1633 = vunpack.c.l.b16 %v1569
      %v1634 = vunpack.c.h.b16 %v1569
      %v1635 = vunpack.c.l.b16 %v1570
      %v1636 = vunpack.c.h.b16 %v1570
      %v1637 = vunpack.c.l.b16 %v1571
      %v1638 = vunpack.c.h.b16 %v1571
      %v1639 = vunpack.c.l.b16 %v1572
      %v1640 = vunpack.c.h.b16 %v1572
      %v1641 = vunpack.c.l.b16 %v1573
      %v1642 = vunpack.c.h.b16 %v1573
      %v1643 = vunpack.c.l.b16 %v1574
      %v1644 = vunpack.c.h.b16 %v1574
      %v1645 = vunpack.c.l.b16 %v1575
      %v1646 = vunpack.c.h.b16 %v1575
      %v1647 = vunpack.c.l.b16 %v1576
      %v1648 = vunpack.c.h.b16 %v1576
      %v1649 = vunpack.c.l.b16 %v1577
      %v1650 = vunpack.c.h.b16 %v1577
      %v1651 = vunpack.c.l.b16 %v1578
      %v1652 = vunpack.c.h.b16 %v1578
      %v1653 = vunpack.c.l.b16 %v1579
      %v1654 = vunpack.c.h.b16 %v1579
      %v1655 = vunpack.c.l.b16 %v1580
      %v1656 = vunpack.c.h.b16 %v1580
      %v1657 = vunpack.c.l.b16 %v1581
      %v1658 = vunpack.c.h.b16 %v1581
      %v1659 = vunpack.c.l.b16 %v1582
      %v1660 = vunpack.c.h.b16 %v1582
      %v1661 = vunpack.c.l.b16 %v1583
      %v1662 = vunpack.c.h.b16 %v1583
      %v1663 = vunpack.c.l.b16 %v1584
      %v1664 = vunpack.c.h.b16 %v1584
      %v1665 = vunpack.c.l.b16 %v1585
      %v1666 = vunpack.c.h.b16 %v1585
      %v1667 = vunpack.c.l.b16 %v1586
      %v1668 = vunpack.c.h.b16 %v1586
      %v1669 = vunpack.c.l.b16 %v1587
      %v1670 = vunpack.c.h.b16 %v1587
      %v1671 = vunpack.c.l.b16 %v1588
      %v1672 = vunpack.c.h.b16 %v1588
      %v1673 = vunpack.c.l.b16 %v1589
      %v1674 = vunpack.c.h.b16 %v1589
      %v1675 = vunpack.c.l.b16 %v1590
      %v1676 = vunpack.c.h.b16 %v1590
      %v1677 = vunpack.c.l.b16 %v1591
      %v1678 = vunpack.c.h.b16 %v1591
      %v1679 = vunpack.c.l.b16 %v1592
      %v1680 = vunpack.c.h.b16 %v1592
      %v1681 = vunpack.c.l.b16 %v1593
      %v1682 = vunpack.c.h.b16 %v1593
      %v1683 = vunpack.c.l.b16 %v1594
      %v1684 = vunpack.c.h.b16 %v1594
      %v1685 = vunpack.c.l.b16 %v1595
      %v1686 = vunpack.c.h.b16 %v1595
      %v1687 = vunpack.c.l.b16 %v1596
      %v1688 = vunpack.c.h.b16 %v1596
      %v1689 = vunpack.c.l.b16 %v1597
      %v1690 = vunpack.c.h.b16 %v1597
      %v1691 = vunpack.c.l.b16 %v1598
      %v1692 = vunpack.c.h.b16 %v1598
      %v1693 = vunpack.c.l.b16 %v1599
      %v1694 = vunpack.c.h.b16 %v1599
      %v1695 = vunpack.c.l.b16 %v1600
      %v1696 = vunpack.c.h.b16 %v1600
      %v1697 = vpack.c.b16 %v1633, %v1633
      %v1698 = vpack.c.b16 %v1634, %v1634
      %v1699 = vpack.c.b16 %v1635, %v1635
      %v1700 = vpack.c.b16 %v1636, %v1636
      %v1701 = vpack.c.b16 %v1637, %v1637
      %v1702 = vpack.c.b16 %v1638, %v1638
      %v1703 = vpack.c.b16 %v1639, %v1639
      %v1704 = vpack.c.b16 %v1640, %v1640
      %v1705 = vpack.c.b16 %v1641, %v1641
      %v1706 = vpack.c.b16 %v1642, %v1642
      %v1707 = vpack.c.b16 %v1643, %v1643
      %v1708 = vpack.c.b16 %v1644, %v1644
      %v1709 = vpack.c.b16 %v1645, %v1645
      %v1710 = vpack.c.b16 %v1646, %v1646
      %v1711 = vpack.c.b16 %v1647, %v1647
      %v1712 = vpack.c.b16 %v1648, %v1648
      %v1713 = vpack.c.b16 %v1649, %v1649
      %v1714 = vpack.c.b16 %v1650, %v1650
      %v1715 = vpack.c.b16 %v1651, %v1651
      %v1716 = vpack.c.b16 %v1652, %v1652
      %v1717 = vpack.c.b16 %v1653, %v1653
      %v1718 = vpack.c.b16 %v1654, %v1654
      %v1719 = vpack.c.b16 %v1655, %v1655
      %v1720 = vpack.c.b16 %v1656, %v1656
      %v1721 = vpack.c.b16 %v1657, %v1657
      %v1722 = vpack.c.b16 %v1658, %v1658
      %v1723 = vpack.c.b16 %v1659, %v1659
      %v1724 = vpack.c.b16 %v1660, %v1660
      %v1725 = vpack.c.b16 %v1661, %v1661
      %v1726 = vpack.c.b16 %v1662, %v1662
      %v1727 = vpack.c.b16 %v1663, %v1663
      %v1728 = vpack.c.b16 %v1664, %v1664
      %v1729 = vpack.c.b16 %v1665, %v1665
      %v1730 = vpack.c.b16 %v1666, %v1666
      %v1731 = vpack.c.b16 %v1667, %v1667
      %v1732 = vpack.c.b16 %v1668, %v1668
      %v1733 = vpack.c.b16 %v1669, %v1669
      %v1734 = vpack.c.b16 %v1670, %v1670
      %v1735 = vpack.c.b16 %v1671, %v1671
      %v1736 = vpack.c.b16 %v1672, %v1672
      %v1737 = vpack.c.b16 %v1673, %v1673
      %v1738 = vpack.c.b16 %v1674, %v1674
      %v1739 = vpack.c.b16 %v1675, %v1675
      %v1740 = vpack.c.b16 %v1676, %v1676
      %v1741 = vpack.c.b16 %v1677, %v1677
      %v1742 = vpack.c.b16 %v1678, %v1678
      %v1743 = vpack.c.b16 %v1679, %v1679
      %v1744 = vpack.c.b16 %v1680, %v1680
      %v1745 = vpack.c.b16 %v1681, %v1681
      %v1746 = vpack.c.b16 %v1682, %v1682
      %v1747 = vpack.c.b16 %v1683, %v1683
      %v1748 = vpack.c.b16 %v1684, %v1684
      %v1749 = vpack.c.b16 %v1685, %v1685
      %v1750 = vpack.c.b16 %v1686, %v1686
      %v1751 = vpack.c.b16 %v1687, %v1687
      %v1752 = vpack.c.b16 %v1688, %v1688
      %v1753 = vpack.c.b16 %v1689, %v1689
      %v1754 = vpack.c.b16 %v1690, %v1690
      %v1755 = vpack.c.b16 %v1691, %v1691
      %v1756 = vpack.c.b16 %v1692, %v1692
      %v1757 = vpack.c.b16 %v1693, %v1693
      %v1758 = vpack.c.b16 %v1694, %v1694
      %v1759 = vpack.c.b16 %v1695, %v1695
      %v1760 = vpack.c.b16 %v1696, %v1696
      %vm1825 = vcmask 781312
      %1826 = vst.msk [vmem:[#allocation2] sm:$0xf] %vm1825, %v1697
      %1827 = vst.msk [vmem:[#allocation2 + $0x4] sm:$0xf] %vm1825, %v1698
      %1828 = vst.msk [vmem:[#allocation2 + $0x8] sm:$0xf] %vm1825, %v1699
      %1829 = vst.msk [vmem:[#allocation2 + $0xc] sm:$0xf] %vm1825, %v1700
      %1830 = vst.msk [vmem:[#allocation2 + $0x10] sm:$0xf] %vm1825, %v1701
      %1831 = vst.msk [vmem:[#allocation2 + $0x14] sm:$0xf] %vm1825, %v1702
      %1832 = vst.msk [vmem:[#allocation2 + $0x18] sm:$0xf] %vm1825, %v1703
      %1833 = vst.msk [vmem:[#allocation2 + $0x1c] sm:$0xf] %vm1825, %v1704
      %1834 = vst.msk [vmem:[#allocation2 + $0x20] sm:$0xf] %vm1825, %v1705
      %1835 = vst.msk [vmem:[#allocation2 + $0x24] sm:$0xf] %vm1825, %v1706
      %1836 = vst.msk [vmem:[#allocation2 + $0x28] sm:$0xf] %vm1825, %v1707
      %1837 = vst.msk [vmem:[#allocation2 + $0x2c] sm:$0xf] %vm1825, %v1708
      %1838 = vst.msk [vmem:[#allocation2 + $0x30] sm:$0xf] %vm1825, %v1709
      %1839 = vst.msk [vmem:[#allocation2 + $0x34] sm:$0xf] %vm1825, %v1710
      %1840 = vst.msk [vmem:[#allocation2 + $0x38] sm:$0xf] %vm1825, %v1711
      %1841 = vst.msk [vmem:[#allocation2 + $0x3c] sm:$0xf] %vm1825, %v1712
      %1842 = vst.msk [vmem:[#allocation2 + $0x40] sm:$0xf] %vm1825, %v1713
      %1843 = vst.msk [vmem:[#allocation2 + $0x44] sm:$0xf] %vm1825, %v1714
      %1844 = vst.msk [vmem:[#allocation2 + $0x48] sm:$0xf] %vm1825, %v1715
      %1845 = vst.msk [vmem:[#allocation2 + $0x4c] sm:$0xf] %vm1825, %v1716
      %1846 = vst.msk [vmem:[#allocation2 + $0x50] sm:$0xf] %vm1825, %v1717
      %1847 = vst.msk [vmem:[#allocation2 + $0x54] sm:$0xf] %vm1825, %v1718
      %1848 = vst.msk [vmem:[#allocation2 + $0x58] sm:$0xf] %vm1825, %v1719
      %1849 = vst.msk [vmem:[#allocation2 + $0x5c] sm:$0xf] %vm1825, %v1720
      %1850 = vst.msk [vmem:[#allocation2 + $0x60] sm:$0xf] %vm1825, %v1721
      %1851 = vst.msk [vmem:[#allocation2 + $0x64] sm:$0xf] %vm1825, %v1722
      %1852 = vst.msk [vmem:[#allocation2 + $0x68] sm:$0xf] %vm1825, %v1723
      %1853 = vst.msk [vmem:[#allocation2 + $0x6c] sm:$0xf] %vm1825, %v1724
      %1854 = vst.msk [vmem:[#allocation2 + $0x70] sm:$0xf] %vm1825, %v1725
      %1855 = vst.msk [vmem:[#allocation2 + $0x74] sm:$0xf] %vm1825, %v1726
      %1856 = vst.msk [vmem:[#allocation2 + $0x78] sm:$0xf] %vm1825, %v1727
      %1857 = vst.msk [vmem:[#allocation2 + $0x7c] sm:$0xf] %vm1825, %v1728
      %1858 = vst.msk [vmem:[#allocation2 + $0x80] sm:$0xf] %vm1825, %v1729
      %1859 = vst.msk [vmem:[#allocation2 + $0x84] sm:$0xf] %vm1825, %v1730
      %1860 = vst.msk [vmem:[#allocation2 + $0x88] sm:$0xf] %vm1825, %v1731
      %1861 = vst.msk [vmem:[#allocation2 + $0x8c] sm:$0xf] %vm1825, %v1732
      %1862 = vst.msk [vmem:[#allocation2 + $0x90] sm:$0xf] %vm1825, %v1733
      %1863 = vst.msk [vmem:[#allocation2 + $0x94] sm:$0xf] %vm1825, %v1734
      %1864 = vst.msk [vmem:[#allocation2 + $0x98] sm:$0xf] %vm1825, %v1735
      %1865 = vst.msk [vmem:[#allocation2 + $0x9c] sm:$0xf] %vm1825, %v1736
      %1866 = vst.msk [vmem:[#allocation2 + $0xa0] sm:$0xf] %vm1825, %v1737
      %1867 = vst.msk [vmem:[#allocation2 + $0xa4] sm:$0xf] %vm1825, %v1738
      %1868 = vst.msk [vmem:[#allocation2 + $0xa8] sm:$0xf] %vm1825, %v1739
      %1869 = vst.msk [vmem:[#allocation2 + $0xac] sm:$0xf] %vm1825, %v1740
      %1870 = vst.msk [vmem:[#allocation2 + $0xb0] sm:$0xf] %vm1825, %v1741
      %1871 = vst.msk [vmem:[#allocation2 + $0xb4] sm:$0xf] %vm1825, %v1742
      %1872 = vst.msk [vmem:[#allocation2 + $0xb8] sm:$0xf] %vm1825, %v1743
      %1873 = vst.msk [vmem:[#allocation2 + $0xbc] sm:$0xf] %vm1825, %v1744
      %1874 = vst.msk [vmem:[#allocation2 + $0xc0] sm:$0xf] %vm1825, %v1745
      %1875 = vst.msk [vmem:[#allocation2 + $0xc4] sm:$0xf] %vm1825, %v1746
      %1876 = vst.msk [vmem:[#allocation2 + $0xc8] sm:$0xf] %vm1825, %v1747
      %1877 = vst.msk [vmem:[#allocation2 + $0xcc] sm:$0xf] %vm1825, %v1748
      %1878 = vst.msk [vmem:[#allocation2 + $0xd0] sm:$0xf] %vm1825, %v1749
      %1879 = vst.msk [vmem:[#allocation2 + $0xd4] sm:$0xf] %vm1825, %v1750
      %1880 = vst.msk [vmem:[#allocation2 + $0xd8] sm:$0xf] %vm1825, %v1751
      %1881 = vst.msk [vmem:[#allocation2 + $0xdc] sm:$0xf] %vm1825, %v1752
      %1882 = vst.msk [vmem:[#allocation2 + $0xe0] sm:$0xf] %vm1825, %v1753
      %1883 = vst.msk [vmem:[#allocation2 + $0xe4] sm:$0xf] %vm1825, %v1754
      %1884 = vst.msk [vmem:[#allocation2 + $0xe8] sm:$0xf] %vm1825, %v1755
      %1885 = vst.msk [vmem:[#allocation2 + $0xec] sm:$0xf] %vm1825, %v1756
      %1886 = vst.msk [vmem:[#allocation2 + $0xf0] sm:$0xf] %vm1825, %v1757
      %1887 = vst.msk [vmem:[#allocation2 + $0xf4] sm:$0xf] %vm1825, %v1758
      %1888 = vst.msk [vmem:[#allocation2 + $0xf8] sm:$0xf] %vm1825, %v1759
      %1889 = vst.msk [vmem:[#allocation2 + $0xfc] sm:$0xf] %vm1825, %v1760
    $region17: #{transition_forward.3} parent=1 // pred_fallthru
      _
    %v1890 = vld [vmem:[#allocation2] sm:$0xf]
    %v1891 = vld [vmem:[#allocation2 + $0x4] sm:$0xf]
    %v1892 = vld [vmem:[#allocation2 + $0x8] sm:$0xf]
    %v1893 = vld [vmem:[#allocation2 + $0xc] sm:$0xf]
    %v1894 = vld [vmem:[#allocation2 + $0x10] sm:$0xf]
    %v1895 = vld [vmem:[#allocation2 + $0x14] sm:$0xf]
    %v1896 = vld [vmem:[#allocation2 + $0x18] sm:$0xf]
    %v1897 = vld [vmem:[#allocation2 + $0x1c] sm:$0xf]
    %v1898 = vld [vmem:[#allocation2 + $0x20] sm:$0xf]
    %v1899 = vld [vmem:[#allocation2 + $0x24] sm:$0xf]
    %v1900 = vld [vmem:[#allocation2 + $0x28] sm:$0xf]
    %v1901 = vld [vmem:[#allocation2 + $0x2c] sm:$0xf]
    %v1902 = vld [vmem:[#allocation2 + $0x30] sm:$0xf]
    %v1903 = vld [vmem:[#allocation2 + $0x34] sm:$0xf]
    %v1904 = vld [vmem:[#allocation2 + $0x38] sm:$0xf]
    %v1905 = vld [vmem:[#allocation2 + $0x3c] sm:$0xf]
    %v1906 = vld [vmem:[#allocation2 + $0x40] sm:$0xf]
    %v1907 = vld [vmem:[#allocation2 + $0x44] sm:$0xf]
    %v1908 = vld [vmem:[#allocation2 + $0x48] sm:$0xf]
    %v1909 = vld [vmem:[#allocation2 + $0x4c] sm:$0xf]
    %v1910 = vld [vmem:[#allocation2 + $0x50] sm:$0xf]
    %v1911 = vld [vmem:[#allocation2 + $0x54] sm:$0xf]
    %v1912 = vld [vmem:[#allocation2 + $0x58] sm:$0xf]
    %v1913 = vld [vmem:[#allocation2 + $0x5c] sm:$0xf]
    %v1914 = vld [vmem:[#allocation2 + $0x60] sm:$0xf]
    %v1915 = vld [vmem:[#allocation2 + $0x64] sm:$0xf]
    %v1916 = vld [vmem:[#allocation2 + $0x68] sm:$0xf]
    %v1917 = vld [vmem:[#allocation2 + $0x6c] sm:$0xf]
    %v1918 = vld [vmem:[#allocation2 + $0x70] sm:$0xf]
    %v1919 = vld [vmem:[#allocation2 + $0x74] sm:$0xf]
    %v1920 = vld [vmem:[#allocation2 + $0x78] sm:$0xf]
    %v1921 = vld [vmem:[#allocation2 + $0x7c] sm:$0xf]
    %v1922 = vld [vmem:[#allocation2 + $0x80] sm:$0xf]
    %v1923 = vld [vmem:[#allocation2 + $0x84] sm:$0xf]
    %v1924 = vld [vmem:[#allocation2 + $0x88] sm:$0xf]
    %v1925 = vld [vmem:[#allocation2 + $0x8c] sm:$0xf]
    %v1926 = vld [vmem:[#allocation2 + $0x90] sm:$0xf]
    %v1927 = vld [vmem:[#allocation2 + $0x94] sm:$0xf]
    %v1928 = vld [vmem:[#allocation2 + $0x98] sm:$0xf]
    %v1929 = vld [vmem:[#allocation2 + $0x9c] sm:$0xf]
    %v1930 = vld [vmem:[#allocation2 + $0xa0] sm:$0xf]
    %v1931 = vld [vmem:[#allocation2 + $0xa4] sm:$0xf]
    %v1932 = vld [vmem:[#allocation2 + $0xa8] sm:$0xf]
    %v1933 = vld [vmem:[#allocation2 + $0xac] sm:$0xf]
    %v1934 = vld [vmem:[#allocation2 + $0xb0] sm:$0xf]
    %v1935 = vld [vmem:[#allocation2 + $0xb4] sm:$0xf]
    %v1936 = vld [vmem:[#allocation2 + $0xb8] sm:$0xf]
    %v1937 = vld [vmem:[#allocation2 + $0xbc] sm:$0xf]
    %v1938 = vld [vmem:[#allocation2 + $0xc0] sm:$0xf]
    %v1939 = vld [vmem:[#allocation2 + $0xc4] sm:$0xf]
    %v1940 = vld [vmem:[#allocation2 + $0xc8] sm:$0xf]
    %v1941 = vld [vmem:[#allocation2 + $0xcc] sm:$0xf]
    %v1942 = vld [vmem:[#allocation2 + $0xd0] sm:$0xf]
    %v1943 = vld [vmem:[#allocation2 + $0xd4] sm:$0xf]
    %v1944 = vld [vmem:[#allocation2 + $0xd8] sm:$0xf]
    %v1945 = vld [vmem:[#allocation2 + $0xdc] sm:$0xf]
    %v1946 = vld [vmem:[#allocation2 + $0xe0] sm:$0xf]
    %v1947 = vld [vmem:[#allocation2 + $0xe4] sm:$0xf]
    %v1948 = vld [vmem:[#allocation2 + $0xe8] sm:$0xf]
    %v1949 = vld [vmem:[#allocation2 + $0xec] sm:$0xf]
    %v1950 = vld [vmem:[#allocation2 + $0xf0] sm:$0xf]
    %v1951 = vld [vmem:[#allocation2 + $0xf4] sm:$0xf]
    %v1952 = vld [vmem:[#allocation2 + $0xf8] sm:$0xf]
    %v1953 = vld [vmem:[#allocation2 + $0xfc] sm:$0xf]
    %v1954 = vld [vmem:[%s2] sm:$0xf]
    %v1955 = vld [vmem:[%s2 + $0x4] sm:$0xf]
    %v1956 = vld [vmem:[%s2 + $0x8] sm:$0xf]
    %v1957 = vld [vmem:[%s2 + $0xc] sm:$0xf]
    %v1958 = vld [vmem:[%s2 + $0x10] sm:$0xf]
    %v1959 = vld [vmem:[%s2 + $0x14] sm:$0xf]
    %v1960 = vld [vmem:[%s2 + $0x18] sm:$0xf]
    %v1961 = vld [vmem:[%s2 + $0x1c] sm:$0xf]
    %v1962 = vld [vmem:[%s2 + $0x20] sm:$0xf]
    %v1963 = vld [vmem:[%s2 + $0x24] sm:$0xf]
    %v1964 = vld [vmem:[%s2 + $0x28] sm:$0xf]
    %v1965 = vld [vmem:[%s2 + $0x2c] sm:$0xf]
    %v2030 = vunpack.c.l.b16 %v1890
    %v2031 = vunpack.c.l.b16 %v1891
    %v2032 = vunpack.c.l.b16 %v1892
    %v2033 = vunpack.c.l.b16 %v1893
    %v2034 = vunpack.c.l.b16 %v1894
    %v2035 = vunpack.c.l.b16 %v1895
    %v2036 = vunpack.c.l.b16 %v1896
    %v2037 = vunpack.c.l.b16 %v1897
    %v2038 = vunpack.c.l.b16 %v1898
    %v2039 = vunpack.c.l.b16 %v1899
    %v2040 = vunpack.c.l.b16 %v1900
    %v2041 = vunpack.c.l.b16 %v1901
    %v2042 = vunpack.c.l.b16 %v1902
    %v2043 = vunpack.c.l.b16 %v1903
    %v2044 = vunpack.c.l.b16 %v1904
    %v2045 = vunpack.c.l.b16 %v1905
    %v2046 = vunpack.c.l.b16 %v1906
    %v2047 = vunpack.c.l.b16 %v1907
    %v2048 = vunpack.c.l.b16 %v1908
    %v2049 = vunpack.c.l.b16 %v1909
    %v2050 = vunpack.c.l.b16 %v1910
    %v2051 = vunpack.c.l.b16 %v1911
    %v2052 = vunpack.c.l.b16 %v1912
    %v2053 = vunpack.c.l.b16 %v1913
    %v2054 = vunpack.c.l.b16 %v1914
    %v2055 = vunpack.c.l.b16 %v1915
    %v2056 = vunpack.c.l.b16 %v1916
    %v2057 = vunpack.c.l.b16 %v1917
    %v2058 = vunpack.c.l.b16 %v1918
    %v2059 = vunpack.c.l.b16 %v1919
    %v2060 = vunpack.c.l.b16 %v1920
    %v2061 = vunpack.c.l.b16 %v1921
    %v2062 = vunpack.c.l.b16 %v1922
    %v2063 = vunpack.c.l.b16 %v1923
    %v2064 = vunpack.c.l.b16 %v1924
    %v2065 = vunpack.c.l.b16 %v1925
    %v2066 = vunpack.c.l.b16 %v1926
    %v2067 = vunpack.c.l.b16 %v1927
    %v2068 = vunpack.c.l.b16 %v1928
    %v2069 = vunpack.c.l.b16 %v1929
    %v2070 = vunpack.c.l.b16 %v1930
    %v2071 = vunpack.c.l.b16 %v1931
    %v2072 = vunpack.c.l.b16 %v1932
    %v2073 = vunpack.c.l.b16 %v1933
    %v2074 = vunpack.c.l.b16 %v1934
    %v2075 = vunpack.c.l.b16 %v1935
    %v2076 = vunpack.c.l.b16 %v1936
    %v2077 = vunpack.c.l.b16 %v1937
    %v2078 = vunpack.c.l.b16 %v1938
    %v2079 = vunpack.c.l.b16 %v1939
    %v2080 = vunpack.c.l.b16 %v1940
    %v2081 = vunpack.c.l.b16 %v1941
    %v2082 = vunpack.c.l.b16 %v1942
    %v2083 = vunpack.c.l.b16 %v1943
    %v2084 = vunpack.c.l.b16 %v1944
    %v2085 = vunpack.c.l.b16 %v1945
    %v2086 = vunpack.c.l.b16 %v1946
    %v2087 = vunpack.c.l.b16 %v1947
    %v2088 = vunpack.c.l.b16 %v1948
    %v2089 = vunpack.c.l.b16 %v1949
    %v2090 = vunpack.c.l.b16 %v1950
    %v2091 = vunpack.c.l.b16 %v1951
    %v2092 = vunpack.c.l.b16 %v1952
    %v2093 = vunpack.c.l.b16 %v1953
    %v2094 = vpack.c.b16 %v2031, %v2030
    %v2095 = vpack.c.b16 %v2033, %v2032
    %v2096 = vpack.c.b16 %v2035, %v2034
    %v2097 = vpack.c.b16 %v2037, %v2036
    %v2098 = vpack.c.b16 %v2039, %v2038
    %v2099 = vpack.c.b16 %v2041, %v2040
    %v2100 = vpack.c.b16 %v2043, %v2042
    %v2101 = vpack.c.b16 %v2045, %v2044
    %v2102 = vpack.c.b16 %v2047, %v2046
    %v2103 = vpack.c.b16 %v2049, %v2048
    %v2104 = vpack.c.b16 %v2051, %v2050
    %v2105 = vpack.c.b16 %v2053, %v2052
    %v2106 = vpack.c.b16 %v2055, %v2054
    %v2107 = vpack.c.b16 %v2057, %v2056
    %v2108 = vpack.c.b16 %v2059, %v2058
    %v2109 = vpack.c.b16 %v2061, %v2060
    %v2110 = vpack.c.b16 %v2063, %v2062
    %v2111 = vpack.c.b16 %v2065, %v2064
    %v2112 = vpack.c.b16 %v2067, %v2066
    %v2113 = vpack.c.b16 %v2069, %v2068
    %v2114 = vpack.c.b16 %v2071, %v2070
    %v2115 = vpack.c.b16 %v2073, %v2072
    %v2116 = vpack.c.b16 %v2075, %v2074
    %v2117 = vpack.c.b16 %v2077, %v2076
    %v2118 = vpack.c.b16 %v2079, %v2078
    %v2119 = vpack.c.b16 %v2081, %v2080
    %v2120 = vpack.c.b16 %v2083, %v2082
    %v2121 = vpack.c.b16 %v2085, %v2084
    %v2122 = vpack.c.b16 %v2087, %v2086
    %v2123 = vpack.c.b16 %v2089, %v2088
    %v2124 = vpack.c.b16 %v2091, %v2090
    %v2125 = vpack.c.b16 %v2093, %v2092
    %v2138 = vunpack.c.l.b16 %v1954
    %v2139 = vunpack.c.l.b16 %v1955
    %v2140 = vunpack.c.l.b16 %v1956
    %v2141 = vunpack.c.l.b16 %v1957
    %v2142 = vunpack.c.l.b16 %v1958
    %v2143 = vunpack.c.l.b16 %v1959
    %v2144 = vunpack.c.l.b16 %v1960
    %v2145 = vunpack.c.l.b16 %v1961
    %v2146 = vunpack.c.l.b16 %v1962
    %v2147 = vunpack.c.l.b16 %v1963
    %v2148 = vunpack.c.l.b16 %v1964
    %v2149 = vunpack.c.l.b16 %v1965
    %v2150 = vpack.c.b16 %v2139, %v2138
    %v2151 = vpack.c.b16 %v2141, %v2140
    %v2152 = vpack.c.b16 %v2143, %v2142
    %v2153 = vpack.c.b16 %v2145, %v2144
    %v2154 = vpack.c.b16 %v2147, %v2146
    %v2155 = vpack.c.b16 %v2149, %v2148
    %vm2162 = vcmask 785408
    %v2164 = vsel %vm2162, %v2094, 0
    %v2167 = vsel %vm2162, %v2095, 0
    %v2170 = vsel %vm2162, %v2096, 0
    %v2173 = vsel %vm2162, %v2097, 0
    %v2176 = vsel %vm2162, %v2098, 0
    %v2179 = vsel %vm2162, %v2099, 0
    %v2182 = vsel %vm2162, %v2100, 0
    %v2185 = vsel %vm2162, %v2101, 0
    %v2188 = vsel %vm2162, %v2102, 0
    %v2191 = vsel %vm2162, %v2103, 0
    %v2194 = vsel %vm2162, %v2104, 0
    %v2197 = vsel %vm2162, %v2105, 0
    %v2200 = vsel %vm2162, %v2106, 0
    %v2203 = vsel %vm2162, %v2107, 0
    %v2206 = vsel %vm2162, %v2108, 0
    %v2209 = vsel %vm2162, %v2109, 0
    %v2212 = vsel %vm2162, %v2110, 0
    %v2215 = vsel %vm2162, %v2111, 0
    %v2218 = vsel %vm2162, %v2112, 0
    %v2221 = vsel %vm2162, %v2113, 0
    %v2224 = vsel %vm2162, %v2114, 0
    %v2227 = vsel %vm2162, %v2115, 0
    %v2230 = vsel %vm2162, %v2116, 0
    %v2233 = vsel %vm2162, %v2117, 0
    %v2236 = vsel %vm2162, %v2118, 0
    %v2239 = vsel %vm2162, %v2119, 0
    %v2242 = vsel %vm2162, %v2120, 0
    %v2245 = vsel %vm2162, %v2121, 0
    %v2248 = vsel %vm2162, %v2122, 0
    %v2251 = vsel %vm2162, %v2123, 0
    %v2254 = vsel %vm2162, %v2124, 0
    %v2257 = vsel %vm2162, %v2125, 0
    %2259 = vmatprep.subr.bf16.mxu0 0
    %2260 = vmatpush1.bf16.msra.mxu0 0
    %2261 = vmatprep.subr.bf16.mxu0 0
    %2262 = vmatpush1.bf16.msra.mxu0 0
    %2263 = vmatprep.subr.bf16.mxu0 0
    %2264 = vmatpush1.bf16.msra.mxu0 %v2155
    %2265 = vmatprep.subr.bf16.mxu0 0
    %2266 = vmatpush1.bf16.msra.mxu0 %v2154
    %2267 = vmatprep.subr.bf16.mxu0 0
    %2268 = vmatpush1.bf16.msra.mxu0 %v2153
    %2269 = vmatprep.subr.bf16.mxu0 0
    %2270 = vmatpush1.bf16.msra.mxu0 %v2152
    %2271 = vmatprep.subr.bf16.mxu0 0
    %2272 = vmatpush1.bf16.msra.mxu0 %v2151
    %2273 = vmatprep.subr.bf16.mxu0 0
    %2274 = vmatpush1.bf16.msra.mxu0 %v2150
    %2275 = vmatprep.subr.bf16.mxu0 0
    %2276 = vmatpush2.bf16.msra.mxu0 0
    %2277 = vmatprep.subr.bf16.mxu0 0
    %2278 = vmatpush2.bf16.msra.mxu0 0
    %2279 = vmatprep.subr.bf16.mxu0 0
    %2280 = vmatpush2.bf16.msra.mxu0 0
    %2281 = vmatprep.subr.bf16.mxu0 0
    %2282 = vmatpush2.bf16.msra.mxu0 0
    %2283 = vmatprep.subr.bf16.mxu0 0
    %2284 = vmatpush2.bf16.msra.mxu0 0
    %2285 = vmatprep.subr.bf16.mxu0 0
    %2286 = vmatpush2.bf16.msra.mxu0 0
    %2287 = vmatprep.subr.bf16.mxu0 0
    %2288 = vmatpush2.bf16.msra.mxu0 0
    %2289 = vmatprep.subr.bf16.mxu0 0
    %2290 = vmatpush2.bf16.msra.mxu0 0
    %2291 = vmatprep.mubr.bf16.mxu0 0
    %2292 = vmatmul.mubr.bf16.gmra.mxu0 %v2164
    %v2293 = vpop.f32.mrf.mxu0
    %v2294 = vadd.f32 0.0, %v2293
    %v2295 = vpop.f32.mrf.mxu0
    %v2296 = vpop.f32.mrf.mxu0
    %v2297 = vadd.f32 0.0, %v2296
    %v2298 = vpop.f32.mrf.mxu0
    %2299 = vmatprep.mubr.bf16.mxu0 0
    %2300 = vmatmul.mubr.bf16.gmra.mxu0 %v2167
    %v2301 = vpop.f32.mrf.mxu0
    %v2302 = vadd.f32 0.0, %v2301
    %v2303 = vpop.f32.mrf.mxu0
    %v2304 = vpop.f32.mrf.mxu0
    %v2305 = vadd.f32 0.0, %v2304
    %v2306 = vpop.f32.mrf.mxu0
    %2307 = vmatprep.mubr.bf16.mxu0 0
    %2308 = vmatmul.mubr.bf16.gmra.mxu0 %v2170
    %v2309 = vpop.f32.mrf.mxu0
    %v2310 = vadd.f32 0.0, %v2309
    %v2311 = vpop.f32.mrf.mxu0
    %v2312 = vpop.f32.mrf.mxu0
    %v2313 = vadd.f32 0.0, %v2312
    %v2314 = vpop.f32.mrf.mxu0
    %2315 = vmatprep.mubr.bf16.mxu0 0
    %2316 = vmatmul.mubr.bf16.gmra.mxu0 %v2173
    %v2317 = vpop.f32.mrf.mxu0
    %v2318 = vadd.f32 0.0, %v2317
    %v2319 = vpop.f32.mrf.mxu0
    %v2320 = vpop.f32.mrf.mxu0
    %v2321 = vadd.f32 0.0, %v2320
    %v2322 = vpop.f32.mrf.mxu0
    %2323 = vmatprep.mubr.bf16.mxu0 0
    %2324 = vmatmul.mubr.bf16.gmra.mxu0 %v2176
    %v2325 = vpop.f32.mrf.mxu0
    %v2326 = vadd.f32 0.0, %v2325
    %v2327 = vpop.f32.mrf.mxu0
    %v2328 = vpop.f32.mrf.mxu0
    %v2329 = vadd.f32 0.0, %v2328
    %v2330 = vpop.f32.mrf.mxu0
    %2331 = vmatprep.mubr.bf16.mxu0 0
    %2332 = vmatmul.mubr.bf16.gmra.mxu0 %v2179
    %v2333 = vpop.f32.mrf.mxu0
    %v2334 = vadd.f32 0.0, %v2333
    %v2335 = vpop.f32.mrf.mxu0
    %v2336 = vpop.f32.mrf.mxu0
    %v2337 = vadd.f32 0.0, %v2336
    %v2338 = vpop.f32.mrf.mxu0
    %2339 = vmatprep.mubr.bf16.mxu0 0
    %2340 = vmatmul.mubr.bf16.gmra.mxu0 %v2182
    %v2341 = vpop.f32.mrf.mxu0
    %v2342 = vadd.f32 0.0, %v2341
    %v2343 = vpop.f32.mrf.mxu0
    %v2344 = vpop.f32.mrf.mxu0
    %v2345 = vadd.f32 0.0, %v2344
    %v2346 = vpop.f32.mrf.mxu0
    %2347 = vmatprep.mubr.bf16.mxu0 0
    %2348 = vmatmul.mubr.bf16.gmra.mxu0 %v2185
    %v2349 = vpop.f32.mrf.mxu0
    %v2350 = vadd.f32 0.0, %v2349
    %v2351 = vpop.f32.mrf.mxu0
    %v2352 = vpop.f32.mrf.mxu0
    %v2353 = vadd.f32 0.0, %v2352
    %v2354 = vpop.f32.mrf.mxu0
    %2355 = vmatprep.mubr.bf16.mxu0 0
    %2356 = vmatmul.mubr.bf16.gmra.mxu0 %v2188
    %v2357 = vpop.f32.mrf.mxu0
    %v2358 = vadd.f32 0.0, %v2357
    %v2359 = vpop.f32.mrf.mxu0
    %v2360 = vpop.f32.mrf.mxu0
    %v2361 = vadd.f32 0.0, %v2360
    %v2362 = vpop.f32.mrf.mxu0
    %2363 = vmatprep.mubr.bf16.mxu0 0
    %2364 = vmatmul.mubr.bf16.gmra.mxu0 %v2191
    %v2365 = vpop.f32.mrf.mxu0
    %v2366 = vadd.f32 0.0, %v2365
    %v2367 = vpop.f32.mrf.mxu0
    %v2368 = vpop.f32.mrf.mxu0
    %v2369 = vadd.f32 0.0, %v2368
    %v2370 = vpop.f32.mrf.mxu0
    %2371 = vmatprep.mubr.bf16.mxu0 0
    %2372 = vmatmul.mubr.bf16.gmra.mxu0 %v2194
    %v2373 = vpop.f32.mrf.mxu0
    %v2374 = vadd.f32 0.0, %v2373
    %v2375 = vpop.f32.mrf.mxu0
    %v2376 = vpop.f32.mrf.mxu0
    %v2377 = vadd.f32 0.0, %v2376
    %v2378 = vpop.f32.mrf.mxu0
    %2379 = vmatprep.mubr.bf16.mxu0 0
    %2380 = vmatmul.mubr.bf16.gmra.mxu0 %v2197
    %v2381 = vpop.f32.mrf.mxu0
    %v2382 = vadd.f32 0.0, %v2381
    %v2383 = vpop.f32.mrf.mxu0
    %v2384 = vpop.f32.mrf.mxu0
    %v2385 = vadd.f32 0.0, %v2384
    %v2386 = vpop.f32.mrf.mxu0
    %2387 = vmatprep.mubr.bf16.mxu0 0
    %2388 = vmatmul.mubr.bf16.gmra.mxu0 %v2200
    %v2389 = vpop.f32.mrf.mxu0
    %v2390 = vadd.f32 0.0, %v2389
    %v2391 = vpop.f32.mrf.mxu0
    %v2392 = vpop.f32.mrf.mxu0
    %v2393 = vadd.f32 0.0, %v2392
    %v2394 = vpop.f32.mrf.mxu0
    %2395 = vmatprep.mubr.bf16.mxu0 0
    %2396 = vmatmul.mubr.bf16.gmra.mxu0 %v2203
    %v2397 = vpop.f32.mrf.mxu0
    %v2398 = vadd.f32 0.0, %v2397
    %v2399 = vpop.f32.mrf.mxu0
    %v2400 = vpop.f32.mrf.mxu0
    %v2401 = vadd.f32 0.0, %v2400
    %v2402 = vpop.f32.mrf.mxu0
    %2403 = vmatprep.mubr.bf16.mxu0 0
    %2404 = vmatmul.mubr.bf16.gmra.mxu0 %v2206
    %v2405 = vpop.f32.mrf.mxu0
    %v2406 = vadd.f32 0.0, %v2405
    %v2407 = vpop.f32.mrf.mxu0
    %v2408 = vpop.f32.mrf.mxu0
    %v2409 = vadd.f32 0.0, %v2408
    %v2410 = vpop.f32.mrf.mxu0
    %2411 = vmatprep.mubr.bf16.mxu0 0
    %2412 = vmatmul.mubr.bf16.gmra.mxu0 %v2209
    %v2413 = vpop.f32.mrf.mxu0
    %v2414 = vadd.f32 0.0, %v2413
    %v2415 = vpop.f32.mrf.mxu0
    %v2416 = vpop.f32.mrf.mxu0
    %v2417 = vadd.f32 0.0, %v2416
    %v2418 = vpop.f32.mrf.mxu0
    %2419 = vmatprep.mubr.bf16.mxu0 0
    %2420 = vmatmul.mubr.bf16.gmra.mxu0 %v2212
    %v2421 = vpop.f32.mrf.mxu0
    %v2422 = vadd.f32 0.0, %v2421
    %v2423 = vpop.f32.mrf.mxu0
    %v2424 = vpop.f32.mrf.mxu0
    %v2425 = vadd.f32 0.0, %v2424
    %v2426 = vpop.f32.mrf.mxu0
    %2427 = vmatprep.mubr.bf16.mxu0 0
    %2428 = vmatmul.mubr.bf16.gmra.mxu0 %v2215
    %v2429 = vpop.f32.mrf.mxu0
    %v2430 = vadd.f32 0.0, %v2429
    %v2431 = vpop.f32.mrf.mxu0
    %v2432 = vpop.f32.mrf.mxu0
    %v2433 = vadd.f32 0.0, %v2432
    %v2434 = vpop.f32.mrf.mxu0
    %2435 = vmatprep.mubr.bf16.mxu0 0
    %2436 = vmatmul.mubr.bf16.gmra.mxu0 %v2218
    %v2437 = vpop.f32.mrf.mxu0
    %v2438 = vadd.f32 0.0, %v2437
    %v2439 = vpop.f32.mrf.mxu0
    %v2440 = vpop.f32.mrf.mxu0
    %v2441 = vadd.f32 0.0, %v2440
    %v2442 = vpop.f32.mrf.mxu0
    %2443 = vmatprep.mubr.bf16.mxu0 0
    %2444 = vmatmul.mubr.bf16.gmra.mxu0 %v2221
    %v2445 = vpop.f32.mrf.mxu0
    %v2446 = vadd.f32 0.0, %v2445
    %v2447 = vpop.f32.mrf.mxu0
    %v2448 = vpop.f32.mrf.mxu0
    %v2449 = vadd.f32 0.0, %v2448
    %v2450 = vpop.f32.mrf.mxu0
    %2451 = vmatprep.mubr.bf16.mxu0 0
    %2452 = vmatmul.mubr.bf16.gmra.mxu0 %v2224
    %v2453 = vpop.f32.mrf.mxu0
    %v2454 = vadd.f32 0.0, %v2453
    %v2455 = vpop.f32.mrf.mxu0
    %v2456 = vpop.f32.mrf.mxu0
    %v2457 = vadd.f32 0.0, %v2456
    %v2458 = vpop.f32.mrf.mxu0
    %2459 = vmatprep.mubr.bf16.mxu0 0
    %2460 = vmatmul.mubr.bf16.gmra.mxu0 %v2227
    %v2461 = vpop.f32.mrf.mxu0
    %v2462 = vadd.f32 0.0, %v2461
    %v2463 = vpop.f32.mrf.mxu0
    %v2464 = vpop.f32.mrf.mxu0
    %v2465 = vadd.f32 0.0, %v2464
    %v2466 = vpop.f32.mrf.mxu0
    %2467 = vmatprep.mubr.bf16.mxu0 0
    %2468 = vmatmul.mubr.bf16.gmra.mxu0 %v2230
    %v2469 = vpop.f32.mrf.mxu0
    %v2470 = vadd.f32 0.0, %v2469
    %v2471 = vpop.f32.mrf.mxu0
    %v2472 = vpop.f32.mrf.mxu0
    %v2473 = vadd.f32 0.0, %v2472
    %v2474 = vpop.f32.mrf.mxu0
    %2475 = vmatprep.mubr.bf16.mxu0 0
    %2476 = vmatmul.mubr.bf16.gmra.mxu0 %v2233
    %v2477 = vpop.f32.mrf.mxu0
    %v2478 = vadd.f32 0.0, %v2477
    %v2479 = vpop.f32.mrf.mxu0
    %v2480 = vpop.f32.mrf.mxu0
    %v2481 = vadd.f32 0.0, %v2480
    %v2482 = vpop.f32.mrf.mxu0
    %2483 = vmatprep.mubr.bf16.mxu0 0
    %2484 = vmatmul.mubr.bf16.gmra.mxu0 %v2236
    %v2485 = vpop.f32.mrf.mxu0
    %v2486 = vadd.f32 0.0, %v2485
    %v2487 = vpop.f32.mrf.mxu0
    %v2488 = vpop.f32.mrf.mxu0
    %v2489 = vadd.f32 0.0, %v2488
    %v2490 = vpop.f32.mrf.mxu0
    %2491 = vmatprep.mubr.bf16.mxu0 0
    %2492 = vmatmul.mubr.bf16.gmra.mxu0 %v2239
    %v2493 = vpop.f32.mrf.mxu0
    %v2494 = vadd.f32 0.0, %v2493
    %v2495 = vpop.f32.mrf.mxu0
    %v2496 = vpop.f32.mrf.mxu0
    %v2497 = vadd.f32 0.0, %v2496
    %v2498 = vpop.f32.mrf.mxu0
    %2499 = vmatprep.mubr.bf16.mxu0 0
    %2500 = vmatmul.mubr.bf16.gmra.mxu0 %v2242
    %v2501 = vpop.f32.mrf.mxu0
    %v2502 = vadd.f32 0.0, %v2501
    %v2503 = vpop.f32.mrf.mxu0
    %v2504 = vpop.f32.mrf.mxu0
    %v2505 = vadd.f32 0.0, %v2504
    %v2506 = vpop.f32.mrf.mxu0
    %2507 = vmatprep.mubr.bf16.mxu0 0
    %2508 = vmatmul.mubr.bf16.gmra.mxu0 %v2245
    %v2509 = vpop.f32.mrf.mxu0
    %v2510 = vadd.f32 0.0, %v2509
    %v2511 = vpop.f32.mrf.mxu0
    %v2512 = vpop.f32.mrf.mxu0
    %v2513 = vadd.f32 0.0, %v2512
    %v2514 = vpop.f32.mrf.mxu0
    %2515 = vmatprep.mubr.bf16.mxu0 0
    %2516 = vmatmul.mubr.bf16.gmra.mxu0 %v2248
    %v2517 = vpop.f32.mrf.mxu0
    %v2518 = vadd.f32 0.0, %v2517
    %v2519 = vpop.f32.mrf.mxu0
    %v2520 = vpop.f32.mrf.mxu0
    %v2521 = vadd.f32 0.0, %v2520
    %v2522 = vpop.f32.mrf.mxu0
    %2523 = vmatprep.mubr.bf16.mxu0 0
    %2524 = vmatmul.mubr.bf16.gmra.mxu0 %v2251
    %v2525 = vpop.f32.mrf.mxu0
    %v2526 = vadd.f32 0.0, %v2525
    %v2527 = vpop.f32.mrf.mxu0
    %v2528 = vpop.f32.mrf.mxu0
    %v2529 = vadd.f32 0.0, %v2528
    %v2530 = vpop.f32.mrf.mxu0
    %2531 = vmatprep.mubr.bf16.mxu0 0
    %2532 = vmatmul.mubr.bf16.gmra.mxu0 %v2254
    %v2533 = vpop.f32.mrf.mxu0
    %v2534 = vadd.f32 0.0, %v2533
    %v2535 = vpop.f32.mrf.mxu0
    %v2536 = vpop.f32.mrf.mxu0
    %v2537 = vadd.f32 0.0, %v2536
    %v2538 = vpop.f32.mrf.mxu0
    %2539 = vmatprep.mubr.bf16.mxu0 0
    %2540 = vmatmul.mubr.bf16.gmra.mxu0 %v2257
    %v2541 = vpop.f32.mrf.mxu0
    %v2542 = vadd.f32 0.0, %v2541
    %v2543 = vpop.f32.mrf.mxu0
    %v2544 = vpop.f32.mrf.mxu0
    %v2545 = vadd.f32 0.0, %v2544
    %v2546 = vpop.f32.mrf.mxu0
    %2547 = vdwg.mxu0
    %2548 = vst [vmem:[#allocation3] sm:$0xff] %v2294
    %2549 = vst [vmem:[#allocation3 + $0x8] sm:$0xff] %v2297
    %2550 = vst [vmem:[#allocation3 + $0x10] sm:$0xff] %v2302
    %2551 = vst [vmem:[#allocation3 + $0x18] sm:$0xff] %v2305
    %2552 = vst [vmem:[#allocation3 + $0x20] sm:$0xff] %v2310
    %2553 = vst [vmem:[#allocation3 + $0x28] sm:$0xff] %v2313
    %2554 = vst [vmem:[#allocation3 + $0x30] sm:$0xff] %v2318
    %2555 = vst [vmem:[#allocation3 + $0x38] sm:$0xff] %v2321
    %2556 = vst [vmem:[#allocation3 + $0x40] sm:$0xff] %v2326
    %2557 = vst [vmem:[#allocation3 + $0x48] sm:$0xff] %v2329
    %2558 = vst [vmem:[#allocation3 + $0x50] sm:$0xff] %v2334
    %2559 = vst [vmem:[#allocation3 + $0x58] sm:$0xff] %v2337
    %2560 = vst [vmem:[#allocation3 + $0x60] sm:$0xff] %v2342
    %2561 = vst [vmem:[#allocation3 + $0x68] sm:$0xff] %v2345
    %2562 = vst [vmem:[#allocation3 + $0x70] sm:$0xff] %v2350
    %2563 = vst [vmem:[#allocation3 + $0x78] sm:$0xff] %v2353
    %2564 = vst [vmem:[#allocation3 + $0x80] sm:$0xff] %v2358
    %2565 = vst [vmem:[#allocation3 + $0x88] sm:$0xff] %v2361
    %2566 = vst [vmem:[#allocation3 + $0x90] sm:$0xff] %v2366
    %2567 = vst [vmem:[#allocation3 + $0x98] sm:$0xff] %v2369
    %2568 = vst [vmem:[#allocation3 + $0xa0] sm:$0xff] %v2374
    %2569 = vst [vmem:[#allocation3 + $0xa8] sm:$0xff] %v2377
    %2570 = vst [vmem:[#allocation3 + $0xb0] sm:$0xff] %v2382
    %2571 = vst [vmem:[#allocation3 + $0xb8] sm:$0xff] %v2385
    %2572 = vst [vmem:[#allocation3 + $0xc0] sm:$0xff] %v2390
    %2573 = vst [vmem:[#allocation3 + $0xc8] sm:$0xff] %v2393
    %2574 = vst [vmem:[#allocation3 + $0xd0] sm:$0xff] %v2398
    %2575 = vst [vmem:[#allocation3 + $0xd8] sm:$0xff] %v2401
    %2576 = vst [vmem:[#allocation3 + $0xe0] sm:$0xff] %v2406
    %2577 = vst [vmem:[#allocation3 + $0xe8] sm:$0xff] %v2409
    %2578 = vst [vmem:[#allocation3 + $0xf0] sm:$0xff] %v2414
    %2579 = vst [vmem:[#allocation3 + $0xf8] sm:$0xff] %v2417
    %2580 = vst [vmem:[#allocation3 + $0x100] sm:$0xff] %v2422
    %2581 = vst [vmem:[#allocation3 + $0x108] sm:$0xff] %v2425
    %2582 = vst [vmem:[#allocation3 + $0x110] sm:$0xff] %v2430
    %2583 = vst [vmem:[#allocation3 + $0x118] sm:$0xff] %v2433
    %2584 = vst [vmem:[#allocation3 + $0x120] sm:$0xff] %v2438
    %2585 = vst [vmem:[#allocation3 + $0x128] sm:$0xff] %v2441
    %2586 = vst [vmem:[#allocation3 + $0x130] sm:$0xff] %v2446
    %2587 = vst [vmem:[#allocation3 + $0x138] sm:$0xff] %v2449
    %2588 = vst [vmem:[#allocation3 + $0x140] sm:$0xff] %v2454
    %2589 = vst [vmem:[#allocation3 + $0x148] sm:$0xff] %v2457
    %2590 = vst [vmem:[#allocation3 + $0x150] sm:$0xff] %v2462
    %2591 = vst [vmem:[#allocation3 + $0x158] sm:$0xff] %v2465
    %2592 = vst [vmem:[#allocation3 + $0x160] sm:$0xff] %v2470
    %2593 = vst [vmem:[#allocation3 + $0x168] sm:$0xff] %v2473
    %2594 = vst [vmem:[#allocation3 + $0x170] sm:$0xff] %v2478
    %2595 = vst [vmem:[#allocation3 + $0x178] sm:$0xff] %v2481
    %2596 = vst [vmem:[#allocation3 + $0x180] sm:$0xff] %v2486
    %2597 = vst [vmem:[#allocation3 + $0x188] sm:$0xff] %v2489
    %2598 = vst [vmem:[#allocation3 + $0x190] sm:$0xff] %v2494
    %2599 = vst [vmem:[#allocation3 + $0x198] sm:$0xff] %v2497
    %2600 = vst [vmem:[#allocation3 + $0x1a0] sm:$0xff] %v2502
    %2601 = vst [vmem:[#allocation3 + $0x1a8] sm:$0xff] %v2505
    %2602 = vst [vmem:[#allocation3 + $0x1b0] sm:$0xff] %v2510
    %2603 = vst [vmem:[#allocation3 + $0x1b8] sm:$0xff] %v2513
    %2604 = vst [vmem:[#allocation3 + $0x1c0] sm:$0xff] %v2518
    %2605 = vst [vmem:[#allocation3 + $0x1c8] sm:$0xff] %v2521
    %2606 = vst [vmem:[#allocation3 + $0x1d0] sm:$0xff] %v2526
    %2607 = vst [vmem:[#allocation3 + $0x1d8] sm:$0xff] %v2529
    %2608 = vst [vmem:[#allocation3 + $0x1e0] sm:$0xff] %v2534
    %2609 = vst [vmem:[#allocation3 + $0x1e8] sm:$0xff] %v2537
    %2610 = vst [vmem:[#allocation3 + $0x1f0] sm:$0xff] %v2542
    %2611 = vst [vmem:[#allocation3 + $0x1f8] sm:$0xff] %v2545
    // Predicated region
    $region18: #{transition_forward.3} parent=1 // pred_check
      _
    $region19: #{transition_forward.3} parent=1 // pred_check_branch
      %2613 = sbr.rel (0) target = $region21
    $region20: #{transition_forward.3} parent=1 // pred_region
      %s2615 = ssub.s32 8192, 8192
      %2616 = vsyncadd [#allocation4], %s2615
      %s2617 = sshll.u32 [#allocation3], 4
      %s2618 = int_to_ptr.vmem [resolvable:$true] %s2617
      %2623 = dma.vmem_to_hbm [thread:$0]  %s2618, 8192, %s3, [#allocation4], 128, 128, 8
    $region21: #{transition_forward.3} parent=1 // pred_fallthru
      _
    // Predicated region
    $region22: #{transition_forward.3} parent=1 // pred_check
      _
    $region23: #{transition_forward.3} parent=1 // pred_check_branch
      %2625 = sbr.rel (0) target = $region25
    $region24: #{transition_forward.3} parent=1 // pred_region
      %2626 = dma.done [#allocation4], 8192
    $region25: #{transition_forward.3} parent=1 // pred_fallthru
      _
    %2627 = vsyncpa [#allocation4], 1

</llo_original>
